<compile_context>
chip_gen: v7x
topology: tpu7x:2x2x1
jax: 0.10.0
libtpu: 0.0.40
codegen_flags: <defaults>
</compile_context>

<pallas_src>
import functools
import math

import jax
import jax.numpy as jnp
from jax import lax
from jax.experimental import pallas as pl
from jax.experimental.pallas import tpu as pltpu


# ------------------------------ configuration ------------------------------

VOCAB = 40      # text vocabulary size
EMB = 32        # text embedding dim
D_MODEL = 32    # encoder output dim (true model dim)
N_MFCC = 20     # speech feature dim
DP = 128        # padded lane width (d_model / vocab / n_mfcc / emb)


def _round_up(x, m):
    return ((x + m - 1) // m) * m


def _pick_bblk(B):
    """Batch block: amortize per-grid-step overhead, keep >= 2 grid steps."""
    for cand in (8, 4, 2):
        if B % cand == 0 and B // cand >= 2:
            return cand
    return 1


# ------------------------------ fused kernel -------------------------------

def _fa_fused_kernel(
    tlen_ref, mlen_ref,                                    # SMEM scalar prefetch
    ids_ref, m_in_ref,                                     # per-batch activations
    emb_ref, w_te_ref, b_te_ref, w_se_ref, b_se_ref,       # embedding + encoders
    w_tep_ref, b_tep_ref, w_mep_ref, b_mep_ref,            # TeP / MeP predictors
    inv_freq_ref, pe_phase_ref, pe_mask_ref,               # PE constants
    w_td_ref, b_td_ref, w_sd_ref, b_sd_ref,                # decoders
    p_texts_ref, p_mfccs_ref, w_ref,                       # outputs
    *, T, S, Tp, Sp, d_model, Bblk):
    f32 = jnp.float32
    bf16 = jnp.bfloat16

    # ---- grid-step invariants, hoisted out of the batch-element loop ----
    emb = emb_ref[...]
    w_te, b_te = w_te_ref[...], b_te_ref[...]
    w_se, b_se = w_se_ref[...], b_se_ref[...]
    w_tep, b_tep = w_tep_ref[...], b_tep_ref[...]
    w_mep, b_mep = w_mep_ref[...], b_mep_ref[...]
    inv_freq = inv_freq_ref[...]
    pe_phase = pe_phase_ref[...]
    pe_mask = pe_mask_ref[...]
    w_td, b_td = w_td_ref[...], b_td_ref[...]
    w_sd, b_sd = w_sd_ref[...], b_sd_ref[...]

    vocab_iota = lax.broadcasted_iota(jnp.int32, (Tp, DP), 1)
    t_row_mask = lax.broadcasted_iota(jnp.int32, (Tp, DP), 0) < T
    s_row_mask = lax.broadcasted_iota(jnp.int32, (Sp, DP), 0) < S
    # lower-triangular cumsum operators, generated in-kernel (no DMA'd constant)
    tri_t = (lax.broadcasted_iota(jnp.int32, (Tp, Tp), 0)
             >= lax.broadcasted_iota(jnp.int32, (Tp, Tp), 1)).astype(f32)
    tri_s = (lax.broadcasted_iota(jnp.int32, (Sp, Sp), 0)
             >= lax.broadcasted_iota(jnp.int32, (Sp, Sp), 1)).astype(f32)
    txt_idx = lax.broadcasted_iota(jnp.int32, (Tp, Sp), 0)   # text index in scores
    spc_idx = lax.broadcasted_iota(jnp.int32, (Tp, Sp), 1)   # speech index in scores
    inv_sqrt_d = 1.0 / math.sqrt(d_model)

    def pos_encode(x_enc, w_row, bias, scale, tri):
        # (L,1) increment on the VPU (rowsum); relu; optional x10 for MeP.
        inc = jnp.maximum(
            jnp.sum(x_enc * w_row, axis=-1, keepdims=True) + bias, 0.0) * scale
        # angles = cumsum(inc) * inv_freq as a single lane-dense f32 matmul.
        ang = jnp.dot(tri, inc * inv_freq, preferred_element_type=f32)
        # one EUP sin (cos folded into the pi/2 per-lane phase).
        return x_enc + jnp.sin(ang + pe_phase) * pe_mask

    for i in range(Bblk):                       # static, fully unrolled
        b = pl.program_id(0) * Bblk + i
        tlen = tlen_ref[b]
        mlen = mlen_ref[b]

        # ---- embedding gather: one-hot bf16 matmul on the MXU ----
        onehot = (ids_ref[i] == vocab_iota).astype(bf16)            # (Tp, DP)
        t_emb = jnp.dot(onehot, emb, preferred_element_type=f32)    # (Tp, DP)

        # ---- encoders (simplified dense + tanh) + appended zero row ----
        t_enc = jnp.tanh(jnp.dot(t_emb.astype(bf16), w_te,
                                 preferred_element_type=f32) + b_te)
        t_enc = jnp.where(t_row_mask, t_enc, 0.0)   # rows >= T are the cat-zeros
        m_enc = jnp.tanh(jnp.dot(m_in_ref[i], w_se,
                                 preferred_element_type=f32) + b_se)
        m_enc = jnp.where(s_row_mask, m_enc, 0.0)

        # ---- TeP / MeP positional encodings ----
        m_pe = pos_encode(m_enc, w_tep, b_tep, 1.0, tri_s)    # TeP on speech
        t_pe = pos_encode(t_enc, w_mep, b_mep, 10.0, tri_t)   # MeP on text (x10)

        # ---- bidirectional attention scores ----
        s = lax.dot_general(t_pe.astype(bf16), m_pe.astype(bf16),
                            (((1,), (1,)), ((), ())),
                            preferred_element_type=f32) * inv_sqrt_d   # (Tp, Sp)

        # ---- branch 1: text rows attend over speech frames (finish fully) ----
        s1 = jnp.where((spc_idx < mlen) | (spc_idx == S), s, -1e30)
        e1 = jnp.exp(s1 - jnp.max(s1, axis=-1, keepdims=True))
        w1 = e1 * pl.reciprocal(jnp.sum(e1, axis=-1, keepdims=True), approx=True)
        w_ref[i] = w1.astype(w_ref.dtype)
        mfccs_at_text = jnp.dot(w1.astype(bf16), m_enc.astype(bf16),
                                preferred_element_type=f32)            # (Tp, DP)
        p_texts_ref[i] = (jnp.dot(mfccs_at_text.astype(bf16), w_td,
                                  preferred_element_type=f32)
                          + b_td).astype(p_texts_ref.dtype)

        # ---- branch 2: speech frames attend over text tokens ----
        s2 = jnp.where((txt_idx < tlen) | (txt_idx == T), s, -1e30)
        e2 = jnp.exp(s2 - jnp.max(s2, axis=0, keepdims=True))
        w2 = e2 * pl.reciprocal(jnp.sum(e2, axis=0, keepdims=True), approx=True)
        texts_at_frame = lax.dot_general(w2.astype(bf16), t_enc.astype(bf16),
                                         (((0,), (0,)), ((), ())),
                                         preferred_element_type=f32)   # (Sp, DP)
        p_mfccs_ref[i] = (jnp.dot(texts_at_frame.astype(bf16), w_sd,
                                  preferred_element_type=f32)
                          + b_sd).astype(p_mfccs_ref.dtype)


# ------------------------------ host wrapper -------------------------------

def fa_model_forward(params, text_ids, mfccs, text_lengths, mfcc_lengths):
    """Simplified FAModel.forward (calc_loss=False, boundary_threshold=None)."""
    B, T = text_ids.shape
    S = mfccs.shape[1]
    Tp = _round_up(T + 1, 8)      # text sublane extent (incl. null row)
    Sp = _round_up(S + 1, 128)    # speech extent (lane dim of scores/w)
    Bblk = _pick_bblk(B)

    # Tiny int32 id slab (in-kernel one-hot gather) + bf16 speech features.
    ids_p = jnp.zeros((B, Tp, 1), jnp.int32).at[:, :T, 0].set(text_ids)
    m_in = jnp.zeros((B, Sp, DP), jnp.bfloat16).at[:, :S, :N_MFCC].set(
        mfccs.astype(jnp.bfloat16))

    kernel = functools.partial(_fa_fused_kernel, T=T, S=S, Tp=Tp, Sp=Sp,
                               d_model=D_MODEL, Bblk=Bblk)

    def const(shape):
        return pl.BlockSpec(shape, lambda g, tl, ml: (0,) * len(shape))

    mat_spec = const((DP, DP))
    row_spec = const((1, DP))
    sca_spec = const((1, 1))

    ids_spec = pl.BlockSpec((Bblk, Tp, 1), lambda g, tl, ml: (g, 0, 0))
    m_spec = pl.BlockSpec((Bblk, Sp, DP), lambda g, tl, ml: (g, 0, 0))
    pt_spec = pl.BlockSpec((Bblk, Tp, DP), lambda g, tl, ml: (g, 0, 0))
    pm_spec = pl.BlockSpec((Bblk, Sp, DP), lambda g, tl, ml: (g, 0, 0))
    w_spec = pl.BlockSpec((Bblk, Tp, Sp), lambda g, tl, ml: (g, 0, 0))

    grid_spec = pltpu.PrefetchScalarGridSpec(
        num_scalar_prefetch=2,
        grid=(B // Bblk,),
        in_specs=[
            ids_spec, m_spec,                  # ids, m_in
            mat_spec,                          # emb table
            mat_spec, row_spec,                # w_te, b_te
            mat_spec, row_spec,                # w_se, b_se
            row_spec, sca_spec,                # w_tep, b_tep
            row_spec, sca_spec,                # w_mep, b_mep
            row_spec, row_spec, row_spec,      # inv_freq, pe_phase, pe_mask
            mat_spec, row_spec,                # w_td, b_td
            mat_spec, row_spec,                # w_sd, b_sd
        ],
        out_specs=(pt_spec, pm_spec, w_spec),
    )

    p_texts_p, p_mfccs_p, w_p = pl.pallas_call(
        kernel,
        out_shape=(
            jax.ShapeDtypeStruct((B, Tp, DP), jnp.bfloat16),   # p_texts (padded)
            jax.ShapeDtypeStruct((B, Sp, DP), jnp.bfloat16),   # p_mfccs (padded)
            jax.ShapeDtypeStruct((B, Tp, Sp), jnp.bfloat16),   # attention w (padded)
        ),
        grid_spec=grid_spec,
        compiler_params=pltpu.CompilerParams(
            dimension_semantics=("parallel",)),
        # TODO(synk): pltpu.CORE_PARALLEL on v7x for a true 2-TC batch split.
    )(text_lengths.astype(jnp.int32), mfcc_lengths.astype(jnp.int32),
      ids_p, m_in,
      params["emb"],
      params["w_te"], params["b_te"], params["w_se"], params["b_se"],
      params["w_tep"], params["b_tep"], params["w_mep"], params["b_mep"],
      params["inv_freq"], params["pe_phase"], params["pe_mask"],
      params["w_td"], params["b_td"], params["w_sd"], params["b_sd"])

    return (p_texts_p[:, :T + 1, :VOCAB].astype(jnp.float32),
            p_mfccs_p[:, :S + 1, :N_MFCC].astype(jnp.float32),
            w_p[:, :T + 1, :S + 1].astype(jnp.float32))


# -------------------- pure-JAX reference (same bf16 casts) -----------------

def fa_model_reference(params, text_ids, mfccs, text_lengths, mfcc_lengths):
    bf16 = jnp.bfloat16
    B, T = text_ids.shape
    S = mfccs.shape[1]
    Tp = _round_up(T + 1, 8)
    Sp = _round_up(S + 1, 128)

    ids_p = jnp.zeros((B, Tp), jnp.int32).at[:, :T].set(text_ids)
    t_emb = params["emb"][ids_p].astype(jnp.float32)                   # (B,Tp,DP)
    m_in = jnp.zeros((B, Sp, DP), bf16).at[:, :S, :N_MFCC].set(
        mfccs.astype(bf16))

    t_rows = jnp.arange(Tp)
    s_rows = jnp.arange(Sp)

    def encode(x, w, bias, rows, n_real):
        y = jnp.tanh(jnp.einsum("bld,de->ble", x.astype(bf16), w,
                                preferred_element_type=jnp.float32) + bias)
        return jnp.where((rows < n_real)[None, :, None], y, 0.0)

    t_enc = encode(t_emb, params["w_te"], params["b_te"], t_rows, T)
    m_enc = encode(m_in, params["w_se"], params["b_se"], s_rows, S)

    def pos_encode(x_enc, w_row, bias, scale):
        inc = jnp.maximum(jnp.sum(x_enc * w_row, axis=-1, keepdims=True) + bias,
                          0.0) * scale
        pos = jnp.cumsum(inc, axis=1)
        ang = pos * params["inv_freq"]
        return x_enc + jnp.sin(ang + params["pe_phase"]) * params["pe_mask"]

    m_pe = pos_encode(m_enc, params["w_tep"], params["b_tep"], 1.0)
    t_pe = pos_encode(t_enc, params["w_mep"], params["b_mep"], 10.0)

    s = jnp.einsum("btd,bsd->bts", t_pe.astype(bf16), m_pe.astype(bf16),
                   preferred_element_type=jnp.float32) / math.sqrt(D_MODEL)
    valid_s = (s_rows[None, :] < mfcc_lengths[:, None]) | (s_rows[None, :] == S)
    valid_t = (t_rows[None, :] < text_lengths[:, None]) | (t_rows[None, :] == T)
    w1 = jax.nn.softmax(jnp.where(valid_s[:, None, :], s, -1e30), axis=-1)
    w2 = jax.nn.softmax(jnp.where(valid_t[:, :, None], s, -1e30), axis=1)

    m_at_t = jnp.einsum("bts,bsd->btd", w1.astype(bf16), m_enc.astype(bf16),
                        preferred_element_type=jnp.float32)
    t_at_f = jnp.einsum("bts,btd->bsd", w2.astype(bf16), t_enc.astype(bf16),
                        preferred_element_type=jnp.float32)
    p_texts = jnp.einsum("btd,dv->btv", m_at_t.astype(bf16), params["w_td"],
                         preferred_element_type=jnp.float32) + params["b_td"]
    p_mfccs = jnp.einsum("bsd,dm->bsm", t_at_f.astype(bf16), params["w_sd"],
                         preferred_element_type=jnp.float32) + params["b_sd"]
    return (p_texts[:, :T + 1, :VOCAB],
            p_mfccs[:, :S + 1, :N_MFCC],
            w1[:, :T + 1, :S + 1])


# -------------------------------- params -----------------------------------

def init_params(key):
    ks = jax.random.split(key, 7)

    def n(k, shape):
        return 0.1 * jax.random.normal(k, shape, jnp.float32)

    def pad2(x, r, c):
        return jnp.pad(x, ((0, r - x.shape[0]), (0, c - x.shape[1])))

    d = jnp.arange(DP)
    in_model = d < D_MODEL
    inv_freq = jnp.where(
        in_model,
        jnp.exp(-(2.0 * (d // 2).astype(jnp.float32)) * (math.log(10000.0) / D_MODEL)),
        0.0).reshape(1, DP).astype(jnp.float32)
    # sin on even lanes, cos (= sin + pi/2) on odd lanes, zero beyond d_model
    pe_phase = jnp.where(in_model & (d % 2 == 1), math.pi / 2.0,
                         0.0).reshape(1, DP).astype(jnp.float32)
    pe_mask = in_model.astype(jnp.float32).reshape(1, DP)

    return {
        # embedding table padded to (vocab_pad, emb_pad) = (128, 128), bf16
        "emb": pad2(n(ks[0], (VOCAB, EMB)), DP, DP).astype(jnp.bfloat16),
        # simplified dense+tanh encoders, bf16 weights for the MXU
        "w_te": pad2(n(ks[1], (EMB, D_MODEL)), DP, DP).astype(jnp.bfloat16),
        "b_te": jnp.zeros((1, DP), jnp.float32),
        "w_se": pad2(n(ks[2], (N_MFCC, D_MODEL)), DP, DP).astype(jnp.bfloat16),
        "b_se": jnp.zeros((1, DP), jnp.float32),
        # TeP (speech->text positions) / MeP (text->mel positions) predictors
        "w_tep": pad2(n(ks[3], (1, D_MODEL)), 1, DP),
        "b_tep": jnp.zeros((1, 1), jnp.float32),
        "w_mep": pad2(n(ks[4], (1, D_MODEL)), 1, DP),
        "b_mep": jnp.zeros((1, 1), jnp.float32),
        # decoders
        "w_td": pad2(n(ks[5], (D_MODEL, VOCAB)), DP, DP).astype(jnp.bfloat16),
        "b_td": jnp.zeros((1, DP), jnp.float32),
        "w_sd": pad2(n(ks[6], (D_MODEL, N_MFCC)), DP, DP).astype(jnp.bfloat16),
        "b_sd": jnp.zeros((1, DP), jnp.float32),
        # precomputed PE constants (single-sin form)
        "inv_freq": inv_freq,
        "pe_phase": pe_phase,
        "pe_mask": pe_mask,
    }


# --------------------------------- demo -------------------------------------

if __name__ == "__main__":
    key = jax.random.PRNGKey(0)
    B, T, S = 2, 8, 16
    k_par, k_txt, k_mfc = jax.random.split(key, 3)

    params = init_params(k_par)
    text_ids = jax.random.randint(k_txt, (B, T), 0, VOCAB, dtype=jnp.int32)
    mfccs = jax.random.normal(k_mfc, (B, S, N_MFCC), jnp.float32)
    text_lengths = jnp.array([T, 6], jnp.int32)
    mfcc_lengths = jnp.array([S, 12], jnp.int32)

    fwd = jax.jit(fa_model_forward)
    p_texts, p_mfccs, w = fwd(params, text_ids, mfccs, text_lengths, mfcc_lengths)
    jax.block_until_ready((p_texts, p_mfccs, w))

    assert p_texts.shape == (B, T + 1, VOCAB)
    assert p_mfccs.shape == (B, S + 1, N_MFCC)
    assert w.shape == (B, T + 1, S + 1)

    r_texts, r_mfccs, r_w = jax.jit(fa_model_reference)(
        params, text_ids, mfccs, text_lengths, mfcc_lengths)
    for got, ref in ((p_texts, r_texts), (p_mfccs, r_mfccs), (w, r_w)):
        assert bool(jnp.all(jnp.isfinite(got)))
        assert float(jnp.max(jnp.abs(got - ref))) < 5e-2

    # ragged crop of the attention matrices, as in the reference forward()
    w_list = [w[i, :int(text_lengths[i]), :int(mfcc_lengths[i])] for i in range(B)]

    print("KERNEL_OK")
</pallas_src>

<mosaic_0001>
module attributes {stable_mosaic.version = 11 : i64} {
  func.func @_fa_fused_kernel(%arg0: i32, %arg1: memref<2xi32, #tpu.memory_space<smem>>, %arg2: memref<2xi32, #tpu.memory_space<smem>>, %arg3: memref<1x16x1xi32, #tpu.memory_space<vmem>>, %arg4: memref<1x128x128xbf16, #tpu.memory_space<vmem>>, %arg5: memref<128x128xbf16, #tpu.memory_space<vmem>>, %arg6: memref<128x128xbf16, #tpu.memory_space<vmem>>, %arg7: memref<1x128xf32, #tpu.memory_space<vmem>>, %arg8: memref<128x128xbf16, #tpu.memory_space<vmem>>, %arg9: memref<1x128xf32, #tpu.memory_space<vmem>>, %arg10: memref<1x128xf32, #tpu.memory_space<vmem>>, %arg11: memref<1x1xf32, #tpu.memory_space<vmem>>, %arg12: memref<1x128xf32, #tpu.memory_space<vmem>>, %arg13: memref<1x1xf32, #tpu.memory_space<vmem>>, %arg14: memref<1x128xf32, #tpu.memory_space<vmem>>, %arg15: memref<1x128xf32, #tpu.memory_space<vmem>>, %arg16: memref<1x128xf32, #tpu.memory_space<vmem>>, %arg17: memref<128x128xbf16, #tpu.memory_space<vmem>>, %arg18: memref<1x128xf32, #tpu.memory_space<vmem>>, %arg19: memref<128x128xbf16, #tpu.memory_space<vmem>>, %arg20: memref<1x128xf32, #tpu.memory_space<vmem>>, %arg21: memref<1x16x128xbf16, #tpu.memory_space<vmem>>, %arg22: memref<1x128x128xbf16, #tpu.memory_space<vmem>>, %arg23: memref<1x16x128xbf16, #tpu.memory_space<vmem>>) attributes {dimension_semantics = [#tpu.dimension_semantics<parallel>], iteration_bounds = array<i64: 2>, scalar_prefetch = 2 : i64, scratch_operands = 0 : i64, tpu.core_type = #tpu.core_type<tc>, window_params = [{transform_indices = @transform_0, window_bounds = array<i64: 1, 16, 1>}, {transform_indices = @transform_1, window_bounds = array<i64: 1, 128, 128>}, {pipeline_mode = #tpu.pipeline_mode<synchronous>, transform_indices = @transform_2, window_bounds = array<i64: 128, 128>}, {pipeline_mode = #tpu.pipeline_mode<synchronous>, transform_indices = @transform_3, window_bounds = array<i64: 128, 128>}, {pipeline_mode = #tpu.pipeline_mode<synchronous>, transform_indices = @transform_4, window_bounds = array<i64: 1, 128>}, {pipeline_mode = #tpu.pipeline_mode<synchronous>, transform_indices = @transform_5, window_bounds = array<i64: 128, 128>}, {pipeline_mode = #tpu.pipeline_mode<synchronous>, transform_indices = @transform_6, window_bounds = array<i64: 1, 128>}, {pipeline_mode = #tpu.pipeline_mode<synchronous>, transform_indices = @transform_7, window_bounds = array<i64: 1, 128>}, {pipeline_mode = #tpu.pipeline_mode<synchronous>, transform_indices = @transform_8, window_bounds = array<i64: 1, 1>}, {pipeline_mode = #tpu.pipeline_mode<synchronous>, transform_indices = @transform_9, window_bounds = array<i64: 1, 128>}, {pipeline_mode = #tpu.pipeline_mode<synchronous>, transform_indices = @transform_10, window_bounds = array<i64: 1, 1>}, {pipeline_mode = #tpu.pipeline_mode<synchronous>, transform_indices = @transform_11, window_bounds = array<i64: 1, 128>}, {pipeline_mode = #tpu.pipeline_mode<synchronous>, transform_indices = @transform_12, window_bounds = array<i64: 1, 128>}, {pipeline_mode = #tpu.pipeline_mode<synchronous>, transform_indices = @transform_13, window_bounds = array<i64: 1, 128>}, {pipeline_mode = #tpu.pipeline_mode<synchronous>, transform_indices = @transform_14, window_bounds = array<i64: 128, 128>}, {pipeline_mode = #tpu.pipeline_mode<synchronous>, transform_indices = @transform_15, window_bounds = array<i64: 1, 128>}, {pipeline_mode = #tpu.pipeline_mode<synchronous>, transform_indices = @transform_16, window_bounds = array<i64: 128, 128>}, {pipeline_mode = #tpu.pipeline_mode<synchronous>, transform_indices = @transform_17, window_bounds = array<i64: 1, 128>}, {transform_indices = @transform_18, window_bounds = array<i64: 1, 16, 128>}, {transform_indices = @transform_19, window_bounds = array<i64: 1, 128, 128>}, {transform_indices = @transform_20, window_bounds = array<i64: 1, 16, 128>}]} {
    %c0 = arith.constant 0 : index
    %c0_0 = arith.constant 0 : index
    %0 = vector.load %arg5[%c0, %c0_0] : memref<128x128xbf16, #tpu.memory_space<vmem>>, vector<128x128xbf16>
    %c0_1 = arith.constant 0 : index
    %c0_2 = arith.constant 0 : index
    %1 = vector.load %arg6[%c0_1, %c0_2] : memref<128x128xbf16, #tpu.memory_space<vmem>>, vector<128x128xbf16>
    %c0_3 = arith.constant 0 : index
    %c0_4 = arith.constant 0 : index
    %2 = vector.load %arg7[%c0_3, %c0_4] : memref<1x128xf32, #tpu.memory_space<vmem>>, vector<1x128xf32>
    %c0_5 = arith.constant 0 : index
    %c0_6 = arith.constant 0 : index
    %3 = vector.load %arg8[%c0_5, %c0_6] : memref<128x128xbf16, #tpu.memory_space<vmem>>, vector<128x128xbf16>
    %c0_7 = arith.constant 0 : index
    %c0_8 = arith.constant 0 : index
    %4 = vector.load %arg9[%c0_7, %c0_8] : memref<1x128xf32, #tpu.memory_space<vmem>>, vector<1x128xf32>
    %c0_9 = arith.constant 0 : index
    %c0_10 = arith.constant 0 : index
    %5 = vector.load %arg10[%c0_9, %c0_10] : memref<1x128xf32, #tpu.memory_space<vmem>>, vector<1x128xf32>
    %c0_11 = arith.constant 0 : index
    %c0_12 = arith.constant 0 : index
    %6 = vector.load %arg11[%c0_11, %c0_12] : memref<1x1xf32, #tpu.memory_space<vmem>>, vector<1x1xf32>
    %c0_13 = arith.constant 0 : index
    %c0_14 = arith.constant 0 : index
    %7 = vector.load %arg12[%c0_13, %c0_14] : memref<1x128xf32, #tpu.memory_space<vmem>>, vector<1x128xf32>
    %c0_15 = arith.constant 0 : index
    %c0_16 = arith.constant 0 : index
    %8 = vector.load %arg13[%c0_15, %c0_16] : memref<1x1xf32, #tpu.memory_space<vmem>>, vector<1x1xf32>
    %c0_17 = arith.constant 0 : index
    %c0_18 = arith.constant 0 : index
    %9 = vector.load %arg14[%c0_17, %c0_18] : memref<1x128xf32, #tpu.memory_space<vmem>>, vector<1x128xf32>
    %c0_19 = arith.constant 0 : index
    %c0_20 = arith.constant 0 : index
    %10 = vector.load %arg15[%c0_19, %c0_20] : memref<1x128xf32, #tpu.memory_space<vmem>>, vector<1x128xf32>
    %c0_21 = arith.constant 0 : index
    %c0_22 = arith.constant 0 : index
    %11 = vector.load %arg16[%c0_21, %c0_22] : memref<1x128xf32, #tpu.memory_space<vmem>>, vector<1x128xf32>
    %c0_23 = arith.constant 0 : index
    %c0_24 = arith.constant 0 : index
    %12 = vector.load %arg17[%c0_23, %c0_24] : memref<128x128xbf16, #tpu.memory_space<vmem>>, vector<128x128xbf16>
    %c0_25 = arith.constant 0 : index
    %c0_26 = arith.constant 0 : index
    %13 = vector.load %arg18[%c0_25, %c0_26] : memref<1x128xf32, #tpu.memory_space<vmem>>, vector<1x128xf32>
    %c0_27 = arith.constant 0 : index
    %c0_28 = arith.constant 0 : index
    %14 = vector.load %arg19[%c0_27, %c0_28] : memref<128x128xbf16, #tpu.memory_space<vmem>>, vector<128x128xbf16>
    %c0_29 = arith.constant 0 : index
    %c0_30 = arith.constant 0 : index
    %15 = vector.load %arg20[%c0_29, %c0_30] : memref<1x128xf32, #tpu.memory_space<vmem>>, vector<1x128xf32>
    %16 = tpu.iota {dimensions = array<i32: 1>} : vector<16x128xi32>
    %17 = tpu.iota {dimensions = array<i32: 0>} : vector<16x128xi32>
    %c8_i32 = arith.constant 8 : i32
    %18 = vector.broadcast %c8_i32 : i32 to vector<16x128xi32>
    %19 = arith.cmpi slt, %17, %18 : vector<16x128xi32>
    %20 = tpu.iota {dimensions = array<i32: 0>} : vector<128x128xi32>
    %c16_i32 = arith.constant 16 : i32
    %21 = vector.broadcast %c16_i32 : i32 to vector<128x128xi32>
    %22 = arith.cmpi slt, %20, %21 : vector<128x128xi32>
    %23 = tpu.iota {dimensions = array<i32: 0>} : vector<16x16xi32>
    %24 = tpu.iota {dimensions = array<i32: 1>} : vector<16x16xi32>
    %25 = arith.cmpi sge, %23, %24 : vector<16x16xi32>
    %26 = arith.extui %25 : vector<16x16xi1> to vector<16x16xi32>
    %27 = arith.sitofp %26 : vector<16x16xi32> to vector<16x16xf32>
    %28 = tpu.iota {dimensions = array<i32: 0>} : vector<128x128xi32>
    %29 = tpu.iota {dimensions = array<i32: 1>} : vector<128x128xi32>
    %30 = arith.cmpi sge, %28, %29 : vector<128x128xi32>
    %31 = arith.extui %30 : vector<128x128xi1> to vector<128x128xi32>
    %32 = arith.sitofp %31 : vector<128x128xi32> to vector<128x128xf32>
    %33 = tpu.iota {dimensions = array<i32: 0>} : vector<16x128xi32>
    %34 = tpu.iota {dimensions = array<i32: 1>} : vector<16x128xi32>
    %c1_i32 = arith.constant 1 : i32
    %35 = arith.muli %arg0, %c1_i32 : i32
    %c0_i32 = arith.constant 0 : i32
    %36 = arith.addi %35, %c0_i32 : i32
    %37 = arith.index_cast %36 : i32 to index
    %38 = memref.load %arg1[%37] : memref<2xi32, #tpu.memory_space<smem>>
    %39 = arith.index_cast %36 : i32 to index
    %40 = memref.load %arg2[%39] : memref<2xi32, #tpu.memory_space<smem>>
    %c0_31 = arith.constant 0 : index
    %c0_32 = arith.constant 0 : index
    %c0_33 = arith.constant 0 : index
    %41 = vector.load %arg3[%c0_31, %c0_32, %c0_33] : memref<1x16x1xi32, #tpu.memory_space<vmem>>, vector<1x16x1xi32>
    %42 = vector.shape_cast %41 : vector<1x16x1xi32> to vector<16x1xi32>
    %43 = vector.broadcast %42 : vector<16x1xi32> to vector<16x128xi32>
    %44 = arith.cmpi eq, %43, %16 : vector<16x128xi32>
    %45 = arith.extui %44 : vector<16x128xi1> to vector<16x128xi32>
    %46 = arith.sitofp %45 : vector<16x128xi32> to vector<16x128xf32>
    %47 = arith.truncf %46 : vector<16x128xf32> to vector<16x128xbf16>
    %cst = arith.constant dense<0.000000e+00> : vector<16x128xf32>
    %48 = tpu.matmul %47, %0, %cst {dimension_numbers = #tpu.dot_dimension_numbers<[1], [0], [0], [1], [0, 0, 1, 1], [], []>} : vector<16x128xbf16>, vector<128x128xbf16>, vector<16x128xf32> -> vector<16x128xf32>
    %49 = arith.truncf %48 : vector<16x128xf32> to vector<16x128xbf16>
    %cst_34 = arith.constant dense<0.000000e+00> : vector<16x128xf32>
    %50 = tpu.matmul %49, %1, %cst_34 {dimension_numbers = #tpu.dot_dimension_numbers<[1], [0], [0], [1], [0, 0, 1, 1], [], []>} : vector<16x128xbf16>, vector<128x128xbf16>, vector<16x128xf32> -> vector<16x128xf32>
    %51 = vector.broadcast %2 : vector<1x128xf32> to vector<16x128xf32>
    %52 = arith.addf %50, %51 : vector<16x128xf32>
    %53 = math.tanh %52 : vector<16x128xf32>
    %cst_35 = arith.constant 0.000000e+00 : f32
    %54 = vector.broadcast %cst_35 : f32 to vector<16x128xf32>
    %55 = arith.select %19, %53, %54 : vector<16x128xi1>, vector<16x128xf32>
    %c0_36 = arith.constant 0 : index
    %c0_37 = arith.constant 0 : index
    %c0_38 = arith.constant 0 : index
    %56 = vector.load %arg4[%c0_36, %c0_37, %c0_38] : memref<1x128x128xbf16, #tpu.memory_space<vmem>>, vector<1x128x128xbf16>
    %57 = vector.shape_cast %56 : vector<1x128x128xbf16> to vector<128x128xbf16>
    %cst_39 = arith.constant dense<0.000000e+00> : vector<128x128xf32>
    %58 = tpu.matmul %57, %3, %cst_39 {dimension_numbers = #tpu.dot_dimension_numbers<[1], [0], [0], [1], [0, 0, 1, 1], [], []>} : vector<128x128xbf16>, vector<128x128xbf16>, vector<128x128xf32> -> vector<128x128xf32>
    %59 = vector.broadcast %4 : vector<1x128xf32> to vector<128x128xf32>
    %60 = arith.addf %58, %59 : vector<128x128xf32>
    %61 = math.tanh %60 : vector<128x128xf32>
    %cst_40 = arith.constant 0.000000e+00 : f32
    %62 = vector.broadcast %cst_40 : f32 to vector<128x128xf32>
    %63 = arith.select %22, %61, %62 : vector<128x128xi1>, vector<128x128xf32>
    %64 = vector.broadcast %5 : vector<1x128xf32> to vector<128x128xf32>
    %65 = arith.mulf %63, %64 : vector<128x128xf32>
    %cst_41 = arith.constant dense<0.000000e+00> : vector<128xf32>
    %66 = vector.multi_reduction <add>, %65, %cst_41 [1] : vector<128x128xf32> to vector<128xf32>
    %67 = vector.shape_cast %66 : vector<128xf32> to vector<128x1xf32>
    %68 = vector.broadcast %6 : vector<1x1xf32> to vector<128x1xf32>
    %69 = arith.addf %67, %68 : vector<128x1xf32>
    %cst_42 = arith.constant 0.000000e+00 : f32
    %70 = vector.broadcast %cst_42 : f32 to vector<128x1xf32>
    %71 = arith.maximumf %69, %70 : vector<128x1xf32>
    %cst_43 = arith.constant 1.000000e+00 : f32
    %72 = vector.broadcast %cst_43 : f32 to vector<128x1xf32>
    %73 = arith.mulf %71, %72 : vector<128x1xf32>
    %74 = vector.broadcast %73 : vector<128x1xf32> to vector<128x128xf32>
    %75 = vector.broadcast %9 : vector<1x128xf32> to vector<128x128xf32>
    %76 = arith.mulf %74, %75 : vector<128x128xf32>
    %cst_44 = arith.constant dense<0.000000e+00> : vector<128x128xf32>
    %77 = tpu.matmul %32, %76, %cst_44 {dimension_numbers = #tpu.dot_dimension_numbers<[1], [0], [0], [1], [0, 0, 1, 1], [], []>} : vector<128x128xf32>, vector<128x128xf32>, vector<128x128xf32> -> vector<128x128xf32>
    %78 = vector.broadcast %10 : vector<1x128xf32> to vector<128x128xf32>
    %79 = arith.addf %77, %78 : vector<128x128xf32>
    %80 = math.sin %79 : vector<128x128xf32>
    %81 = vector.broadcast %11 : vector<1x128xf32> to vector<128x128xf32>
    %82 = arith.mulf %80, %81 : vector<128x128xf32>
    %83 = arith.addf %63, %82 : vector<128x128xf32>
    %84 = vector.broadcast %7 : vector<1x128xf32> to vector<16x128xf32>
    %85 = arith.mulf %55, %84 : vector<16x128xf32>
    %cst_45 = arith.constant dense<0.000000e+00> : vector<16xf32>
    %86 = vector.multi_reduction <add>, %85, %cst_45 [1] : vector<16x128xf32> to vector<16xf32>
    %87 = vector.shape_cast %86 : vector<16xf32> to vector<16x1xf32>
    %88 = vector.broadcast %8 : vector<1x1xf32> to vector<16x1xf32>
    %89 = arith.addf %87, %88 : vector<16x1xf32>
    %cst_46 = arith.constant 0.000000e+00 : f32
    %90 = vector.broadcast %cst_46 : f32 to vector<16x1xf32>
    %91 = arith.maximumf %89, %90 : vector<16x1xf32>
    %cst_47 = arith.constant 1.000000e+01 : f32
    %92 = vector.broadcast %cst_47 : f32 to vector<16x1xf32>
    %93 = arith.mulf %91, %92 : vector<16x1xf32>
    %94 = vector.broadcast %93 : vector<16x1xf32> to vector<16x128xf32>
    %95 = vector.broadcast %9 : vector<1x128xf32> to vector<16x128xf32>
    %96 = arith.mulf %94, %95 : vector<16x128xf32>
    %cst_48 = arith.constant dense<0.000000e+00> : vector<16x128xf32>
    %97 = tpu.matmul %27, %96, %cst_48 {dimension_numbers = #tpu.dot_dimension_numbers<[1], [0], [0], [1], [0, 0, 1, 1], [], []>} : vector<16x16xf32>, vector<16x128xf32>, vector<16x128xf32> -> vector<16x128xf32>
    %98 = vector.broadcast %10 : vector<1x128xf32> to vector<16x128xf32>
    %99 = arith.addf %97, %98 : vector<16x128xf32>
    %100 = math.sin %99 : vector<16x128xf32>
    %101 = vector.broadcast %11 : vector<1x128xf32> to vector<16x128xf32>
    %102 = arith.mulf %100, %101 : vector<16x128xf32>
    %103 = arith.addf %55, %102 : vector<16x128xf32>
    %104 = arith.truncf %103 : vector<16x128xf32> to vector<16x128xbf16>
    %105 = arith.truncf %83 : vector<128x128xf32> to vector<128x128xbf16>
    %cst_49 = arith.constant dense<0.000000e+00> : vector<16x128xf32>
    %106 = tpu.matmul %104, %105, %cst_49 {dimension_numbers = #tpu.dot_dimension_numbers<[1], [1], [0], [0], [0, 0, 1, 0], [], []>} : vector<16x128xbf16>, vector<128x128xbf16>, vector<16x128xf32> -> vector<16x128xf32>
    %cst_50 = arith.constant 0.176776692 : f32
    %107 = vector.broadcast %cst_50 : f32 to vector<16x128xf32>
    %108 = arith.mulf %106, %107 : vector<16x128xf32>
    %109 = vector.broadcast %40 : i32 to vector<16x128xi32>
    %110 = arith.cmpi slt, %34, %109 : vector<16x128xi32>
    %c16_i32_51 = arith.constant 16 : i32
    %111 = vector.broadcast %c16_i32_51 : i32 to vector<16x128xi32>
    %112 = arith.cmpi eq, %34, %111 : vector<16x128xi32>
    %113 = arith.ori %110, %112 : vector<16x128xi1>
    %cst_52 = arith.constant -1.000000e+30 : f32
    %114 = vector.broadcast %cst_52 : f32 to vector<16x128xf32>
    %115 = arith.select %113, %108, %114 : vector<16x128xi1>, vector<16x128xf32>
    %cst_53 = arith.constant dense<0xFF800000> : vector<16xf32>
    %116 = vector.multi_reduction <maximumf>, %115, %cst_53 [1] : vector<16x128xf32> to vector<16xf32>
    %117 = vector.shape_cast %116 : vector<16xf32> to vector<16x1xf32>
    %118 = vector.broadcast %117 : vector<16x1xf32> to vector<16x128xf32>
    %119 = arith.subf %115, %118 : vector<16x128xf32>
    %120 = math.exp %119 : vector<16x128xf32>
    %cst_54 = arith.constant dense<0.000000e+00> : vector<16xf32>
    %121 = vector.multi_reduction <add>, %120, %cst_54 [1] : vector<16x128xf32> to vector<16xf32>
    %122 = vector.shape_cast %121 : vector<16xf32> to vector<16x1xf32>
    %123 = tpu.reciprocal %122 {approx = true} : vector<16x1xf32> -> vector<16x1xf32>
    %124 = vector.broadcast %123 : vector<16x1xf32> to vector<16x128xf32>
    %125 = arith.mulf %120, %124 : vector<16x128xf32>
    %126 = arith.truncf %125 : vector<16x128xf32> to vector<16x128xbf16>
    %c0_55 = arith.constant 0 : index
    %c0_56 = arith.constant 0 : index
    %c0_57 = arith.constant 0 : index
    %127 = vector.load %arg23[%c0_55, %c0_56, %c0_57] : memref<1x16x128xbf16, #tpu.memory_space<vmem>>, vector<1x16x128xbf16>
    %128 = vector.shape_cast %127 : vector<1x16x128xbf16> to vector<16x128xbf16>
    %129 = vector.shape_cast %126 : vector<16x128xbf16> to vector<1x16x128xbf16>
    tpu.vector_store %arg23[%c0_55, %c0_56, %c0_57], %129 {strides = array<i32>} : memref<1x16x128xbf16, #tpu.memory_space<vmem>>, vector<1x16x128xbf16>,
    %130 = arith.truncf %125 : vector<16x128xf32> to vector<16x128xbf16>
    %131 = arith.truncf %63 : vector<128x128xf32> to vector<128x128xbf16>
    %cst_58 = arith.constant dense<0.000000e+00> : vector<16x128xf32>
    %132 = tpu.matmul %130, %131, %cst_58 {dimension_numbers = #tpu.dot_dimension_numbers<[1], [0], [0], [1], [0, 0, 1, 1], [], []>} : vector<16x128xbf16>, vector<128x128xbf16>, vector<16x128xf32> -> vector<16x128xf32>
    %133 = arith.truncf %132 : vector<16x128xf32> to vector<16x128xbf16>
    %cst_59 = arith.constant dense<0.000000e+00> : vector<16x128xf32>
    %134 = tpu.matmul %133, %12, %cst_59 {dimension_numbers = #tpu.dot_dimension_numbers<[1], [0], [0], [1], [0, 0, 1, 1], [], []>} : vector<16x128xbf16>, vector<128x128xbf16>, vector<16x128xf32> -> vector<16x128xf32>
    %135 = vector.broadcast %13 : vector<1x128xf32> to vector<16x128xf32>
    %136 = arith.addf %134, %135 : vector<16x128xf32>
    %137 = arith.truncf %136 : vector<16x128xf32> to vector<16x128xbf16>
    %c0_60 = arith.constant 0 : index
    %c0_61 = arith.constant 0 : index
    %c0_62 = arith.constant 0 : index
    %138 = vector.load %arg21[%c0_60, %c0_61, %c0_62] : memref<1x16x128xbf16, #tpu.memory_space<vmem>>, vector<1x16x128xbf16>
    %139 = vector.shape_cast %138 : vector<1x16x128xbf16> to vector<16x128xbf16>
    %140 = vector.shape_cast %137 : vector<16x128xbf16> to vector<1x16x128xbf16>
    tpu.vector_store %arg21[%c0_60, %c0_61, %c0_62], %140 {strides = array<i32>} : memref<1x16x128xbf16, #tpu.memory_space<vmem>>, vector<1x16x128xbf16>,
    %141 = vector.broadcast %38 : i32 to vector<16x128xi32>
    %142 = arith.cmpi slt, %33, %141 : vector<16x128xi32>
    %c8_i32_63 = arith.constant 8 : i32
    %143 = vector.broadcast %c8_i32_63 : i32 to vector<16x128xi32>
    %144 = arith.cmpi eq, %33, %143 : vector<16x128xi32>
    %145 = arith.ori %142, %144 : vector<16x128xi1>
    %cst_64 = arith.constant -1.000000e+30 : f32
    %146 = vector.broadcast %cst_64 : f32 to vector<16x128xf32>
    %147 = arith.select %145, %108, %146 : vector<16x128xi1>, vector<16x128xf32>
    %cst_65 = arith.constant dense<0xFF800000> : vector<128xf32>
    %148 = vector.multi_reduction <maximumf>, %147, %cst_65 [0] : vector<16x128xf32> to vector<128xf32>
    %149 = vector.shape_cast %148 : vector<128xf32> to vector<1x128xf32>
    %150 = vector.broadcast %149 : vector<1x128xf32> to vector<16x128xf32>
    %151 = arith.subf %147, %150 : vector<16x128xf32>
    %152 = math.exp %151 : vector<16x128xf32>
    %cst_66 = arith.constant dense<0.000000e+00> : vector<128xf32>
    %153 = vector.multi_reduction <add>, %152, %cst_66 [0] : vector<16x128xf32> to vector<128xf32>
    %154 = vector.shape_cast %153 : vector<128xf32> to vector<1x128xf32>
    %155 = tpu.reciprocal %154 {approx = true} : vector<1x128xf32> -> vector<1x128xf32>
    %156 = vector.broadcast %155 : vector<1x128xf32> to vector<16x128xf32>
    %157 = arith.mulf %152, %156 : vector<16x128xf32>
    %158 = arith.truncf %157 : vector<16x128xf32> to vector<16x128xbf16>
    %159 = arith.truncf %55 : vector<16x128xf32> to vector<16x128xbf16>
    %cst_67 = arith.constant dense<0.000000e+00> : vector<128x128xf32>
    %160 = tpu.matmul %158, %159, %cst_67 {dimension_numbers = #tpu.dot_dimension_numbers<[0], [0], [1], [1], [0, 1, 1, 1], [], []>} : vector<16x128xbf16>, vector<16x128xbf16>, vector<128x128xf32> -> vector<128x128xf32>
    %161 = arith.truncf %160 : vector<128x128xf32> to vector<128x128xbf16>
    %cst_68 = arith.constant dense<0.000000e+00> : vector<128x128xf32>
    %162 = tpu.matmul %161, %14, %cst_68 {dimension_numbers = #tpu.dot_dimension_numbers<[1], [0], [0], [1], [0, 0, 1, 1], [], []>} : vector<128x128xbf16>, vector<128x128xbf16>, vector<128x128xf32> -> vector<128x128xf32>
    %163 = vector.broadcast %15 : vector<1x128xf32> to vector<128x128xf32>
    %164 = arith.addf %162, %163 : vector<128x128xf32>
    %165 = arith.truncf %164 : vector<128x128xf32> to vector<128x128xbf16>
    %c0_69 = arith.constant 0 : index
    %c0_70 = arith.constant 0 : index
    %c0_71 = arith.constant 0 : index
    %166 = vector.load %arg22[%c0_69, %c0_70, %c0_71] : memref<1x128x128xbf16, #tpu.memory_space<vmem>>, vector<1x128x128xbf16>
    %167 = vector.shape_cast %166 : vector<1x128x128xbf16> to vector<128x128xbf16>
    %168 = vector.shape_cast %165 : vector<128x128xbf16> to vector<1x128x128xbf16>
    tpu.vector_store %arg22[%c0_69, %c0_70, %c0_71], %168 {strides = array<i32>} : memref<1x128x128xbf16, #tpu.memory_space<vmem>>, vector<1x128x128xbf16>,
    return
  }
  func.func @transform_0(%arg0: i32, %arg1: memref<2xi32, #tpu.memory_space<smem>>, %arg2: memref<2xi32, #tpu.memory_space<smem>>) -> (i32, i32, i32) {
    %c0_i32 = arith.constant 0 : i32
    %c0_i32_0 = arith.constant 0 : i32
    %c0_i32_1 = arith.constant 0 : i32
    return %arg0, %c0_i32, %c0_i32_0 : i32, i32, i32
  }
  func.func @transform_1(%arg0: i32, %arg1: memref<2xi32, #tpu.memory_space<smem>>, %arg2: memref<2xi32, #tpu.memory_space<smem>>) -> (i32, i32, i32) {
    %c0_i32 = arith.constant 0 : i32
    %c0_i32_0 = arith.constant 0 : i32
    %c0_i32_1 = arith.constant 0 : i32
    return %arg0, %c0_i32, %c0_i32_0 : i32, i32, i32
  }
  func.func @transform_2(%arg0: i32, %arg1: memref<2xi32, #tpu.memory_space<smem>>, %arg2: memref<2xi32, #tpu.memory_space<smem>>) -> (i32, i32) {
    %c0_i32 = arith.constant 0 : i32
    %c0_i32_0 = arith.constant 0 : i32
    %c0_i32_1 = arith.constant 0 : i32
    return %c0_i32, %c0_i32_0 : i32, i32
  }
  func.func @transform_3(%arg0: i32, %arg1: memref<2xi32, #tpu.memory_space<smem>>, %arg2: memref<2xi32, #tpu.memory_space<smem>>) -> (i32, i32) {
    %c0_i32 = arith.constant 0 : i32
    %c0_i32_0 = arith.constant 0 : i32
    %c0_i32_1 = arith.constant 0 : i32
    return %c0_i32, %c0_i32_0 : i32, i32
  }
  func.func @transform_4(%arg0: i32, %arg1: memref<2xi32, #tpu.memory_space<smem>>, %arg2: memref<2xi32, #tpu.memory_space<smem>>) -> (i32, i32) {
    %c0_i32 = arith.constant 0 : i32
    %c0_i32_0 = arith.constant 0 : i32
    %c0_i32_1 = arith.constant 0 : i32
    return %c0_i32, %c0_i32_0 : i32, i32
  }
  func.func @transform_5(%arg0: i32, %arg1: memref<2xi32, #tpu.memory_space<smem>>, %arg2: memref<2xi32, #tpu.memory_space<smem>>) -> (i32, i32) {
    %c0_i32 = arith.constant 0 : i32
    %c0_i32_0 = arith.constant 0 : i32
    %c0_i32_1 = arith.constant 0 : i32
    return %c0_i32, %c0_i32_0 : i32, i32
  }
  func.func @transform_6(%arg0: i32, %arg1: memref<2xi32, #tpu.memory_space<smem>>, %arg2: memref<2xi32, #tpu.memory_space<smem>>) -> (i32, i32) {
    %c0_i32 = arith.constant 0 : i32
    %c0_i32_0 = arith.constant 0 : i32
    %c0_i32_1 = arith.constant 0 : i32
    return %c0_i32, %c0_i32_0 : i32, i32
  }
  func.func @transform_7(%arg0: i32, %arg1: memref<2xi32, #tpu.memory_space<smem>>, %arg2: memref<2xi32, #tpu.memory_space<smem>>) -> (i32, i32) {
    %c0_i32 = arith.constant 0 : i32
    %c0_i32_0 = arith.constant 0 : i32
    %c0_i32_1 = arith.constant 0 : i32
    return %c0_i32, %c0_i32_0 : i32, i32
  }
  func.func @transform_8(%arg0: i32, %arg1: memref<2xi32, #tpu.memory_space<smem>>, %arg2: memref<2xi32, #tpu.memory_space<smem>>) -> (i32, i32) {
    %c0_i32 = arith.constant 0 : i32
    %c0_i32_0 = arith.constant 0 : i32
    %c0_i32_1 = arith.constant 0 : i32
    return %c0_i32, %c0_i32_0 : i32, i32
  }
  func.func @transform_9(%arg0: i32, %arg1: memref<2xi32, #tpu.memory_space<smem>>, %arg2: memref<2xi32, #tpu.memory_space<smem>>) -> (i32, i32) {
    %c0_i32 = arith.constant 0 : i32
    %c0_i32_0 = arith.constant 0 : i32
    %c0_i32_1 = arith.constant 0 : i32
    return %c0_i32, %c0_i32_0 : i32, i32
  }
  func.func @transform_10(%arg0: i32, %arg1: memref<2xi32, #tpu.memory_space<smem>>, %arg2: memref<2xi32, #tpu.memory_space<smem>>) -> (i32, i32) {
    %c0_i32 = arith.constant 0 : i32
    %c0_i32_0 = arith.constant 0 : i32
    %c0_i32_1 = arith.constant 0 : i32
    return %c0_i32, %c0_i32_0 : i32, i32
  }
  func.func @transform_11(%arg0: i32, %arg1: memref<2xi32, #tpu.memory_space<smem>>, %arg2: memref<2xi32, #tpu.memory_space<smem>>) -> (i32, i32) {
    %c0_i32 = arith.constant 0 : i32
    %c0_i32_0 = arith.constant 0 : i32
    %c0_i32_1 = arith.constant 0 : i32
    return %c0_i32, %c0_i32_0 : i32, i32
  }
  func.func @transform_12(%arg0: i32, %arg1: memref<2xi32, #tpu.memory_space<smem>>, %arg2: memref<2xi32, #tpu.memory_space<smem>>) -> (i32, i32) {
    %c0_i32 = arith.constant 0 : i32
    %c0_i32_0 = arith.constant 0 : i32
    %c0_i32_1 = arith.constant 0 : i32
    return %c0_i32, %c0_i32_0 : i32, i32
  }
  func.func @transform_13(%arg0: i32, %arg1: memref<2xi32, #tpu.memory_space<smem>>, %arg2: memref<2xi32, #tpu.memory_space<smem>>) -> (i32, i32) {
    %c0_i32 = arith.constant 0 : i32
    %c0_i32_0 = arith.constant 0 : i32
    %c0_i32_1 = arith.constant 0 : i32
    return %c0_i32, %c0_i32_0 : i32, i32
  }
  func.func @transform_14(%arg0: i32, %arg1: memref<2xi32, #tpu.memory_space<smem>>, %arg2: memref<2xi32, #tpu.memory_space<smem>>) -> (i32, i32) {
    %c0_i32 = arith.constant 0 : i32
    %c0_i32_0 = arith.constant 0 : i32
    %c0_i32_1 = arith.constant 0 : i32
    return %c0_i32, %c0_i32_0 : i32, i32
  }
  func.func @transform_15(%arg0: i32, %arg1: memref<2xi32, #tpu.memory_space<smem>>, %arg2: memref<2xi32, #tpu.memory_space<smem>>) -> (i32, i32) {
    %c0_i32 = arith.constant 0 : i32
    %c0_i32_0 = arith.constant 0 : i32
    %c0_i32_1 = arith.constant 0 : i32
    return %c0_i32, %c0_i32_0 : i32, i32
  }
  func.func @transform_16(%arg0: i32, %arg1: memref<2xi32, #tpu.memory_space<smem>>, %arg2: memref<2xi32, #tpu.memory_space<smem>>) -> (i32, i32) {
    %c0_i32 = arith.constant 0 : i32
    %c0_i32_0 = arith.constant 0 : i32
    %c0_i32_1 = arith.constant 0 : i32
    return %c0_i32, %c0_i32_0 : i32, i32
  }
  func.func @transform_17(%arg0: i32, %arg1: memref<2xi32, #tpu.memory_space<smem>>, %arg2: memref<2xi32, #tpu.memory_space<smem>>) -> (i32, i32) {
    %c0_i32 = arith.constant 0 : i32
    %c0_i32_0 = arith.constant 0 : i32
    %c0_i32_1 = arith.constant 0 : i32
    return %c0_i32, %c0_i32_0 : i32, i32
  }
  func.func @transform_18(%arg0: i32, %arg1: memref<2xi32, #tpu.memory_space<smem>>, %arg2: memref<2xi32, #tpu.memory_space<smem>>) -> (i32, i32, i32) {
    %c0_i32 = arith.constant 0 : i32
    %c0_i32_0 = arith.constant 0 : i32
    %c0_i32_1 = arith.constant 0 : i32
    return %arg0, %c0_i32, %c0_i32_0 : i32, i32, i32
  }
  func.func @transform_19(%arg0: i32, %arg1: memref<2xi32, #tpu.memory_space<smem>>, %arg2: memref<2xi32, #tpu.memory_space<smem>>) -> (i32, i32, i32) {
    %c0_i32 = arith.constant 0 : i32
    %c0_i32_0 = arith.constant 0 : i32
    %c0_i32_1 = arith.constant 0 : i32
    return %arg0, %c0_i32, %c0_i32_0 : i32, i32, i32
  }
  func.func @transform_20(%arg0: i32, %arg1: memref<2xi32, #tpu.memory_space<smem>>, %arg2: memref<2xi32, #tpu.memory_space<smem>>) -> (i32, i32, i32) {
    %c0_i32 = arith.constant 0 : i32
    %c0_i32_0 = arith.constant 0 : i32
    %c0_i32_1 = arith.constant 0 : i32
    return %arg0, %c0_i32, %c0_i32_0 : i32, i32, i32
  }
}

</mosaic_0001>

<llo_original>
// kernel: fa_model_forward.1
$region0: #{fa_model_forward.1}
  #allocation0 [shape = 'u32[]', space=smem, size = 0x4, offset = 0x4, fixed_abs, tag = 'smem constant byte address 0x4 - core index']
  #allocation1 [shape = 'u32[144,128]{1,0:T(1,128)}', space=vmem, size = 0x12000, scoped, tag = 'internal scratch']
  #allocation2 [shape = 's32[1]{0}', space=sflag, size = 0x4, scoped, tag = 'scoped memory for fa_model_forward.1']
  #allocation3 [shape = 'u8[512]{0}', space=smem, size = 0x200, scoped, tag = 'prefetched SMEM operand 0']
  #allocation4 [shape = 'u8[512]{0}', space=smem, size = 0x200, scoped, tag = 'prefetched SMEM operand 1']
  #allocation5 [shape = 'f32[1,1]{1,0:T(1,128)S(1)}', space=vmem, size = 0x200, scoped, tag = 'scoped memory for fa_model_forward.1']
  #allocation6 [shape = 'f32[1,1]{1,0:T(1,128)S(1)}', space=vmem, size = 0x200, scoped, tag = 'scoped memory for fa_model_forward.1']
  %s0 = inlined_call_operand.vmem [shape: s32[2], index: 0, kind: input, shape index: {}]
  %s1 = inlined_call_operand.vmem [shape: s32[2], index: 1, kind: input, shape index: {}]
  %s2 = inlined_call_operand.vmem [shape: s32[2,16,1], index: 2, kind: input, shape index: {}]
  %s3 = inlined_call_operand.vmem [shape: bf16[2,128,128], index: 3, kind: input, shape index: {}]
  %s4 = inlined_call_operand.vmem [shape: bf16[128,128], index: 4, kind: input, shape index: {}]
  %s5 = inlined_call_operand.vmem [shape: bf16[128,128], index: 5, kind: input, shape index: {}]
  %s6 = inlined_call_operand.hbm [shape: f32[1,128], index: 6, kind: input, shape index: {}]
  %s7 = inlined_call_operand.vmem [shape: bf16[128,128], index: 7, kind: input, shape index: {}]
  %s8 = inlined_call_operand.hbm [shape: f32[1,128], index: 8, kind: input, shape index: {}]
  %s9 = inlined_call_operand.vmem [shape: f32[1,128], index: 9, kind: input, shape index: {}]
  %s10 = inlined_call_operand.<no memory space> [shape: f32[1,1], index: 10, kind: input, shape index: {}]
  %s11 = inlined_call_operand.vmem [shape: f32[1,128], index: 11, kind: input, shape index: {}]
  %s12 = inlined_call_operand.<no memory space> [shape: f32[1,1], index: 12, kind: input, shape index: {}]
  %s13 = inlined_call_operand.hbm [shape: f32[1,128], index: 13, kind: input, shape index: {}]
  %s14 = inlined_call_operand.vmem [shape: f32[1,128], index: 14, kind: input, shape index: {}]
  %s15 = inlined_call_operand.hbm [shape: f32[1,128], index: 15, kind: input, shape index: {}]
  %s16 = inlined_call_operand.vmem [shape: bf16[128,128], index: 16, kind: input, shape index: {}]
  %s17 = inlined_call_operand.hbm [shape: f32[1,128], index: 17, kind: input, shape index: {}]
  %s18 = inlined_call_operand.hbm [shape: bf16[128,128], index: 18, kind: input, shape index: {}]
  %s19 = inlined_call_operand.hbm [shape: f32[1,128], index: 19, kind: input, shape index: {}]
  %s20 = inlined_call_operand.vmem [shape: bf16[2,16,128], index: 20, kind: output, shape index: {0}]
  %s21 = inlined_call_operand.vmem [shape: bf16[2,128,128], index: 21, kind: output, shape index: {1}]
  %s22 = inlined_call_operand.vmem [shape: bf16[2,16,128], index: 22, kind: output, shape index: {2}]
  %23 = xla_tuple %s20, %s21, %s22
  %s24 = sld [smem:[#allocation0]]
  $region149: #{fa_model_forward.1} parent=0
    _
  %s26 = ssub.s32 1, %s24
  %s27 = scalar_select 0, %s26, %s24
  %s28 = sshll.u32 %s0, 4
  %s29 = int_to_ptr.vmem [resolvable:$true] %s28
  %31 = dma.vmem_to_smem %s29, 16, [#allocation3], [#allocation2]
  %s32 = sshll.u32 %s1, 4
  %s33 = int_to_ptr.vmem [resolvable:$true] %s32
  %35 = dma.vmem_to_smem %s33, 16, [#allocation4], [#allocation2]
  %v36 = vstv %s10
  %37 = vst [vmem:[#allocation5] sm:$0x1] %v36
  %v38 = vstv %s12
  %39 = vst [vmem:[#allocation6] sm:$0x1] %v38
  %40 = dma.done [#allocation2], 32
  %41 = sfence
  $region1: #{fa_model_forward.1} parent=0
    #allocation7 [shape = 'u8[512]{0}', space=vmem, size = 0x400, scoped, tag = 'input window, operand 6, single buffered']
    #allocation8 [shape = 's32[2]{0}', space=sflag, size = 0x8, scoped, tag = 'scoped memory for fa_model_forward.1']
    #allocation9 [shape = 'u8[512]{0}', space=vmem, size = 0x400, scoped, tag = 'input window, operand 8, single buffered']
    #allocation10 [shape = 's32[1]{0}', space=sflag, size = 0x4, scoped, tag = 'scoped memory for fa_model_forward.1']
    #allocation11 [shape = 'u8[512]{0}', space=vmem, size = 0x400, scoped, tag = 'input window, operand 13, single buffered']
    #allocation12 [shape = 'u8[512]{0}', space=vmem, size = 0x400, scoped, tag = 'input window, operand 15, single buffered']
    #allocation13 [shape = 's32[1]{0}', space=sflag, size = 0x4, scoped, tag = 'scoped memory for fa_model_forward.1']
    #allocation14 [shape = 'u8[512]{0}', space=vmem, size = 0x400, scoped, tag = 'input window, operand 17, single buffered']
    #allocation15 [shape = 'u8[32768]{0}', space=vmem, size = 0x8000, scoped, tag = 'input window, operand 18, single buffered']
    #allocation16 [shape = 's32[1]{0}', space=sflag, size = 0x4, scoped, tag = 'scoped memory for fa_model_forward.1']
    #allocation17 [shape = 'u8[512]{0}', space=vmem, size = 0x400, scoped, tag = 'input window, operand 19, single buffered']
    %42 = vsyncpa [#allocation8], 0
    %43 = vsyncpa [#allocation10], 0
    %44 = vsyncpa [#allocation13], 0
    %45 = vsyncpa [#allocation16], 0
    loop: start=0, step=1, limit=4
    $region2: #{fa_model_forward.1} parent=1 // loop_pre_header
      _
    $region3: #{fa_model_forward.1} parent=1 // loop_header
      %s47 = sphi 0, %s51
      %p48 = scmp.ge.s32.totalorder %s47, 4
      %s57 = sphi 0, %s59
      %s60 = sphi 0, %s57
      %s61 = sphi 0, %s60
      %s77 = sphi 0, %s61
      %s83 = sphi 0, %s85
      %s86 = sphi 0, %s83
      %s87 = sphi 0, %s86
      %s103 = sphi 0, %s87
      %s107 = sphi 0, %s107
      %s109 = sphi 0, %s107
      %s110 = sphi 0, %s109
      %s124 = sphi 0, %s110
      %s128 = sphi 0, %s128
      %s130 = sphi 0, %s128
      %s131 = sphi 0, %s130
      %s145 = sphi 0, %s131
      %s149 = sphi 0, %s149
      %s151 = sphi 0, %s149
      %s152 = sphi 0, %s151
      %s166 = sphi 0, %s152
      %s170 = sphi 0, %s170
      %s172 = sphi 0, %s170
      %s173 = sphi 0, %s172
      %s187 = sphi 0, %s173
      %s191 = sphi 0, %s191
      %s193 = sphi 0, %s191
      %s194 = sphi 0, %s193
      %s208 = sphi 0, %s194
      %s212 = sphi 0, %s212
      %s214 = sphi 0, %s212
      %s215 = sphi 0, %s214
      %s229 = sphi 0, %s215
      %s233 = sphi 0, %s233
      %s235 = sphi 0, %s233
      %s236 = sphi 0, %s235
      %s250 = sphi 0, %s236
      %s254 = sphi 0, %s254
      %s256 = sphi 0, %s254
      %s257 = sphi 0, %s256
      %s271 = sphi 0, %s257
      %s275 = sphi 0, %s275
      %s277 = sphi 0, %s275
      %s278 = sphi 0, %s277
      %s292 = sphi 0, %s278
      %s296 = sphi 0, %s296
      %s298 = sphi 0, %s296
      %s299 = sphi 0, %s298
      %s313 = sphi 0, %s299
      %s317 = sphi 0, %s317
      %s319 = sphi 0, %s317
      %s320 = sphi 0, %s319
      %s334 = sphi 0, %s320
      %s338 = sphi 0, %s338
      %s340 = sphi 0, %s338
      %s341 = sphi 0, %s340
      %s355 = sphi 0, %s341
      %s359 = sphi 0, %s359
      %s361 = sphi 0, %s359
      %s362 = sphi 0, %s361
      %s376 = sphi 0, %s362
      %s380 = sphi 0, %s380
      %s382 = sphi 0, %s380
      %s383 = sphi 0, %s382
      %s397 = sphi 0, %s383
      %s401 = sphi 0, %s401
      %s403 = sphi 0, %s401
      %s404 = sphi 0, %s403
      %s418 = sphi 0, %s404
      %s422 = sphi 0, %s422
      %s424 = sphi 0, %s422
      %s425 = sphi 0, %s424
      %s439 = sphi 0, %s425
      %s445 = sphi 0, %s447
      %s448 = sphi 0, %s445
      %s449 = sphi 0, %s448
      %s465 = sphi 0, %s449
      %s471 = sphi 0, %s473
      %s474 = sphi 0, %s471
      %s475 = sphi 0, %s474
      %s491 = sphi 0, %s475
      %s497 = sphi 0, %s499
      %s500 = sphi 0, %s497
      %s501 = sphi 0, %s500
      %s517 = sphi 0, %s501
    $region4: #{fa_model_forward.1} parent=1 // loop_header_branch
      %50 = sbr.rel (%p48) target = $region8
    $region5: #{fa_model_forward.1} parent=1 // loop_body
      %s52 = ssub.s32 %s47, 1
      %s53 = ssub.s32 %s47, 2
      %s54 = sadd.s32 %s47, 1
      %s55 = ssub.s32 %s47, %s54
      %p56 = scmp.eq.s32.totalorder %s55, 0
      %s58 = sadd.s32 %s57, 1
      %s59 = scalar_select %p56, %s57, %s58
      %p62 = pneg %p56
      %p63 = scmp.eq.s32.totalorder %s47, 1
      %p64 = por %p62, %p63
      %p65 = scmp.ne.s32.totalorder %s57, %s60
      %p66 = scmp.eq.s32.totalorder %s47, 0
      %p67 = por %p65, %p66
      %p68 = scmp.ne.s32.totalorder %s57, %s60
      %p69 = scmp.eq.s32.totalorder %s52, 1
      %p70 = por %p68, %p69
      %p71 = scmp.ne.s32.totalorder %s60, %s61
      %p72 = scmp.eq.s32.totalorder %s52, 0
      %p73 = por %p71, %p72
      %p74 = scmp.ne.s32.totalorder %s60, %s61
      %p75 = scmp.eq.s32.totalorder %s53, 1
      %p76 = por %p74, %p75
      %p78 = scmp.ne.s32.totalorder %s61, %s77
      %p79 = scmp.eq.s32.totalorder %s53, 0
      %p80 = por %p78, %p79
      %s81 = ssub.s32 %s47, %s54
      %p82 = scmp.eq.s32.totalorder %s81, 0
      %s84 = sadd.s32 %s83, 1
      %s85 = scalar_select %p82, %s83, %s84
      %p88 = pneg %p82
      %p89 = scmp.eq.s32.totalorder %s47, 1
      %p90 = por %p88, %p89
      %p91 = scmp.ne.s32.totalorder %s83, %s86
      %p92 = scmp.eq.s32.totalorder %s47, 0
      %p93 = por %p91, %p92
      %p94 = scmp.ne.s32.totalorder %s83, %s86
      %p95 = scmp.eq.s32.totalorder %s52, 1
      %p96 = por %p94, %p95
      %p97 = scmp.ne.s32.totalorder %s86, %s87
      %p98 = scmp.eq.s32.totalorder %s52, 0
      %p99 = por %p97, %p98
      %p100 = scmp.ne.s32.totalorder %s86, %s87
      %p101 = scmp.eq.s32.totalorder %s53, 1
      %p102 = por %p100, %p101
      %p104 = scmp.ne.s32.totalorder %s87, %s103
      %p105 = scmp.eq.s32.totalorder %s53, 0
      %p106 = por %p104, %p105
      %s108 = sadd.s32 %s107, 1
      %p111 = scmp.eq.s32.totalorder %s47, 1
      %p112 = scmp.ne.s32.totalorder %s107, %s109
      %p113 = scmp.eq.s32.totalorder %s47, 0
      %p114 = por %p112, %p113
      %p115 = scmp.ne.s32.totalorder %s107, %s109
      %p116 = scmp.eq.s32.totalorder %s52, 1
      %p117 = por %p115, %p116
      %p118 = scmp.ne.s32.totalorder %s109, %s110
      %p119 = scmp.eq.s32.totalorder %s52, 0
      %p120 = por %p118, %p119
      %p121 = scmp.ne.s32.totalorder %s109, %s110
      %p122 = scmp.eq.s32.totalorder %s53, 1
      %p123 = por %p121, %p122
      %p125 = scmp.ne.s32.totalorder %s110, %s124
      %p126 = scmp.eq.s32.totalorder %s53, 0
      %p127 = por %p125, %p126
      %s129 = sadd.s32 %s128, 1
      %p132 = scmp.eq.s32.totalorder %s47, 1
      %p133 = scmp.ne.s32.totalorder %s128, %s130
      %p134 = scmp.eq.s32.totalorder %s47, 0
      %p135 = por %p133, %p134
      %p136 = scmp.ne.s32.totalorder %s128, %s130
      %p137 = scmp.eq.s32.totalorder %s52, 1
      %p138 = por %p136, %p137
      %p139 = scmp.ne.s32.totalorder %s130, %s131
      %p140 = scmp.eq.s32.totalorder %s52, 0
      %p141 = por %p139, %p140
      %p142 = scmp.ne.s32.totalorder %s130, %s131
      %p143 = scmp.eq.s32.totalorder %s53, 1
      %p144 = por %p142, %p143
      %p146 = scmp.ne.s32.totalorder %s131, %s145
      %p147 = scmp.eq.s32.totalorder %s53, 0
      %p148 = por %p146, %p147
      %s150 = sadd.s32 %s149, 1
      %p153 = scmp.eq.s32.totalorder %s47, 1
      %p154 = scmp.ne.s32.totalorder %s149, %s151
      %p155 = scmp.eq.s32.totalorder %s47, 0
      %p156 = por %p154, %p155
      %p157 = scmp.ne.s32.totalorder %s149, %s151
      %p158 = scmp.eq.s32.totalorder %s52, 1
      %p159 = por %p157, %p158
      %p160 = scmp.ne.s32.totalorder %s151, %s152
      %p161 = scmp.eq.s32.totalorder %s52, 0
      %p162 = por %p160, %p161
      %p163 = scmp.ne.s32.totalorder %s151, %s152
      %p164 = scmp.eq.s32.totalorder %s53, 1
      %p165 = por %p163, %p164
      %p167 = scmp.ne.s32.totalorder %s152, %s166
      %p168 = scmp.eq.s32.totalorder %s53, 0
      %p169 = por %p167, %p168
      %s171 = sadd.s32 %s170, 1
      %p174 = scmp.eq.s32.totalorder %s47, 1
      %p175 = scmp.ne.s32.totalorder %s170, %s172
      %p176 = scmp.eq.s32.totalorder %s47, 0
      %p177 = por %p175, %p176
      %p178 = scmp.ne.s32.totalorder %s170, %s172
      %p179 = scmp.eq.s32.totalorder %s52, 1
      %p180 = por %p178, %p179
      %p181 = scmp.ne.s32.totalorder %s172, %s173
      %p182 = scmp.eq.s32.totalorder %s52, 0
      %p183 = por %p181, %p182
      %p184 = scmp.ne.s32.totalorder %s172, %s173
      %p185 = scmp.eq.s32.totalorder %s53, 1
      %p186 = por %p184, %p185
      %p188 = scmp.ne.s32.totalorder %s173, %s187
      %p189 = scmp.eq.s32.totalorder %s53, 0
      %p190 = por %p188, %p189
      %s192 = sadd.s32 %s191, 1
      %p195 = scmp.eq.s32.totalorder %s47, 1
      %p196 = scmp.ne.s32.totalorder %s191, %s193
      %p197 = scmp.eq.s32.totalorder %s47, 0
      %p198 = por %p196, %p197
      %p199 = scmp.ne.s32.totalorder %s191, %s193
      %p200 = scmp.eq.s32.totalorder %s52, 1
      %p201 = por %p199, %p200
      %p202 = scmp.ne.s32.totalorder %s193, %s194
      %p203 = scmp.eq.s32.totalorder %s52, 0
      %p204 = por %p202, %p203
      %p205 = scmp.ne.s32.totalorder %s193, %s194
      %p206 = scmp.eq.s32.totalorder %s53, 1
      %p207 = por %p205, %p206
      %p209 = scmp.ne.s32.totalorder %s194, %s208
      %p210 = scmp.eq.s32.totalorder %s53, 0
      %p211 = por %p209, %p210
      %s213 = sadd.s32 %s212, 1
      %p216 = scmp.eq.s32.totalorder %s47, 1
      %p217 = scmp.ne.s32.totalorder %s212, %s214
      %p218 = scmp.eq.s32.totalorder %s47, 0
      %p219 = por %p217, %p218
      %p220 = scmp.ne.s32.totalorder %s212, %s214
      %p221 = scmp.eq.s32.totalorder %s52, 1
      %p222 = por %p220, %p221
      %p223 = scmp.ne.s32.totalorder %s214, %s215
      %p224 = scmp.eq.s32.totalorder %s52, 0
      %p225 = por %p223, %p224
      %p226 = scmp.ne.s32.totalorder %s214, %s215
      %p227 = scmp.eq.s32.totalorder %s53, 1
      %p228 = por %p226, %p227
      %p230 = scmp.ne.s32.totalorder %s215, %s229
      %p231 = scmp.eq.s32.totalorder %s53, 0
      %p232 = por %p230, %p231
      %s234 = sadd.s32 %s233, 1
      %p237 = scmp.eq.s32.totalorder %s47, 1
      %p238 = scmp.ne.s32.totalorder %s233, %s235
      %p239 = scmp.eq.s32.totalorder %s47, 0
      %p240 = por %p238, %p239
      %p241 = scmp.ne.s32.totalorder %s233, %s235
      %p242 = scmp.eq.s32.totalorder %s52, 1
      %p243 = por %p241, %p242
      %p244 = scmp.ne.s32.totalorder %s235, %s236
      %p245 = scmp.eq.s32.totalorder %s52, 0
      %p246 = por %p244, %p245
      %p247 = scmp.ne.s32.totalorder %s235, %s236
      %p248 = scmp.eq.s32.totalorder %s53, 1
      %p249 = por %p247, %p248
      %p251 = scmp.ne.s32.totalorder %s236, %s250
      %p252 = scmp.eq.s32.totalorder %s53, 0
      %p253 = por %p251, %p252
      %s255 = sadd.s32 %s254, 1
      %p258 = scmp.eq.s32.totalorder %s47, 1
      %p259 = scmp.ne.s32.totalorder %s254, %s256
      %p260 = scmp.eq.s32.totalorder %s47, 0
      %p261 = por %p259, %p260
      %p262 = scmp.ne.s32.totalorder %s254, %s256
      %p263 = scmp.eq.s32.totalorder %s52, 1
      %p264 = por %p262, %p263
      %p265 = scmp.ne.s32.totalorder %s256, %s257
      %p266 = scmp.eq.s32.totalorder %s52, 0
      %p267 = por %p265, %p266
      %p268 = scmp.ne.s32.totalorder %s256, %s257
      %p269 = scmp.eq.s32.totalorder %s53, 1
      %p270 = por %p268, %p269
      %p272 = scmp.ne.s32.totalorder %s257, %s271
      %p273 = scmp.eq.s32.totalorder %s53, 0
      %p274 = por %p272, %p273
      %s276 = sadd.s32 %s275, 1
      %p279 = scmp.eq.s32.totalorder %s47, 1
      %p280 = scmp.ne.s32.totalorder %s275, %s277
      %p281 = scmp.eq.s32.totalorder %s47, 0
      %p282 = por %p280, %p281
      %p283 = scmp.ne.s32.totalorder %s275, %s277
      %p284 = scmp.eq.s32.totalorder %s52, 1
      %p285 = por %p283, %p284
      %p286 = scmp.ne.s32.totalorder %s277, %s278
      %p287 = scmp.eq.s32.totalorder %s52, 0
      %p288 = por %p286, %p287
      %p289 = scmp.ne.s32.totalorder %s277, %s278
      %p290 = scmp.eq.s32.totalorder %s53, 1
      %p291 = por %p289, %p290
      %p293 = scmp.ne.s32.totalorder %s278, %s292
      %p294 = scmp.eq.s32.totalorder %s53, 0
      %p295 = por %p293, %p294
      %s297 = sadd.s32 %s296, 1
      %p300 = scmp.eq.s32.totalorder %s47, 1
      %p301 = scmp.ne.s32.totalorder %s296, %s298
      %p302 = scmp.eq.s32.totalorder %s47, 0
      %p303 = por %p301, %p302
      %p304 = scmp.ne.s32.totalorder %s296, %s298
      %p305 = scmp.eq.s32.totalorder %s52, 1
      %p306 = por %p304, %p305
      %p307 = scmp.ne.s32.totalorder %s298, %s299
      %p308 = scmp.eq.s32.totalorder %s52, 0
      %p309 = por %p307, %p308
      %p310 = scmp.ne.s32.totalorder %s298, %s299
      %p311 = scmp.eq.s32.totalorder %s53, 1
      %p312 = por %p310, %p311
      %p314 = scmp.ne.s32.totalorder %s299, %s313
      %p315 = scmp.eq.s32.totalorder %s53, 0
      %p316 = por %p314, %p315
      %s318 = sadd.s32 %s317, 1
      %p321 = scmp.eq.s32.totalorder %s47, 1
      %p322 = scmp.ne.s32.totalorder %s317, %s319
      %p323 = scmp.eq.s32.totalorder %s47, 0
      %p324 = por %p322, %p323
      %p325 = scmp.ne.s32.totalorder %s317, %s319
      %p326 = scmp.eq.s32.totalorder %s52, 1
      %p327 = por %p325, %p326
      %p328 = scmp.ne.s32.totalorder %s319, %s320
      %p329 = scmp.eq.s32.totalorder %s52, 0
      %p330 = por %p328, %p329
      %p331 = scmp.ne.s32.totalorder %s319, %s320
      %p332 = scmp.eq.s32.totalorder %s53, 1
      %p333 = por %p331, %p332
      %p335 = scmp.ne.s32.totalorder %s320, %s334
      %p336 = scmp.eq.s32.totalorder %s53, 0
      %p337 = por %p335, %p336
      %s339 = sadd.s32 %s338, 1
      %p342 = scmp.eq.s32.totalorder %s47, 1
      %p343 = scmp.ne.s32.totalorder %s338, %s340
      %p344 = scmp.eq.s32.totalorder %s47, 0
      %p345 = por %p343, %p344
      %p346 = scmp.ne.s32.totalorder %s338, %s340
      %p347 = scmp.eq.s32.totalorder %s52, 1
      %p348 = por %p346, %p347
      %p349 = scmp.ne.s32.totalorder %s340, %s341
      %p350 = scmp.eq.s32.totalorder %s52, 0
      %p351 = por %p349, %p350
      %p352 = scmp.ne.s32.totalorder %s340, %s341
      %p353 = scmp.eq.s32.totalorder %s53, 1
      %p354 = por %p352, %p353
      %p356 = scmp.ne.s32.totalorder %s341, %s355
      %p357 = scmp.eq.s32.totalorder %s53, 0
      %p358 = por %p356, %p357
      %s360 = sadd.s32 %s359, 1
      %p363 = scmp.eq.s32.totalorder %s47, 1
      %p364 = scmp.ne.s32.totalorder %s359, %s361
      %p365 = scmp.eq.s32.totalorder %s47, 0
      %p366 = por %p364, %p365
      %p367 = scmp.ne.s32.totalorder %s359, %s361
      %p368 = scmp.eq.s32.totalorder %s52, 1
      %p369 = por %p367, %p368
      %p370 = scmp.ne.s32.totalorder %s361, %s362
      %p371 = scmp.eq.s32.totalorder %s52, 0
      %p372 = por %p370, %p371
      %p373 = scmp.ne.s32.totalorder %s361, %s362
      %p374 = scmp.eq.s32.totalorder %s53, 1
      %p375 = por %p373, %p374
      %p377 = scmp.ne.s32.totalorder %s362, %s376
      %p378 = scmp.eq.s32.totalorder %s53, 0
      %p379 = por %p377, %p378
      %s381 = sadd.s32 %s380, 1
      %p384 = scmp.eq.s32.totalorder %s47, 1
      %p385 = scmp.ne.s32.totalorder %s380, %s382
      %p386 = scmp.eq.s32.totalorder %s47, 0
      %p387 = por %p385, %p386
      %p388 = scmp.ne.s32.totalorder %s380, %s382
      %p389 = scmp.eq.s32.totalorder %s52, 1
      %p390 = por %p388, %p389
      %p391 = scmp.ne.s32.totalorder %s382, %s383
      %p392 = scmp.eq.s32.totalorder %s52, 0
      %p393 = por %p391, %p392
      %p394 = scmp.ne.s32.totalorder %s382, %s383
      %p395 = scmp.eq.s32.totalorder %s53, 1
      %p396 = por %p394, %p395
      %p398 = scmp.ne.s32.totalorder %s383, %s397
      %p399 = scmp.eq.s32.totalorder %s53, 0
      %p400 = por %p398, %p399
      %s402 = sadd.s32 %s401, 1
      %p405 = scmp.eq.s32.totalorder %s47, 1
      %p406 = scmp.ne.s32.totalorder %s401, %s403
      %p407 = scmp.eq.s32.totalorder %s47, 0
      %p408 = por %p406, %p407
      %p409 = scmp.ne.s32.totalorder %s401, %s403
      %p410 = scmp.eq.s32.totalorder %s52, 1
      %p411 = por %p409, %p410
      %p412 = scmp.ne.s32.totalorder %s403, %s404
      %p413 = scmp.eq.s32.totalorder %s52, 0
      %p414 = por %p412, %p413
      %p415 = scmp.ne.s32.totalorder %s403, %s404
      %p416 = scmp.eq.s32.totalorder %s53, 1
      %p417 = por %p415, %p416
      %p419 = scmp.ne.s32.totalorder %s404, %s418
      %p420 = scmp.eq.s32.totalorder %s53, 0
      %p421 = por %p419, %p420
      %s423 = sadd.s32 %s422, 1
      %p426 = scmp.eq.s32.totalorder %s47, 1
      %p427 = scmp.ne.s32.totalorder %s422, %s424
      %p428 = scmp.eq.s32.totalorder %s47, 0
      %p429 = por %p427, %p428
      %p430 = scmp.ne.s32.totalorder %s422, %s424
      %p431 = scmp.eq.s32.totalorder %s52, 1
      %p432 = por %p430, %p431
      %p433 = scmp.ne.s32.totalorder %s424, %s425
      %p434 = scmp.eq.s32.totalorder %s52, 0
      %p435 = por %p433, %p434
      %p436 = scmp.ne.s32.totalorder %s424, %s425
      %p437 = scmp.eq.s32.totalorder %s53, 1
      %p438 = por %p436, %p437
      %p440 = scmp.ne.s32.totalorder %s425, %s439
      %p441 = scmp.eq.s32.totalorder %s53, 0
      %p442 = por %p440, %p441
      %s443 = ssub.s32 %s47, %s54
      %p444 = scmp.eq.s32.totalorder %s443, 0
      %s446 = sadd.s32 %s445, 1
      %s447 = scalar_select %p444, %s445, %s446
      %p450 = pneg %p444
      %p451 = scmp.eq.s32.totalorder %s47, 1
      %p452 = por %p450, %p451
      %p453 = scmp.ne.s32.totalorder %s445, %s448
      %p454 = scmp.eq.s32.totalorder %s47, 0
      %p455 = por %p453, %p454
      %p456 = scmp.ne.s32.totalorder %s445, %s448
      %p457 = scmp.eq.s32.totalorder %s52, 1
      %p458 = por %p456, %p457
      %p459 = scmp.ne.s32.totalorder %s448, %s449
      %p460 = scmp.eq.s32.totalorder %s52, 0
      %p461 = por %p459, %p460
      %p462 = scmp.ne.s32.totalorder %s448, %s449
      %p463 = scmp.eq.s32.totalorder %s53, 1
      %p464 = por %p462, %p463
      %p466 = scmp.ne.s32.totalorder %s449, %s465
      %p467 = scmp.eq.s32.totalorder %s53, 0
      %p468 = por %p466, %p467
      %s469 = ssub.s32 %s47, %s54
      %p470 = scmp.eq.s32.totalorder %s469, 0
      %s472 = sadd.s32 %s471, 1
      %s473 = scalar_select %p470, %s471, %s472
      %p476 = pneg %p470
      %p477 = scmp.eq.s32.totalorder %s47, 1
      %p478 = por %p476, %p477
      %p479 = scmp.ne.s32.totalorder %s471, %s474
      %p480 = scmp.eq.s32.totalorder %s47, 0
      %p481 = por %p479, %p480
      %p482 = scmp.ne.s32.totalorder %s471, %s474
      %p483 = scmp.eq.s32.totalorder %s52, 1
      %p484 = por %p482, %p483
      %p485 = scmp.ne.s32.totalorder %s474, %s475
      %p486 = scmp.eq.s32.totalorder %s52, 0
      %p487 = por %p485, %p486
      %p488 = scmp.ne.s32.totalorder %s474, %s475
      %p489 = scmp.eq.s32.totalorder %s53, 1
      %p490 = por %p488, %p489
      %p492 = scmp.ne.s32.totalorder %s475, %s491
      %p493 = scmp.eq.s32.totalorder %s53, 0
      %p494 = por %p492, %p493
      %s495 = ssub.s32 %s47, %s54
      %p496 = scmp.eq.s32.totalorder %s495, 0
      %s498 = sadd.s32 %s497, 1
      %s499 = scalar_select %p496, %s497, %s498
      %p502 = pneg %p496
      %p503 = scmp.eq.s32.totalorder %s47, 1
      %p504 = por %p502, %p503
      %p505 = scmp.ne.s32.totalorder %s497, %s500
      %p506 = scmp.eq.s32.totalorder %s47, 0
      %p507 = por %p505, %p506
      %p508 = scmp.ne.s32.totalorder %s497, %s500
      %p509 = scmp.eq.s32.totalorder %s52, 1
      %p510 = por %p508, %p509
      %p511 = scmp.ne.s32.totalorder %s500, %s501
      %p512 = scmp.eq.s32.totalorder %s52, 0
      %p513 = por %p511, %p512
      %p514 = scmp.ne.s32.totalorder %s500, %s501
      %p515 = scmp.eq.s32.totalorder %s53, 1
      %p516 = por %p514, %p515
      %p518 = scmp.ne.s32.totalorder %s501, %s517
      %p519 = scmp.eq.s32.totalorder %s53, 0
      %p520 = por %p518, %p519
      %p521 = scmp.le.s32.totalorder 1, %s47
      %p522 = scmp.lt.s32.totalorder %s47, 3
      %p523 = pnand %p521, %p522
      %p524 = pneg %p523
      // Predicated region
      $region9: #{fa_model_forward.1} parent=5 // pred_check
        _
      $region10: #{fa_model_forward.1} parent=5 // pred_check_branch
        %526 = sbr.rel (%p523) target = $region12
      $region11: #{fa_model_forward.1} parent=5 // pred_region
        %s527 = ssub.s32 %s47, 1
        // Predicated region
        $region13: #{fa_model_forward.1} parent=11 // pred_check
          %p528 = pneg %p120
        $region14: #{fa_model_forward.1} parent=11 // pred_check_branch
          %530 = sbr.rel (%p528) target = $region16
        $region15: #{fa_model_forward.1} parent=11 // pred_region
          _
        $region16: #{fa_model_forward.1} parent=11 // pred_fallthru
          _
        // Predicated region
        $region17: #{fa_model_forward.1} parent=11 // pred_check
          %p531 = pneg %p141
        $region18: #{fa_model_forward.1} parent=11 // pred_check_branch
          %533 = sbr.rel (%p531) target = $region20
        $region19: #{fa_model_forward.1} parent=11 // pred_region
          _
        $region20: #{fa_model_forward.1} parent=11 // pred_fallthru
          _
        // Predicated region
        $region21: #{fa_model_forward.1} parent=11 // pred_check
          %p534 = pneg %p162
        $region22: #{fa_model_forward.1} parent=11 // pred_check_branch
          %536 = sbr.rel (%p534) target = $region24
        $region23: #{fa_model_forward.1} parent=11 // pred_region
          %s538 = ssub.s32 16, 16
          %539 = vsyncadd [#allocation8], %s538
          %s541 = sshll.u32 [#allocation7], 4
          %s542 = int_to_ptr.vmem [resolvable:$true] %s541
          %544 = dma.hbm_to_vmem [thread:$0]  %s6, 16, %s542, [#allocation8]
        $region24: #{fa_model_forward.1} parent=11 // pred_fallthru
          _
        // Predicated region
        $region25: #{fa_model_forward.1} parent=11 // pred_check
          %p545 = pneg %p183
        $region26: #{fa_model_forward.1} parent=11 // pred_check_branch
          %547 = sbr.rel (%p545) target = $region28
        $region27: #{fa_model_forward.1} parent=11 // pred_region
          _
        $region28: #{fa_model_forward.1} parent=11 // pred_fallthru
          _
        // Predicated region
        $region29: #{fa_model_forward.1} parent=11 // pred_check
          %p548 = pneg %p204
        $region30: #{fa_model_forward.1} parent=11 // pred_check_branch
          %550 = sbr.rel (%p548) target = $region32
        $region31: #{fa_model_forward.1} parent=11 // pred_region
          %s552 = ssub.s32 16, 16
          %553 = vsyncadd [#allocation10], %s552
          %s555 = sshll.u32 [#allocation9], 4
          %s556 = int_to_ptr.vmem [resolvable:$true] %s555
          %558 = dma.hbm_to_vmem [thread:$0]  %s8, 16, %s556, [#allocation10]
        $region32: #{fa_model_forward.1} parent=11 // pred_fallthru
          _
        // Predicated region
        $region33: #{fa_model_forward.1} parent=11 // pred_check
          %p559 = pneg %p225
        $region34: #{fa_model_forward.1} parent=11 // pred_check_branch
          %561 = sbr.rel (%p559) target = $region36
        $region35: #{fa_model_forward.1} parent=11 // pred_region
          _
        $region36: #{fa_model_forward.1} parent=11 // pred_fallthru
          _
        // Predicated region
        $region37: #{fa_model_forward.1} parent=11 // pred_check
          %p562 = pneg %p246
        $region38: #{fa_model_forward.1} parent=11 // pred_check_branch
          %564 = sbr.rel (%p562) target = $region40
        $region39: #{fa_model_forward.1} parent=11 // pred_region
          _
        $region40: #{fa_model_forward.1} parent=11 // pred_fallthru
          _
        // Predicated region
        $region41: #{fa_model_forward.1} parent=11 // pred_check
          %p565 = pneg %p267
        $region42: #{fa_model_forward.1} parent=11 // pred_check_branch
          %567 = sbr.rel (%p565) target = $region44
        $region43: #{fa_model_forward.1} parent=11 // pred_region
          _
        $region44: #{fa_model_forward.1} parent=11 // pred_fallthru
          _
        // Predicated region
        $region45: #{fa_model_forward.1} parent=11 // pred_check
          %p568 = pneg %p288
        $region46: #{fa_model_forward.1} parent=11 // pred_check_branch
          %570 = sbr.rel (%p568) target = $region48
        $region47: #{fa_model_forward.1} parent=11 // pred_region
          _
        $region48: #{fa_model_forward.1} parent=11 // pred_fallthru
          _
        // Predicated region
        $region49: #{fa_model_forward.1} parent=11 // pred_check
          %p571 = pneg %p309
        $region50: #{fa_model_forward.1} parent=11 // pred_check_branch
          %573 = sbr.rel (%p571) target = $region52
        $region51: #{fa_model_forward.1} parent=11 // pred_region
          %s575 = ssub.s32 16, 16
          %576 = vsyncadd [#allocation10], %s575
          %s578 = sshll.u32 [#allocation11], 4
          %s579 = int_to_ptr.vmem [resolvable:$true] %s578
          %581 = dma.hbm_to_vmem [thread:$0]  %s13, 16, %s579, [#allocation10]
        $region52: #{fa_model_forward.1} parent=11 // pred_fallthru
          _
        // Predicated region
        $region53: #{fa_model_forward.1} parent=11 // pred_check
          %p582 = pneg %p330
        $region54: #{fa_model_forward.1} parent=11 // pred_check_branch
          %584 = sbr.rel (%p582) target = $region56
        $region55: #{fa_model_forward.1} parent=11 // pred_region
          _
        $region56: #{fa_model_forward.1} parent=11 // pred_fallthru
          _
        // Predicated region
        $region57: #{fa_model_forward.1} parent=11 // pred_check
          %p585 = pneg %p351
        $region58: #{fa_model_forward.1} parent=11 // pred_check_branch
          %587 = sbr.rel (%p585) target = $region60
        $region59: #{fa_model_forward.1} parent=11 // pred_region
          %s589 = ssub.s32 16, 16
          %590 = vsyncadd [#allocation13], %s589
          %s592 = sshll.u32 [#allocation12], 4
          %s593 = int_to_ptr.vmem [resolvable:$true] %s592
          %595 = dma.hbm_to_vmem [thread:$0]  %s15, 16, %s593, [#allocation13]
        $region60: #{fa_model_forward.1} parent=11 // pred_fallthru
          _
        // Predicated region
        $region61: #{fa_model_forward.1} parent=11 // pred_check
          %p596 = pneg %p372
        $region62: #{fa_model_forward.1} parent=11 // pred_check_branch
          %598 = sbr.rel (%p596) target = $region64
        $region63: #{fa_model_forward.1} parent=11 // pred_region
          _
        $region64: #{fa_model_forward.1} parent=11 // pred_fallthru
          _
        // Predicated region
        $region65: #{fa_model_forward.1} parent=11 // pred_check
          %p599 = pneg %p393
        $region66: #{fa_model_forward.1} parent=11 // pred_check_branch
          %601 = sbr.rel (%p599) target = $region68
        $region67: #{fa_model_forward.1} parent=11 // pred_region
          %s603 = ssub.s32 16, 16
          %604 = vsyncadd [#allocation13], %s603
          %s606 = sshll.u32 [#allocation14], 4
          %s607 = int_to_ptr.vmem [resolvable:$true] %s606
          %609 = dma.hbm_to_vmem [thread:$0]  %s17, 16, %s607, [#allocation13]
        $region68: #{fa_model_forward.1} parent=11 // pred_fallthru
          _
        // Predicated region
        $region69: #{fa_model_forward.1} parent=11 // pred_check
          %p610 = pneg %p414
        $region70: #{fa_model_forward.1} parent=11 // pred_check_branch
          %612 = sbr.rel (%p610) target = $region72
        $region71: #{fa_model_forward.1} parent=11 // pred_region
          %s614 = ssub.s32 1024, 1024
          %615 = vsyncadd [#allocation16], %s614
          %s616 = sshll.u32 [#allocation15], 4
          %s617 = int_to_ptr.vmem [resolvable:$true] %s616
          %622 = dma.hbm_to_vmem [thread:$0]  %s18, 1024, %s617, [#allocation16], 64, 64, 4
        $region72: #{fa_model_forward.1} parent=11 // pred_fallthru
          _
        // Predicated region
        $region73: #{fa_model_forward.1} parent=11 // pred_check
          %p623 = pneg %p435
        $region74: #{fa_model_forward.1} parent=11 // pred_check_branch
          %625 = sbr.rel (%p623) target = $region76
        $region75: #{fa_model_forward.1} parent=11 // pred_region
          %s627 = ssub.s32 16, 16
          %628 = vsyncadd [#allocation16], %s627
          %s630 = sshll.u32 [#allocation17], 4
          %s631 = int_to_ptr.vmem [resolvable:$true] %s630
          %633 = dma.hbm_to_vmem [thread:$0]  %s19, 16, %s631, [#allocation16]
        $region76: #{fa_model_forward.1} parent=11 // pred_fallthru
          _
      $region12: #{fa_model_forward.1} parent=5 // pred_fallthru
        _
      %p634 = scmp.lt.s32.totalorder %s47, 2
      // Predicated region
      $region77: #{fa_model_forward.1} parent=5 // pred_check
        %p635 = pneg %p634
      $region78: #{fa_model_forward.1} parent=5 // pred_check_branch
        %637 = sbr.rel (%p635) target = $region80
      $region79: #{fa_model_forward.1} parent=5 // pred_region
        // Predicated region
        $region81: #{fa_model_forward.1} parent=79 // pred_check
          %p638 = pneg %p67
        $region82: #{fa_model_forward.1} parent=79 // pred_check_branch
          %640 = sbr.rel (%p638) target = $region84
        $region83: #{fa_model_forward.1} parent=79 // pred_region
          %p641 = scmp.lt.s32.totalorder %s47, 1
          %s642 = scalar_select %p641, %s47, 1
          %s643 = smul.addr %s642, 2
          %s644 = smul.addr %s643, 8
          %s645 = scalar_lea.vmem %s2, %s644
        $region84: #{fa_model_forward.1} parent=79 // pred_fallthru
          _
        // Predicated region
        $region85: #{fa_model_forward.1} parent=79 // pred_check
          %p646 = pneg %p93
        $region86: #{fa_model_forward.1} parent=79 // pred_check_branch
          %648 = sbr.rel (%p646) target = $region88
        $region87: #{fa_model_forward.1} parent=79 // pred_region
          %p649 = scmp.lt.s32.totalorder %s47, 1
          %s650 = scalar_select %p649, %s47, 1
          %s651 = smul.addr %s650, 16
          %s652 = smul.addr %s651, 4
          %s653 = scalar_lea.vmem %s3, %s652
        $region88: #{fa_model_forward.1} parent=79 // pred_fallthru
          _
      $region80: #{fa_model_forward.1} parent=5 // pred_fallthru
        _
      %p654 = scmp.le.s32.totalorder 1, %s47
      %p655 = scmp.lt.s32.totalorder %s47, 3
      %p656 = pnand %p654, %p655
      %p657 = pneg %p656
      // Predicated region
      $region89: #{fa_model_forward.1} parent=5 // pred_check
        _
      $region90: #{fa_model_forward.1} parent=5 // pred_check_branch
        %659 = sbr.rel (%p656) target = $region92
      $region91: #{fa_model_forward.1} parent=5 // pred_region
        %s660 = ssub.s32 %s47, 1
        // Predicated region
        $region93: #{fa_model_forward.1} parent=91 // pred_check
          %p661 = pneg %p162
        $region94: #{fa_model_forward.1} parent=91 // pred_check_branch
          %663 = sbr.rel (%p661) target = $region96
        $region95: #{fa_model_forward.1} parent=91 // pred_region
          %664 = dma.done [#allocation8], 16
        $region96: #{fa_model_forward.1} parent=91 // pred_fallthru
          _
        // Predicated region
        $region97: #{fa_model_forward.1} parent=91 // pred_check
          %p665 = pneg %p204
        $region98: #{fa_model_forward.1} parent=91 // pred_check_branch
          %667 = sbr.rel (%p665) target = $region100
        $region99: #{fa_model_forward.1} parent=91 // pred_region
          %668 = dma.done [#allocation10], 16
        $region100: #{fa_model_forward.1} parent=91 // pred_fallthru
          _
        // Predicated region
        $region101: #{fa_model_forward.1} parent=91 // pred_check
          %p669 = pneg %p309
        $region102: #{fa_model_forward.1} parent=91 // pred_check_branch
          %671 = sbr.rel (%p669) target = $region104
        $region103: #{fa_model_forward.1} parent=91 // pred_region
          %672 = dma.done [#allocation10], 16
        $region104: #{fa_model_forward.1} parent=91 // pred_fallthru
          _
        // Predicated region
        $region105: #{fa_model_forward.1} parent=91 // pred_check
          %p673 = pneg %p351
        $region106: #{fa_model_forward.1} parent=91 // pred_check_branch
          %675 = sbr.rel (%p673) target = $region108
        $region107: #{fa_model_forward.1} parent=91 // pred_region
          %676 = dma.done [#allocation13], 16
        $region108: #{fa_model_forward.1} parent=91 // pred_fallthru
          _
        // Predicated region
        $region109: #{fa_model_forward.1} parent=91 // pred_check
          %p677 = pneg %p393
        $region110: #{fa_model_forward.1} parent=91 // pred_check_branch
          %679 = sbr.rel (%p677) target = $region112
        $region111: #{fa_model_forward.1} parent=91 // pred_region
          %680 = dma.done [#allocation13], 16
        $region112: #{fa_model_forward.1} parent=91 // pred_fallthru
          _
        // Predicated region
        $region113: #{fa_model_forward.1} parent=91 // pred_check
          %p681 = pneg %p414
        $region114: #{fa_model_forward.1} parent=91 // pred_check_branch
          %683 = sbr.rel (%p681) target = $region116
        $region115: #{fa_model_forward.1} parent=91 // pred_region
          %684 = dma.done [#allocation16], 1024
        $region116: #{fa_model_forward.1} parent=91 // pred_fallthru
          _
        // Predicated region
        $region117: #{fa_model_forward.1} parent=91 // pred_check
          %p685 = pneg %p435
        $region118: #{fa_model_forward.1} parent=91 // pred_check_branch
          %687 = sbr.rel (%p685) target = $region120
        $region119: #{fa_model_forward.1} parent=91 // pred_region
          %688 = dma.done [#allocation16], 16
        $region120: #{fa_model_forward.1} parent=91 // pred_fallthru
          _
        %p689 = scmp.lt.s32.totalorder %s52, 1
        %s690 = scalar_select %p689, %s52, 1
        %s691 = smul.addr %s690, 2
        %s692 = smul.addr %s691, 8
        %s693 = scalar_lea.vmem %s2, %s692
        %p694 = pneg %p73
        %p695 = pneg %p70
        %p696 = scmp.lt.s32.totalorder %s52, 1
        %s697 = scalar_select %p696, %s52, 1
        %s698 = smul.addr %s697, 16
        %s699 = smul.addr %s698, 4
        %s700 = scalar_lea.vmem %s3, %s699
        %p701 = pneg %p99
        %p702 = pneg %p96
        %p703 = pneg %p120
        %p704 = pneg %p117
        %p705 = pneg %p141
        %p706 = pneg %p138
        %p707 = pneg %p162
        %p708 = pneg %p159
        %p709 = pneg %p183
        %p710 = pneg %p180
        %p711 = pneg %p204
        %p712 = pneg %p201
        %p713 = pneg %p225
        %p714 = pneg %p222
        %p715 = pneg %p246
        %p716 = pneg %p243
        %p717 = pneg %p267
        %p718 = pneg %p264
        %p719 = pneg %p288
        %p720 = pneg %p285
        %p721 = pneg %p309
        %p722 = pneg %p306
        %p723 = pneg %p330
        %p724 = pneg %p327
        %p725 = pneg %p351
        %p726 = pneg %p348
        %p727 = pneg %p372
        %p728 = pneg %p369
        %p729 = pneg %p393
        %p730 = pneg %p390
        %p731 = pneg %p414
        %p732 = pneg %p411
        %p733 = pneg %p435
        %p734 = pneg %p432
        %p735 = pneg %p461
        %p736 = pneg %p458
        %p737 = scmp.lt.s32.totalorder %s52, 1
        %s738 = scalar_select %p737, %s52, 1
        %s739 = smul.addr %s738, 2
        %s740 = smul.addr %s739, 4
        %s741 = scalar_lea.vmem %s20, %s740
        %p742 = pneg %p487
        %p743 = pneg %p484
        %p744 = scmp.lt.s32.totalorder %s52, 1
        %s745 = scalar_select %p744, %s52, 1
        %s746 = smul.addr %s745, 16
        %s747 = smul.addr %s746, 4
        %s748 = scalar_lea.vmem %s21, %s747
        %p749 = pneg %p513
        %p750 = pneg %p510
        %p751 = scmp.lt.s32.totalorder %s52, 1
        %s752 = scalar_select %p751, %s52, 1
        %s753 = smul.addr %s752, 2
        %s754 = smul.addr %s753, 4
        %s755 = scalar_lea.vmem %s22, %s754
        %p756 = scmp.lt.s32.totalorder %s52, 1
        %s757 = scalar_select %p756, %s52, 1
        %s758 = smul.addr %s757, 2
        %s759 = smul.addr %s758, 8
        %s760 = scalar_lea.vmem %s2, %s759
        %p761 = scmp.lt.s32.totalorder %s52, 1
        %s762 = scalar_select %p761, %s52, 1
        %s763 = smul.addr %s762, 16
        %s764 = smul.addr %s763, 4
        %s765 = scalar_lea.vmem %s3, %s764
        %p766 = scmp.lt.s32.totalorder %s52, 1
        %s767 = scalar_select %p766, %s52, 1
        %s768 = smul.addr %s767, 2
        %s769 = smul.addr %s768, 4
        %s770 = scalar_lea.vmem %s20, %s769
        %p771 = scmp.lt.s32.totalorder %s52, 1
        %s772 = scalar_select %p771, %s52, 1
        %s773 = smul.addr %s772, 16
        %s774 = smul.addr %s773, 4
        %s775 = scalar_lea.vmem %s21, %s774
        %p776 = scmp.lt.s32.totalorder %s52, 1
        %s777 = scalar_select %p776, %s52, 1
        %s778 = smul.addr %s777, 2
        %s779 = smul.addr %s778, 4
        %s780 = scalar_lea.vmem %s22, %s779
        %v782 = vld [vmem:[%s4] sm:$0xf]
        %v783 = vld [vmem:[%s4 + $0x4] sm:$0xf]
        %v784 = vld [vmem:[%s4 + $0x8] sm:$0xf]
        %v785 = vld [vmem:[%s4 + $0xc] sm:$0xf]
        %v786 = vld [vmem:[%s4 + $0x10] sm:$0xf]
        %v787 = vld [vmem:[%s4 + $0x14] sm:$0xf]
        %v788 = vld [vmem:[%s4 + $0x18] sm:$0xf]
        %v789 = vld [vmem:[%s4 + $0x1c] sm:$0xf]
        %v790 = vld [vmem:[%s4 + $0x20] sm:$0xf]
        %v791 = vld [vmem:[%s4 + $0x24] sm:$0xf]
        %v792 = vld [vmem:[%s4 + $0x28] sm:$0xf]
        %v793 = vld [vmem:[%s4 + $0x2c] sm:$0xf]
        %v794 = vld [vmem:[%s4 + $0x30] sm:$0xf]
        %v795 = vld [vmem:[%s4 + $0x34] sm:$0xf]
        %v796 = vld [vmem:[%s4 + $0x38] sm:$0xf]
        %v797 = vld [vmem:[%s4 + $0x3c] sm:$0xf]
        %v798 = vld [vmem:[%s5] sm:$0xf]
        %v799 = vld [vmem:[%s5 + $0x4] sm:$0xf]
        %v800 = vld [vmem:[%s5 + $0x8] sm:$0xf]
        %v801 = vld [vmem:[%s5 + $0xc] sm:$0xf]
        %v802 = vld [vmem:[%s5 + $0x10] sm:$0xf]
        %v803 = vld [vmem:[%s5 + $0x14] sm:$0xf]
        %v804 = vld [vmem:[%s5 + $0x18] sm:$0xf]
        %v805 = vld [vmem:[%s5 + $0x1c] sm:$0xf]
        %v806 = vld [vmem:[%s5 + $0x20] sm:$0xf]
        %v807 = vld [vmem:[%s5 + $0x24] sm:$0xf]
        %v808 = vld [vmem:[%s5 + $0x28] sm:$0xf]
        %v809 = vld [vmem:[%s5 + $0x2c] sm:$0xf]
        %v810 = vld [vmem:[%s5 + $0x30] sm:$0xf]
        %v811 = vld [vmem:[%s5 + $0x34] sm:$0xf]
        %v812 = vld [vmem:[%s5 + $0x38] sm:$0xf]
        %v813 = vld [vmem:[%s5 + $0x3c] sm:$0xf]
        %v814 = vld [vmem:[#allocation7] sm:$0x1]
        %v815 = vld [vmem:[%s7] sm:$0xf]
        %v816 = vld [vmem:[%s7 + $0x4] sm:$0xf]
        %v817 = vld [vmem:[%s7 + $0x8] sm:$0xf]
        %v818 = vld [vmem:[%s7 + $0xc] sm:$0xf]
        %v819 = vld [vmem:[%s7 + $0x10] sm:$0xf]
        %v820 = vld [vmem:[%s7 + $0x14] sm:$0xf]
        %v821 = vld [vmem:[%s7 + $0x18] sm:$0xf]
        %v822 = vld [vmem:[%s7 + $0x1c] sm:$0xf]
        %v823 = vld [vmem:[%s7 + $0x20] sm:$0xf]
        %v824 = vld [vmem:[%s7 + $0x24] sm:$0xf]
        %v825 = vld [vmem:[%s7 + $0x28] sm:$0xf]
        %v826 = vld [vmem:[%s7 + $0x2c] sm:$0xf]
        %v827 = vld [vmem:[%s7 + $0x30] sm:$0xf]
        %v828 = vld [vmem:[%s7 + $0x34] sm:$0xf]
        %v829 = vld [vmem:[%s7 + $0x38] sm:$0xf]
        %v830 = vld [vmem:[%s7 + $0x3c] sm:$0xf]
        %v831 = vld [vmem:[#allocation9] sm:$0x1]
        %v832 = vld [vmem:[%s9] sm:$0x1]
        %v833 = vld [vmem:[#allocation5] sm:$0x1]
        %v834 = vld [vmem:[%s11] sm:$0x1]
        %v835 = vld [vmem:[#allocation6] sm:$0x1]
        %v836 = vld [vmem:[#allocation11] sm:$0x1]
        %v837 = vld [vmem:[%s14] sm:$0x1]
        %v838 = vld [vmem:[#allocation12] sm:$0x1]
        %v839 = vld [vmem:[%s16] sm:$0xf]
        %v840 = vld [vmem:[%s16 + $0x4] sm:$0xf]
        %v841 = vld [vmem:[%s16 + $0x8] sm:$0xf]
        %v842 = vld [vmem:[%s16 + $0xc] sm:$0xf]
        %v843 = vld [vmem:[%s16 + $0x10] sm:$0xf]
        %v844 = vld [vmem:[%s16 + $0x14] sm:$0xf]
        %v845 = vld [vmem:[%s16 + $0x18] sm:$0xf]
        %v846 = vld [vmem:[%s16 + $0x1c] sm:$0xf]
        %v847 = vld [vmem:[%s16 + $0x20] sm:$0xf]
        %v848 = vld [vmem:[%s16 + $0x24] sm:$0xf]
        %v849 = vld [vmem:[%s16 + $0x28] sm:$0xf]
        %v850 = vld [vmem:[%s16 + $0x2c] sm:$0xf]
        %v851 = vld [vmem:[%s16 + $0x30] sm:$0xf]
        %v852 = vld [vmem:[%s16 + $0x34] sm:$0xf]
        %v853 = vld [vmem:[%s16 + $0x38] sm:$0xf]
        %v854 = vld [vmem:[%s16 + $0x3c] sm:$0xf]
        %v855 = vld [vmem:[#allocation14] sm:$0x1]
        %v856 = vld [vmem:[#allocation15] sm:$0xf]
        %v857 = vld [vmem:[#allocation15 + $0x4] sm:$0xf]
        %v858 = vld [vmem:[#allocation15 + $0x8] sm:$0xf]
        %v859 = vld [vmem:[#allocation15 + $0xc] sm:$0xf]
        %v860 = vld [vmem:[#allocation15 + $0x10] sm:$0xf]
        %v861 = vld [vmem:[#allocation15 + $0x14] sm:$0xf]
        %v862 = vld [vmem:[#allocation15 + $0x18] sm:$0xf]
        %v863 = vld [vmem:[#allocation15 + $0x1c] sm:$0xf]
        %v864 = vld [vmem:[#allocation15 + $0x20] sm:$0xf]
        %v865 = vld [vmem:[#allocation15 + $0x24] sm:$0xf]
        %v866 = vld [vmem:[#allocation15 + $0x28] sm:$0xf]
        %v867 = vld [vmem:[#allocation15 + $0x2c] sm:$0xf]
        %v868 = vld [vmem:[#allocation15 + $0x30] sm:$0xf]
        %v869 = vld [vmem:[#allocation15 + $0x34] sm:$0xf]
        %v870 = vld [vmem:[#allocation15 + $0x38] sm:$0xf]
        %v871 = vld [vmem:[#allocation15 + $0x3c] sm:$0xf]
        %v872 = vld [vmem:[#allocation17] sm:$0x1]
        %v873 = vlaneseq
        %v874 = vand.u32 %v873, 127
        %v875 = vlaneseq
        %v876 = vshrl.u32 %v875, 7
        %v877 = vadd.s32 %v876, 8
        %vm878 = vcmp.lt.s32.totalorder %v876, 8
        %vm879 = vcmp.lt.s32.totalorder %v877, 8
        %v880 = vadd.s32 %v876, 16
        %v881 = vadd.s32 %v876, 24
        %v882 = vadd.s32 %v876, 32
        %v883 = vadd.s32 %v876, 40
        %v884 = vadd.s32 %v876, 48
        %v885 = vadd.s32 %v876, 56
        %v886 = vadd.s32 %v876, 64
        %v887 = vadd.s32 %v876, 72
        %v888 = vadd.s32 %v876, 80
        %v889 = vadd.s32 %v876, 88
        %v890 = vadd.s32 %v876, 96
        %v891 = vadd.s32 %v876, 104
        %v892 = vadd.s32 %v876, 112
        %v893 = vadd.s32 %v876, 120
        %vm894 = vcmp.lt.s32.totalorder %v876, 16
        %vm895 = vcmp.lt.s32.totalorder %v877, 16
        %vm896 = vcmp.lt.s32.totalorder %v880, 16
        %vm897 = vcmp.lt.s32.totalorder %v881, 16
        %vm898 = vcmp.lt.s32.totalorder %v882, 16
        %vm899 = vcmp.lt.s32.totalorder %v883, 16
        %vm900 = vcmp.lt.s32.totalorder %v884, 16
        %vm901 = vcmp.lt.s32.totalorder %v885, 16
        %vm902 = vcmp.lt.s32.totalorder %v886, 16
        %vm903 = vcmp.lt.s32.totalorder %v887, 16
        %vm904 = vcmp.lt.s32.totalorder %v888, 16
        %vm905 = vcmp.lt.s32.totalorder %v889, 16
        %vm906 = vcmp.lt.s32.totalorder %v890, 16
        %vm907 = vcmp.lt.s32.totalorder %v891, 16
        %vm908 = vcmp.lt.s32.totalorder %v892, 16
        %vm909 = vcmp.lt.s32.totalorder %v893, 16
        %vm910 = vcmp.ge.s32.totalorder %v876, %v874
        %vm911 = vcmp.ge.s32.totalorder %v877, %v874
        %v912 = vsel %vm910, 1, 0
        %v913 = vsel %vm911, 1, 0
        %v914 = vcvt.s32.f32 %v912
        %v915 = vcvt.s32.f32 %v913
        %vm916 = vcmp.ge.s32.totalorder %v880, %v874
        %vm917 = vcmp.ge.s32.totalorder %v881, %v874
        %vm918 = vcmp.ge.s32.totalorder %v882, %v874
        %vm919 = vcmp.ge.s32.totalorder %v883, %v874
        %vm920 = vcmp.ge.s32.totalorder %v884, %v874
        %vm921 = vcmp.ge.s32.totalorder %v885, %v874
        %vm922 = vcmp.ge.s32.totalorder %v886, %v874
        %vm923 = vcmp.ge.s32.totalorder %v887, %v874
        %vm924 = vcmp.ge.s32.totalorder %v888, %v874
        %vm925 = vcmp.ge.s32.totalorder %v889, %v874
        %vm926 = vcmp.ge.s32.totalorder %v890, %v874
        %vm927 = vcmp.ge.s32.totalorder %v891, %v874
        %vm928 = vcmp.ge.s32.totalorder %v892, %v874
        %vm929 = vcmp.ge.s32.totalorder %v893, %v874
        %v930 = vsel %vm916, 1, 0
        %v931 = vsel %vm917, 1, 0
        %v932 = vsel %vm918, 1, 0
        %v933 = vsel %vm919, 1, 0
        %v934 = vsel %vm920, 1, 0
        %v935 = vsel %vm921, 1, 0
        %v936 = vsel %vm922, 1, 0
        %v937 = vsel %vm923, 1, 0
        %v938 = vsel %vm924, 1, 0
        %v939 = vsel %vm925, 1, 0
        %v940 = vsel %vm926, 1, 0
        %v941 = vsel %vm927, 1, 0
        %v942 = vsel %vm928, 1, 0
        %v943 = vsel %vm929, 1, 0
        %v944 = vcvt.s32.f32 %v930
        %v945 = vcvt.s32.f32 %v931
        %v946 = vcvt.s32.f32 %v932
        %v947 = vcvt.s32.f32 %v933
        %v948 = vcvt.s32.f32 %v934
        %v949 = vcvt.s32.f32 %v935
        %v950 = vcvt.s32.f32 %v936
        %v951 = vcvt.s32.f32 %v937
        %v952 = vcvt.s32.f32 %v938
        %v953 = vcvt.s32.f32 %v939
        %v954 = vcvt.s32.f32 %v940
        %v955 = vcvt.s32.f32 %v941
        %v956 = vcvt.s32.f32 %v942
        %v957 = vcvt.s32.f32 %v943
        %s958 = sld [smem:[#allocation3 + %s52]]
        %s959 = sld [smem:[#allocation4 + %s52]]
        %v960 = vld [vmem:[%s760] sm:$0xff]
        %v961 = vld [vmem:[%s760 + $0x8] sm:$0xff]
        %962 = vset.pattern.permute.xlu0 0
        %963 = vperm.xlu0 %962, %v960
        %v964 = vpop.permute.xlu0 %963
        %965 = vset.pattern.permute.xlu0 0
        %966 = vperm.xlu0 %965, %v961
        %v967 = vpop.permute.xlu0 %966
        %vm968 = vcmp.eq.s32.totalorder %v964, %v874
        %vm969 = vcmp.eq.s32.totalorder %v967, %v874
        %v970 = vsel %vm968, 1, 0
        %v971 = vsel %vm969, 1, 0
        %v972 = vcvt.s32.f32 %v970
        %v973 = vcvt.s32.f32 %v971
        %v974 = vpack.c.bf16 %v973, %v972
        %v991 = vunpack.c.l.b16 %v782
        %v992 = vunpack.c.l.b16 %v783
        %v993 = vunpack.c.l.b16 %v784
        %v994 = vunpack.c.l.b16 %v785
        %v995 = vunpack.c.l.b16 %v786
        %v996 = vunpack.c.l.b16 %v787
        %v997 = vunpack.c.l.b16 %v788
        %v998 = vunpack.c.l.b16 %v789
        %v999 = vunpack.c.l.b16 %v790
        %v1000 = vunpack.c.l.b16 %v791
        %v1001 = vunpack.c.l.b16 %v792
        %v1002 = vunpack.c.l.b16 %v793
        %v1003 = vunpack.c.l.b16 %v794
        %v1004 = vunpack.c.l.b16 %v795
        %v1005 = vunpack.c.l.b16 %v796
        %v1006 = vunpack.c.l.b16 %v797
        %v1007 = vpack.c.b16 %v992, %v991
        %v1008 = vpack.c.b16 %v994, %v993
        %v1009 = vpack.c.b16 %v996, %v995
        %v1010 = vpack.c.b16 %v998, %v997
        %v1011 = vpack.c.b16 %v1000, %v999
        %v1012 = vpack.c.b16 %v1002, %v1001
        %v1013 = vpack.c.b16 %v1004, %v1003
        %v1014 = vpack.c.b16 %v1006, %v1005
        %1023 = vmatprep.subr.bf16.mxu0 0
        %1024 = vmatpush1.bf16.msra.mxu0 %v1007
        %1025 = vmatprep.subr.bf16.mxu0 0
        %1026 = vmatpush1.bf16.msra.mxu0 %v1008
        %1027 = vmatprep.subr.bf16.mxu0 0
        %1028 = vmatpush1.bf16.msra.mxu0 %v1009
        %1029 = vmatprep.subr.bf16.mxu0 0
        %1030 = vmatpush1.bf16.msra.mxu0 %v1010
        %1031 = vmatprep.subr.bf16.mxu0 0
        %1032 = vmatpush1.bf16.msra.mxu0 %v1011
        %1033 = vmatprep.subr.bf16.mxu0 0
        %1034 = vmatpush1.bf16.msra.mxu0 %v1012
        %1035 = vmatprep.subr.bf16.mxu0 0
        %1036 = vmatpush1.bf16.msra.mxu0 %v1013
        %1037 = vmatprep.subr.bf16.mxu0 0
        %1038 = vmatpush1.bf16.msra.mxu0 %v1014
        %1039 = vmatprep.subr.bf16.mxu0 0
        %1040 = vmatpush1.bf16.msra.mxu0 0
        %1041 = vmatprep.subr.bf16.mxu0 0
        %1042 = vmatpush1.bf16.msra.mxu0 0
        %1043 = vmatprep.subr.bf16.mxu0 0
        %1044 = vmatpush1.bf16.msra.mxu0 0
        %1045 = vmatprep.subr.bf16.mxu0 0
        %1046 = vmatpush1.bf16.msra.mxu0 0
        %1047 = vmatprep.subr.bf16.mxu0 0
        %1048 = vmatpush1.bf16.msra.mxu0 0
        %1049 = vmatprep.subr.bf16.mxu0 0
        %1050 = vmatpush1.bf16.msra.mxu0 0
        %1051 = vmatprep.subr.bf16.mxu0 0
        %1052 = vmatpush1.bf16.msra.mxu0 0
        %1053 = vmatprep.subr.bf16.mxu0 0
        %1054 = vmatpush1.bf16.msra.mxu0 0
        %1055 = vmatprep.mubr.bf16.mxu0 0
        %1056 = vmatmul.mubr.bf16.gmra.mrb[0].mxu0 %v974
        %v1057 = vpop.f32.mrb[0].mxu0
        %v1058 = vadd.f32 0.0, %v1057
        %v1059 = vpop.f32.mrb[0].mxu0
        %v1060 = vpop.f32.mrb[0].mxu0
        %v1061 = vadd.f32 0.0, %v1060
        %v1062 = vpop.f32.mrb[0].mxu0
        %1063 = vdwg.mxu0
        %v1064 = vpack.c.bf16 %v1061, %v1058
        %v1066 = vlaneseq
        %v1067 = vshrl.u32 %v1066, 7
        %v1068 = vsub.s32 0, %v1067
        %v1069 = vrot.slane %v814, %v1068
        %v1087 = vunpack.c.l.b16 %v798
        %v1088 = vunpack.c.l.b16 %v799
        %v1089 = vunpack.c.l.b16 %v800
        %v1090 = vunpack.c.l.b16 %v801
        %v1091 = vunpack.c.l.b16 %v802
        %v1092 = vunpack.c.l.b16 %v803
        %v1093 = vunpack.c.l.b16 %v804
        %v1094 = vunpack.c.l.b16 %v805
        %v1095 = vunpack.c.l.b16 %v806
        %v1096 = vunpack.c.l.b16 %v807
        %v1097 = vunpack.c.l.b16 %v808
        %v1098 = vunpack.c.l.b16 %v809
        %v1099 = vunpack.c.l.b16 %v810
        %v1100 = vunpack.c.l.b16 %v811
        %v1101 = vunpack.c.l.b16 %v812
        %v1102 = vunpack.c.l.b16 %v813
        %v1103 = vpack.c.b16 %v1088, %v1087
        %v1104 = vpack.c.b16 %v1090, %v1089
        %v1105 = vpack.c.b16 %v1092, %v1091
        %v1106 = vpack.c.b16 %v1094, %v1093
        %v1107 = vpack.c.b16 %v1096, %v1095
        %v1108 = vpack.c.b16 %v1098, %v1097
        %v1109 = vpack.c.b16 %v1100, %v1099
        %v1110 = vpack.c.b16 %v1102, %v1101
        %1119 = vmatprep.subr.bf16.mxu0 0
        %1120 = vmatpush1.bf16.msra.mxu0 %v1103
        %1121 = vmatprep.subr.bf16.mxu0 0
        %1122 = vmatpush1.bf16.msra.mxu0 %v1104
        %1123 = vmatprep.subr.bf16.mxu0 0
        %1124 = vmatpush1.bf16.msra.mxu0 %v1105
        %1125 = vmatprep.subr.bf16.mxu0 0
        %1126 = vmatpush1.bf16.msra.mxu0 %v1106
        %1127 = vmatprep.subr.bf16.mxu0 0
        %1128 = vmatpush1.bf16.msra.mxu0 %v1107
        %1129 = vmatprep.subr.bf16.mxu0 0
        %1130 = vmatpush1.bf16.msra.mxu0 %v1108
        %1131 = vmatprep.subr.bf16.mxu0 0
        %1132 = vmatpush1.bf16.msra.mxu0 %v1109
        %1133 = vmatprep.subr.bf16.mxu0 0
        %1134 = vmatpush1.bf16.msra.mxu0 %v1110
        %1135 = vmatprep.subr.bf16.mxu0 0
        %1136 = vmatpush1.bf16.msra.mxu0 0
        %1137 = vmatprep.subr.bf16.mxu0 0
        %1138 = vmatpush1.bf16.msra.mxu0 0
        %1139 = vmatprep.subr.bf16.mxu0 0
        %1140 = vmatpush1.bf16.msra.mxu0 0
        %1141 = vmatprep.subr.bf16.mxu0 0
        %1142 = vmatpush1.bf16.msra.mxu0 0
        %1143 = vmatprep.subr.bf16.mxu0 0
        %1144 = vmatpush1.bf16.msra.mxu0 0
        %1145 = vmatprep.subr.bf16.mxu0 0
        %1146 = vmatpush1.bf16.msra.mxu0 0
        %1147 = vmatprep.subr.bf16.mxu0 0
        %1148 = vmatpush1.bf16.msra.mxu0 0
        %1149 = vmatprep.subr.bf16.mxu0 0
        %1150 = vmatpush1.bf16.msra.mxu0 0
        %1151 = vmatprep.mubr.bf16.mxu0 0
        %1152 = vmatmul.mubr.bf16.gmra.mrb[0].mxu0 %v1064
        %v1153 = vpop.f32.mrb[0].mxu0
        %v1154 = vadd.f32 %v1069, %v1153
        %v1155 = vpop.f32.mrb[0].mxu0
        %v1156 = vpop.f32.mrb[0].mxu0
        %v1157 = vadd.f32 %v1069, %v1156
        %v1158 = vpop.f32.mrb[0].mxu0
        %1159 = vdwg.mxu0
        %v1160 = vtanh.pop %v1154
        %v1161 = vtanh.pop %v1157
        %v1162 = vsel %vm878, %v1160, 0.0
        %v1163 = vsel %vm879, %v1161, 0.0
        %v1164 = vld [vmem:[%s765] sm:$0xf]
        %v1165 = vld [vmem:[%s765 + $0x4] sm:$0xf]
        %v1166 = vld [vmem:[%s765 + $0x8] sm:$0xf]
        %v1167 = vld [vmem:[%s765 + $0xc] sm:$0xf]
        %v1168 = vld [vmem:[%s765 + $0x10] sm:$0xf]
        %v1169 = vld [vmem:[%s765 + $0x14] sm:$0xf]
        %v1170 = vld [vmem:[%s765 + $0x18] sm:$0xf]
        %v1171 = vld [vmem:[%s765 + $0x1c] sm:$0xf]
        %v1172 = vld [vmem:[%s765 + $0x20] sm:$0xf]
        %v1173 = vld [vmem:[%s765 + $0x24] sm:$0xf]
        %v1174 = vld [vmem:[%s765 + $0x28] sm:$0xf]
        %v1175 = vld [vmem:[%s765 + $0x2c] sm:$0xf]
        %v1176 = vld [vmem:[%s765 + $0x30] sm:$0xf]
        %v1177 = vld [vmem:[%s765 + $0x34] sm:$0xf]
        %v1178 = vld [vmem:[%s765 + $0x38] sm:$0xf]
        %v1179 = vld [vmem:[%s765 + $0x3c] sm:$0xf]
        %v1181 = vlaneseq
        %v1182 = vshrl.u32 %v1181, 7
        %v1183 = vsub.s32 0, %v1182
        %v1184 = vrot.slane %v831, %v1183
        %v1202 = vunpack.c.l.b16 %v1164
        %v1203 = vunpack.c.l.b16 %v1165
        %v1204 = vunpack.c.l.b16 %v1166
        %v1205 = vunpack.c.l.b16 %v1167
        %v1206 = vunpack.c.l.b16 %v1168
        %v1207 = vunpack.c.l.b16 %v1169
        %v1208 = vunpack.c.l.b16 %v1170
        %v1209 = vunpack.c.l.b16 %v1171
        %v1210 = vunpack.c.l.b16 %v1172
        %v1211 = vunpack.c.l.b16 %v1173
        %v1212 = vunpack.c.l.b16 %v1174
        %v1213 = vunpack.c.l.b16 %v1175
        %v1214 = vunpack.c.l.b16 %v1176
        %v1215 = vunpack.c.l.b16 %v1177
        %v1216 = vunpack.c.l.b16 %v1178
        %v1217 = vunpack.c.l.b16 %v1179
        %v1218 = vpack.c.b16 %v1203, %v1202
        %v1219 = vpack.c.b16 %v1205, %v1204
        %v1220 = vpack.c.b16 %v1207, %v1206
        %v1221 = vpack.c.b16 %v1209, %v1208
        %v1222 = vpack.c.b16 %v1211, %v1210
        %v1223 = vpack.c.b16 %v1213, %v1212
        %v1224 = vpack.c.b16 %v1215, %v1214
        %v1225 = vpack.c.b16 %v1217, %v1216
        %v1250 = vunpack.c.l.b16 %v815
        %v1251 = vunpack.c.l.b16 %v816
        %v1252 = vunpack.c.l.b16 %v817
        %v1253 = vunpack.c.l.b16 %v818
        %v1254 = vunpack.c.l.b16 %v819
        %v1255 = vunpack.c.l.b16 %v820
        %v1256 = vunpack.c.l.b16 %v821
        %v1257 = vunpack.c.l.b16 %v822
        %v1258 = vunpack.c.l.b16 %v823
        %v1259 = vunpack.c.l.b16 %v824
        %v1260 = vunpack.c.l.b16 %v825
        %v1261 = vunpack.c.l.b16 %v826
        %v1262 = vunpack.c.l.b16 %v827
        %v1263 = vunpack.c.l.b16 %v828
        %v1264 = vunpack.c.l.b16 %v829
        %v1265 = vunpack.c.l.b16 %v830
        %v1266 = vpack.c.b16 %v1251, %v1250
        %v1267 = vpack.c.b16 %v1253, %v1252
        %v1268 = vpack.c.b16 %v1255, %v1254
        %v1269 = vpack.c.b16 %v1257, %v1256
        %v1270 = vpack.c.b16 %v1259, %v1258
        %v1271 = vpack.c.b16 %v1261, %v1260
        %v1272 = vpack.c.b16 %v1263, %v1262
        %v1273 = vpack.c.b16 %v1265, %v1264
        %1282 = vmatprep.subr.bf16.mxu0 0
        %1283 = vmatpush1.bf16.msra.mxu0 %v1266
        %1284 = vmatprep.subr.bf16.mxu0 0
        %1285 = vmatpush1.bf16.msra.mxu0 %v1267
        %1286 = vmatprep.subr.bf16.mxu0 0
        %1287 = vmatpush1.bf16.msra.mxu0 %v1268
        %1288 = vmatprep.subr.bf16.mxu0 0
        %1289 = vmatpush1.bf16.msra.mxu0 %v1269
        %1290 = vmatprep.subr.bf16.mxu0 0
        %1291 = vmatpush1.bf16.msra.mxu0 %v1270
        %1292 = vmatprep.subr.bf16.mxu0 0
        %1293 = vmatpush1.bf16.msra.mxu0 %v1271
        %1294 = vmatprep.subr.bf16.mxu0 0
        %1295 = vmatpush1.bf16.msra.mxu0 %v1272
        %1296 = vmatprep.subr.bf16.mxu0 0
        %1297 = vmatpush1.bf16.msra.mxu0 %v1273
        %1298 = vmatprep.subr.bf16.mxu0 0
        %1299 = vmatpush1.bf16.msra.mxu0 0
        %1300 = vmatprep.subr.bf16.mxu0 0
        %1301 = vmatpush1.bf16.msra.mxu0 0
        %1302 = vmatprep.subr.bf16.mxu0 0
        %1303 = vmatpush1.bf16.msra.mxu0 0
        %1304 = vmatprep.subr.bf16.mxu0 0
        %1305 = vmatpush1.bf16.msra.mxu0 0
        %1306 = vmatprep.subr.bf16.mxu0 0
        %1307 = vmatpush1.bf16.msra.mxu0 0
        %1308 = vmatprep.subr.bf16.mxu0 0
        %1309 = vmatpush1.bf16.msra.mxu0 0
        %1310 = vmatprep.subr.bf16.mxu0 0
        %1311 = vmatpush1.bf16.msra.mxu0 0
        %1312 = vmatprep.subr.bf16.mxu0 0
        %1313 = vmatpush1.bf16.msra.mxu0 0
        %1314 = vmatprep.mubr.bf16.mxu0 0
        %1315 = vmatmul.mubr.bf16.gmra.mrb[0].mxu0 %v1218
        %v1316 = vpop.f32.mrb[0].mxu0
        %v1317 = vadd.f32 %v1184, %v1316
        %v1318 = vpop.f32.mrb[0].mxu0
        %v1319 = vpop.f32.mrb[0].mxu0
        %v1320 = vadd.f32 %v1184, %v1319
        %v1321 = vpop.f32.mrb[0].mxu0
        %1322 = vmatprep.mubr.bf16.mxu0 0
        %1323 = vmatmul.mubr.bf16.gmra.mrb[0].mxu0 %v1219
        %v1324 = vpop.f32.mrb[0].mxu0
        %v1325 = vadd.f32 %v1184, %v1324
        %v1326 = vpop.f32.mrb[0].mxu0
        %v1327 = vpop.f32.mrb[0].mxu0
        %v1328 = vadd.f32 %v1184, %v1327
        %v1329 = vpop.f32.mrb[0].mxu0
        %1330 = vmatprep.mubr.bf16.mxu0 0
        %1331 = vmatmul.mubr.bf16.gmra.mrb[0].mxu0 %v1220
        %v1332 = vpop.f32.mrb[0].mxu0
        %v1333 = vadd.f32 %v1184, %v1332
        %v1334 = vpop.f32.mrb[0].mxu0
        %v1335 = vpop.f32.mrb[0].mxu0
        %v1336 = vadd.f32 %v1184, %v1335
        %v1337 = vpop.f32.mrb[0].mxu0
        %1338 = vmatprep.mubr.bf16.mxu0 0
        %1339 = vmatmul.mubr.bf16.gmra.mrb[0].mxu0 %v1221
        %v1340 = vpop.f32.mrb[0].mxu0
        %v1341 = vadd.f32 %v1184, %v1340
        %v1342 = vpop.f32.mrb[0].mxu0
        %v1343 = vpop.f32.mrb[0].mxu0
        %v1344 = vadd.f32 %v1184, %v1343
        %v1345 = vpop.f32.mrb[0].mxu0
        %1346 = vmatprep.mubr.bf16.mxu0 0
        %1347 = vmatmul.mubr.bf16.gmra.mrb[0].mxu0 %v1222
        %v1348 = vpop.f32.mrb[0].mxu0
        %v1349 = vadd.f32 %v1184, %v1348
        %v1350 = vpop.f32.mrb[0].mxu0
        %v1351 = vpop.f32.mrb[0].mxu0
        %v1352 = vadd.f32 %v1184, %v1351
        %v1353 = vpop.f32.mrb[0].mxu0
        %1354 = vmatprep.mubr.bf16.mxu0 0
        %1355 = vmatmul.mubr.bf16.gmra.mrb[0].mxu0 %v1223
        %v1356 = vpop.f32.mrb[0].mxu0
        %v1357 = vadd.f32 %v1184, %v1356
        %v1358 = vpop.f32.mrb[0].mxu0
        %v1359 = vpop.f32.mrb[0].mxu0
        %v1360 = vadd.f32 %v1184, %v1359
        %v1361 = vpop.f32.mrb[0].mxu0
        %1362 = vmatprep.mubr.bf16.mxu0 0
        %1363 = vmatmul.mubr.bf16.gmra.mrb[0].mxu0 %v1224
        %v1364 = vpop.f32.mrb[0].mxu0
        %v1365 = vadd.f32 %v1184, %v1364
        %v1366 = vpop.f32.mrb[0].mxu0
        %v1367 = vpop.f32.mrb[0].mxu0
        %v1368 = vadd.f32 %v1184, %v1367
        %v1369 = vpop.f32.mrb[0].mxu0
        %1370 = vmatprep.mubr.bf16.mxu0 0
        %1371 = vmatmul.mubr.bf16.gmra.mrb[0].mxu0 %v1225
        %v1372 = vpop.f32.mrb[0].mxu0
        %v1373 = vadd.f32 %v1184, %v1372
        %v1374 = vpop.f32.mrb[0].mxu0
        %v1375 = vpop.f32.mrb[0].mxu0
        %v1376 = vadd.f32 %v1184, %v1375
        %v1377 = vpop.f32.mrb[0].mxu0
        %1378 = vdwg.mxu0
        %v1379 = vtanh.pop %v1317
        %v1380 = vtanh.pop %v1320
        %v1381 = vtanh.pop %v1325
        %v1382 = vtanh.pop %v1328
        %v1383 = vtanh.pop %v1333
        %v1384 = vtanh.pop %v1336
        %v1385 = vtanh.pop %v1341
        %v1386 = vtanh.pop %v1344
        %v1387 = vtanh.pop %v1349
        %v1388 = vtanh.pop %v1352
        %v1389 = vtanh.pop %v1357
        %v1390 = vtanh.pop %v1360
        %v1391 = vtanh.pop %v1365
        %v1392 = vtanh.pop %v1368
        %v1393 = vtanh.pop %v1373
        %v1394 = vtanh.pop %v1376
        %v1395 = vsel %vm894, %v1379, 0.0
        %v1396 = vsel %vm895, %v1380, 0.0
        %v1397 = vsel %vm896, %v1381, 0.0
        %v1398 = vsel %vm897, %v1382, 0.0
        %v1399 = vsel %vm898, %v1383, 0.0
        %v1400 = vsel %vm899, %v1384, 0.0
        %v1401 = vsel %vm900, %v1385, 0.0
        %v1402 = vsel %vm901, %v1386, 0.0
        %v1403 = vsel %vm902, %v1387, 0.0
        %v1404 = vsel %vm903, %v1388, 0.0
        %v1405 = vsel %vm904, %v1389, 0.0
        %v1406 = vsel %vm905, %v1390, 0.0
        %v1407 = vsel %vm906, %v1391, 0.0
        %v1408 = vsel %vm907, %v1392, 0.0
        %v1409 = vsel %vm908, %v1393, 0.0
        %v1410 = vsel %vm909, %v1394, 0.0
        %v1412 = vlaneseq
        %v1413 = vshrl.u32 %v1412, 7
        %v1414 = vsub.s32 0, %v1413
        %v1415 = vrot.slane %v832, %v1414
        %v1417 = vmul.f32 %v1395, %v1415
        %v1418 = vmul.f32 %v1396, %v1415
        %v1419 = vmul.f32 %v1397, %v1415
        %v1420 = vmul.f32 %v1398, %v1415
        %v1421 = vmul.f32 %v1399, %v1415
        %v1422 = vmul.f32 %v1400, %v1415
        %v1423 = vmul.f32 %v1401, %v1415
        %v1424 = vmul.f32 %v1402, %v1415
        %v1425 = vmul.f32 %v1403, %v1415
        %v1426 = vmul.f32 %v1404, %v1415
        %v1427 = vmul.f32 %v1405, %v1415
        %v1428 = vmul.f32 %v1406, %v1415
        %v1429 = vmul.f32 %v1407, %v1415
        %v1430 = vmul.f32 %v1408, %v1415
        %v1431 = vmul.f32 %v1409, %v1415
        %v1432 = vmul.f32 %v1410, %v1415
        %1433 = vadd.xlane.f32.xlu0 %v1417
        %v1434 = vpop.xlane.xlu0 %1433
        %1435 = vadd.xlane.f32.xlu0 %v1418
        %v1436 = vpop.xlane.xlu0 %1435
        %1437 = vadd.xlane.f32.xlu0 %v1419
        %v1438 = vpop.xlane.xlu0 %1437
        %1439 = vadd.xlane.f32.xlu0 %v1420
        %v1440 = vpop.xlane.xlu0 %1439
        %1441 = vadd.xlane.f32.xlu0 %v1421
        %v1442 = vpop.xlane.xlu0 %1441
        %1443 = vadd.xlane.f32.xlu0 %v1422
        %v1444 = vpop.xlane.xlu0 %1443
        %1445 = vadd.xlane.f32.xlu0 %v1423
        %v1446 = vpop.xlane.xlu0 %1445
        %1447 = vadd.xlane.f32.xlu0 %v1424
        %v1448 = vpop.xlane.xlu0 %1447
        %1449 = vadd.xlane.f32.xlu0 %v1425
        %v1450 = vpop.xlane.xlu0 %1449
        %1451 = vadd.xlane.f32.xlu0 %v1426
        %v1452 = vpop.xlane.xlu0 %1451
        %1453 = vadd.xlane.f32.xlu0 %v1427
        %v1454 = vpop.xlane.xlu0 %1453
        %1455 = vadd.xlane.f32.xlu0 %v1428
        %v1456 = vpop.xlane.xlu0 %1455
        %1457 = vadd.xlane.f32.xlu0 %v1429
        %v1458 = vpop.xlane.xlu0 %1457
        %1459 = vadd.xlane.f32.xlu0 %v1430
        %v1460 = vpop.xlane.xlu0 %1459
        %1461 = vadd.xlane.f32.xlu0 %v1431
        %v1462 = vpop.xlane.xlu0 %1461
        %1463 = vadd.xlane.f32.xlu0 %v1432
        %v1464 = vpop.xlane.xlu0 %1463
        %v1466 = vlaneseq
        %v1467 = vshrl.u32 %v1466, 7
        %v1468 = vsub.s32 0, %v1467
        %v1469 = vrot.slane %v833, %v1468
        %v1471 = vadd.f32 %v1434, %v1469
        %v1472 = vadd.f32 %v1436, %v1469
        %v1473 = vadd.f32 %v1438, %v1469
        %v1474 = vadd.f32 %v1440, %v1469
        %v1475 = vadd.f32 %v1442, %v1469
        %v1476 = vadd.f32 %v1444, %v1469
        %v1477 = vadd.f32 %v1446, %v1469
        %v1478 = vadd.f32 %v1448, %v1469
        %v1479 = vadd.f32 %v1450, %v1469
        %v1480 = vadd.f32 %v1452, %v1469
        %v1481 = vadd.f32 %v1454, %v1469
        %v1482 = vadd.f32 %v1456, %v1469
        %v1483 = vadd.f32 %v1458, %v1469
        %v1484 = vadd.f32 %v1460, %v1469
        %v1485 = vadd.f32 %v1462, %v1469
        %v1486 = vadd.f32 %v1464, %v1469
        %v1487 = vmax.f32 %v1471, 0.0
        %v1488 = vmax.f32 %v1472, 0.0
        %v1489 = vmax.f32 %v1473, 0.0
        %v1490 = vmax.f32 %v1474, 0.0
        %v1491 = vmax.f32 %v1475, 0.0
        %v1492 = vmax.f32 %v1476, 0.0
        %v1493 = vmax.f32 %v1477, 0.0
        %v1494 = vmax.f32 %v1478, 0.0
        %v1495 = vmax.f32 %v1479, 0.0
        %v1496 = vmax.f32 %v1480, 0.0
        %v1497 = vmax.f32 %v1481, 0.0
        %v1498 = vmax.f32 %v1482, 0.0
        %v1499 = vmax.f32 %v1483, 0.0
        %v1500 = vmax.f32 %v1484, 0.0
        %v1501 = vmax.f32 %v1485, 0.0
        %v1502 = vmax.f32 %v1486, 0.0
        %1504 = vset.pattern.permute.xlu0 0
        %1505 = vperm.xlu0 %1504, %v1487
        %v1506 = vpop.permute.xlu0 %1505
        %1509 = vset.pattern.permute.xlu0 0
        %1510 = vperm.xlu0 %1509, %v1488
        %v1511 = vpop.permute.xlu0 %1510
        %1514 = vset.pattern.permute.xlu0 0
        %1515 = vperm.xlu0 %1514, %v1489
        %v1516 = vpop.permute.xlu0 %1515
        %1519 = vset.pattern.permute.xlu0 0
        %1520 = vperm.xlu0 %1519, %v1490
        %v1521 = vpop.permute.xlu0 %1520
        %1524 = vset.pattern.permute.xlu0 0
        %1525 = vperm.xlu0 %1524, %v1491
        %v1526 = vpop.permute.xlu0 %1525
        %1529 = vset.pattern.permute.xlu0 0
        %1530 = vperm.xlu0 %1529, %v1492
        %v1531 = vpop.permute.xlu0 %1530
        %1534 = vset.pattern.permute.xlu0 0
        %1535 = vperm.xlu0 %1534, %v1493
        %v1536 = vpop.permute.xlu0 %1535
        %1539 = vset.pattern.permute.xlu0 0
        %1540 = vperm.xlu0 %1539, %v1494
        %v1541 = vpop.permute.xlu0 %1540
        %1544 = vset.pattern.permute.xlu0 0
        %1545 = vperm.xlu0 %1544, %v1495
        %v1546 = vpop.permute.xlu0 %1545
        %1549 = vset.pattern.permute.xlu0 0
        %1550 = vperm.xlu0 %1549, %v1496
        %v1551 = vpop.permute.xlu0 %1550
        %1554 = vset.pattern.permute.xlu0 0
        %1555 = vperm.xlu0 %1554, %v1497
        %v1556 = vpop.permute.xlu0 %1555
        %1559 = vset.pattern.permute.xlu0 0
        %1560 = vperm.xlu0 %1559, %v1498
        %v1561 = vpop.permute.xlu0 %1560
        %1564 = vset.pattern.permute.xlu0 0
        %1565 = vperm.xlu0 %1564, %v1499
        %v1566 = vpop.permute.xlu0 %1565
        %1569 = vset.pattern.permute.xlu0 0
        %1570 = vperm.xlu0 %1569, %v1500
        %v1571 = vpop.permute.xlu0 %1570
        %1574 = vset.pattern.permute.xlu0 0
        %1575 = vperm.xlu0 %1574, %v1501
        %v1576 = vpop.permute.xlu0 %1575
        %1579 = vset.pattern.permute.xlu0 0
        %1580 = vperm.xlu0 %1579, %v1502
        %v1581 = vpop.permute.xlu0 %1580
        %v1584 = vlaneseq
        %v1585 = vshrl.u32 %v1584, 7
        %v1586 = vsub.s32 0, %v1585
        %v1587 = vrot.slane %v836, %v1586
        %v1589 = vmul.f32 %v1506, %v1587
        %v1590 = vmul.f32 %v1511, %v1587
        %v1591 = vmul.f32 %v1516, %v1587
        %v1592 = vmul.f32 %v1521, %v1587
        %v1593 = vmul.f32 %v1526, %v1587
        %v1594 = vmul.f32 %v1531, %v1587
        %v1595 = vmul.f32 %v1536, %v1587
        %v1596 = vmul.f32 %v1541, %v1587
        %v1597 = vmul.f32 %v1546, %v1587
        %v1598 = vmul.f32 %v1551, %v1587
        %v1599 = vmul.f32 %v1556, %v1587
        %v1600 = vmul.f32 %v1561, %v1587
        %v1601 = vmul.f32 %v1566, %v1587
        %v1602 = vmul.f32 %v1571, %v1587
        %v1603 = vmul.f32 %v1576, %v1587
        %v1604 = vmul.f32 %v1581, %v1587
        %v1606 = vlaneseq
        %v1607 = vshrl.u32 %v1606, 7
        %v1608 = vsub.s32 0, %v1607
        %v1609 = vrot.slane %v837, %v1608
        %1611 = vmatprep.subr.mxu0 0.0
        %1612 = vmatpush1.msra.mxu0 %v1589
        %1613 = vmatprep.subr.mxu0 0.0
        %1614 = vmatpush1.msra.mxu0 %v1590
        %1615 = vmatprep.subr.mxu0 0.0
        %1616 = vmatpush1.msra.mxu0 %v1591
        %1617 = vmatprep.subr.mxu0 0.0
        %1618 = vmatpush1.msra.mxu0 %v1592
        %1619 = vmatprep.subr.mxu0 0.0
        %1620 = vmatpush1.msra.mxu0 %v1593
        %1621 = vmatprep.subr.mxu0 0.0
        %1622 = vmatpush1.msra.mxu0 %v1594
        %1623 = vmatprep.subr.mxu0 0.0
        %1624 = vmatpush1.msra.mxu0 %v1595
        %1625 = vmatprep.subr.mxu0 0.0
        %1626 = vmatpush1.msra.mxu0 %v1596
        %1627 = vmatprep.subr.mxu0 0.0
        %1628 = vmatpush1.msra.mxu0 %v1597
        %1629 = vmatprep.subr.mxu0 0.0
        %1630 = vmatpush1.msra.mxu0 %v1598
        %1631 = vmatprep.subr.mxu0 0.0
        %1632 = vmatpush1.msra.mxu0 %v1599
        %1633 = vmatprep.subr.mxu0 0.0
        %1634 = vmatpush1.msra.mxu0 %v1600
        %1635 = vmatprep.subr.mxu0 0.0
        %1636 = vmatpush1.msra.mxu0 %v1601
        %1637 = vmatprep.subr.mxu0 0.0
        %1638 = vmatpush1.msra.mxu0 %v1602
        %1639 = vmatprep.subr.mxu0 0.0
        %1640 = vmatpush1.msra.mxu0 %v1603
        %1641 = vmatprep.subr.mxu0 0.0
        %1642 = vmatpush1.msra.mxu0 %v1604
        %1643 = vmatprep.subr.mxu0 0.0
        %1644 = vmatpush1.msra.mxu0 0.0
        %1645 = vmatprep.subr.mxu0 0.0
        %1646 = vmatpush1.msra.mxu0 0.0
        %1647 = vmatprep.subr.mxu0 0.0
        %1648 = vmatpush1.msra.mxu0 0.0
        %1649 = vmatprep.subr.mxu0 0.0
        %1650 = vmatpush1.msra.mxu0 0.0
        %1651 = vmatprep.subr.mxu0 0.0
        %1652 = vmatpush1.msra.mxu0 0.0
        %1653 = vmatprep.subr.mxu0 0.0
        %1654 = vmatpush1.msra.mxu0 0.0
        %1655 = vmatprep.subr.mxu0 0.0
        %1656 = vmatpush1.msra.mxu0 0.0
        %1657 = vmatprep.subr.mxu0 0.0
        %1658 = vmatpush1.msra.mxu0 0.0
        %1659 = vmatprep.subr.mxu0 0.0
        %1660 = vmatpush1.msra.mxu0 0.0
        %1661 = vmatprep.subr.mxu0 0.0
        %1662 = vmatpush1.msra.mxu0 0.0
        %1663 = vmatprep.subr.mxu0 0.0
        %1664 = vmatpush1.msra.mxu0 0.0
        %1665 = vmatprep.subr.mxu0 0.0
        %1666 = vmatpush1.msra.mxu0 0.0
        %1667 = vmatprep.subr.mxu0 0.0
        %1668 = vmatpush1.msra.mxu0 0.0
        %1669 = vmatprep.subr.mxu0 0.0
        %1670 = vmatpush1.msra.mxu0 0.0
        %1671 = vmatprep.subr.mxu0 0.0
        %1672 = vmatpush1.msra.mxu0 0.0
        %1673 = vmatprep.subr.mxu0 0.0
        %1674 = vmatpush1.msra.mxu0 0.0
        %1675 = vmatprep.mubr.f32.mxu0 0.0
        %1676 = vmatmul.mubr.f32.gmra.mrb[0].mxu0 %v914
        %v1677 = vpop.f32.mrb[0].mxu0
        %v1678 = vadd.f32 %v1609, %v1677
        %v1679 = vpop.f32.mrb[0].mxu0
        %1680 = vmatprep.mubr.f32.mxu0 0.0
        %1681 = vmatmul.mubr.f32.gmra.mrb[0].mxu0 %v915
        %v1682 = vpop.f32.mrb[0].mxu0
        %v1683 = vadd.f32 %v1609, %v1682
        %v1684 = vpop.f32.mrb[0].mxu0
        %1685 = vmatprep.mubr.f32.mxu0 0.0
        %1686 = vmatmul.mubr.f32.gmra.mrb[0].mxu0 %v944
        %v1687 = vpop.f32.mrb[0].mxu0
        %v1688 = vadd.f32 %v1609, %v1687
        %v1689 = vpop.f32.mrb[0].mxu0
        %1690 = vmatprep.mubr.f32.mxu0 0.0
        %1691 = vmatmul.mubr.f32.gmra.mrb[0].mxu0 %v945
        %v1692 = vpop.f32.mrb[0].mxu0
        %v1693 = vadd.f32 %v1609, %v1692
        %v1694 = vpop.f32.mrb[0].mxu0
        %1695 = vmatprep.mubr.f32.mxu0 0.0
        %1696 = vmatmul.mubr.f32.gmra.mrb[0].mxu0 %v946
        %v1697 = vpop.f32.mrb[0].mxu0
        %v1698 = vadd.f32 %v1609, %v1697
        %v1699 = vpop.f32.mrb[0].mxu0
        %1700 = vmatprep.mubr.f32.mxu0 0.0
        %1701 = vmatmul.mubr.f32.gmra.mrb[0].mxu0 %v947
        %v1702 = vpop.f32.mrb[0].mxu0
        %v1703 = vadd.f32 %v1609, %v1702
        %v1704 = vpop.f32.mrb[0].mxu0
        %1705 = vmatprep.mubr.f32.mxu0 0.0
        %1706 = vmatmul.mubr.f32.gmra.mrb[0].mxu0 %v948
        %v1707 = vpop.f32.mrb[0].mxu0
        %v1708 = vadd.f32 %v1609, %v1707
        %v1709 = vpop.f32.mrb[0].mxu0
        %1710 = vmatprep.mubr.f32.mxu0 0.0
        %1711 = vmatmul.mubr.f32.gmra.mrb[0].mxu0 %v949
        %v1712 = vpop.f32.mrb[0].mxu0
        %v1713 = vadd.f32 %v1609, %v1712
        %v1714 = vpop.f32.mrb[0].mxu0
        %1715 = vmatprep.mubr.f32.mxu0 0.0
        %1716 = vmatmul.mubr.f32.gmra.mrb[0].mxu0 %v950
        %v1717 = vpop.f32.mrb[0].mxu0
        %v1718 = vadd.f32 %v1609, %v1717
        %v1719 = vpop.f32.mrb[0].mxu0
        %1720 = vmatprep.mubr.f32.mxu0 0.0
        %1721 = vmatmul.mubr.f32.gmra.mrb[0].mxu0 %v951
        %v1722 = vpop.f32.mrb[0].mxu0
        %v1723 = vadd.f32 %v1609, %v1722
        %v1724 = vpop.f32.mrb[0].mxu0
        %1725 = vmatprep.mubr.f32.mxu0 0.0
        %1726 = vmatmul.mubr.f32.gmra.mrb[0].mxu0 %v952
        %v1727 = vpop.f32.mrb[0].mxu0
        %v1728 = vadd.f32 %v1609, %v1727
        %v1729 = vpop.f32.mrb[0].mxu0
        %1730 = vmatprep.mubr.f32.mxu0 0.0
        %1731 = vmatmul.mubr.f32.gmra.mrb[0].mxu0 %v953
        %v1732 = vpop.f32.mrb[0].mxu0
        %v1733 = vadd.f32 %v1609, %v1732
        %v1734 = vpop.f32.mrb[0].mxu0
        %1735 = vmatprep.mubr.f32.mxu0 0.0
        %1736 = vmatmul.mubr.f32.gmra.mrb[0].mxu0 %v954
        %v1737 = vpop.f32.mrb[0].mxu0
        %v1738 = vadd.f32 %v1609, %v1737
        %v1739 = vpop.f32.mrb[0].mxu0
        %1740 = vmatprep.mubr.f32.mxu0 0.0
        %1741 = vmatmul.mubr.f32.gmra.mrb[0].mxu0 %v955
        %v1742 = vpop.f32.mrb[0].mxu0
        %v1743 = vadd.f32 %v1609, %v1742
        %v1744 = vpop.f32.mrb[0].mxu0
        %1745 = vmatprep.mubr.f32.mxu0 0.0
        %1746 = vmatmul.mubr.f32.gmra.mrb[0].mxu0 %v956
        %v1747 = vpop.f32.mrb[0].mxu0
        %v1748 = vadd.f32 %v1609, %v1747
        %v1749 = vpop.f32.mrb[0].mxu0
        %1750 = vmatprep.mubr.f32.mxu0 0.0
        %1751 = vmatmul.mubr.f32.gmra.mrb[0].mxu0 %v957
        %v1752 = vpop.f32.mrb[0].mxu0
        %v1753 = vadd.f32 %v1609, %v1752
        %v1754 = vpop.f32.mrb[0].mxu0
        %1755 = vdwg.mxu0
        %v1756 = vand.u32 2147483647, %v1678
        %vm1757 = vcmp.le.f32.partialorder %v1756, 0.7853982
        %vm1758 = vcmp.lt.s32.totalorder %v1678, 0
        %v1759 = vand.u32 %v1678, 2139095040
        %v1760 = vshrl.u32 %v1759, 23
        %v1761 = vsub.s32 %v1760, 127
        %v1762 = vand.u32 2147483647, %v1678
        %v1763 = vand.u32 %v1762, 8388607
        %v1764 = vor.u32 %v1763, 8388608
        %v1765 = vsub.s32 0, %v1764
        %v1766 = vadd.s32 %v1761, 1
        %vm1767 = vcmp.gt.s32.totalorder %v1766, 0
        %v1768 = vsel %vm1767, %v1766, 0
        %v1769 = vshrl.u32 %v1768, 5
        %v1770 = vand.u32 %v1768, 31
        %v1771 = vsub.s32 32, %v1770
        %v1772 = vshrl.u32 683565275, %v1771
        %v1773 = vshll.u32 683565275, %v1770
        %v1774 = vshrl.u32 2475754826, %v1771
        %v1775 = vor.u32 %v1773, %v1774
        %v1776 = vshll.u32 2475754826, %v1770
        %v1777 = vshrl.u32 2131351028, %v1771
        %v1778 = vor.u32 %v1776, %v1777
        %v1779 = vshll.u32 2131351028, %v1770
        %v1780 = vshrl.u32 2102212464, %v1771
        %v1781 = vor.u32 %v1779, %v1780
        %v1782 = vshll.u32 2102212464, %v1770
        %v1783 = vshrl.u32 920167782, %v1771
        %v1784 = vor.u32 %v1782, %v1783
        %v1785 = vshll.u32 920167782, %v1770
        %v1786 = vshrl.u32 1326507024, %v1771
        %v1787 = vor.u32 %v1785, %v1786
        %vm1788 = vcmp.lt.s32.totalorder %v1769, 1
        %vm1789 = vcmp.lt.s32.totalorder %v1769, 2
        %vm1790 = vcmp.lt.s32.totalorder %v1769, 3
        %vm1791 = vcmp.lt.s32.totalorder %v1769, 4
        %v1792 = vsel %vm1788, %v1772, %v1775
        %v1793 = vsel %vm1791, %v1781, 2102212464
        %v1794 = vsel %vm1790, %v1778, %v1793
        %v1795 = vsel %vm1789, %v1792, %v1794
        %v1796 = vsel %vm1788, %v1775, %v1778
        %v1797 = vsel %vm1791, %v1784, 920167782
        %v1798 = vsel %vm1790, %v1781, %v1797
        %v1799 = vsel %vm1789, %v1796, %v1798
        %v1800 = vsel %vm1788, %v1778, %v1781
        %v1801 = vsel %vm1791, %v1787, 1326507024
        %v1802 = vsel %vm1790, %v1784, %v1801
        %v1803 = vsel %vm1789, %v1800, %v1802
        %v1804 = vshll.u32 %v1764, 8
        %v1805 = vmul.u32.u64.compose %v1804, %v1803
        %v1806 = vextract.low.u32 %v1805
        %v1807 = vextract.high.u32 %v1805
        %v1808 = vmul.u32.u64.compose %v1804, %v1799
        %v1809 = vextract.low.u32 %v1808
        %v1810 = vextract.high.u32 %v1808
        %v1811 = vmul.u32 %v1804, %v1795
        %v1812 = vadd.s32 %v1807, %v1809
        %vm1813 = vc.u32 %v1807, %v1809
        %v1814 = vadd.s32 %v1810, 1
        %v1815 = vsel %vm1813, %v1814, %v1810
        %v1816 = vadd.s32 %v1811, %v1815
        %v1817 = vadd.s32 %v1816, 536870912
        %v1818 = vshrl.u32 %v1817, 30
        %v1819 = vshll.u32 %v1818, 30
        %v1820 = vsub.s32 %v1816, %v1819
        %vm1821 = vcmp.lt.s32.totalorder %v1820, 0
        %v1822 = vsub.s32 0, %v1820
        %v1823 = vsel %vm1821, %v1822, %v1820
        %v1824 = vclz %v1823
        %v1825 = vsub.s32 %v1824, 2
        %vm1826 = vcmp.gt.s32.totalorder 0, %v1825
        %v1827 = vsel %vm1826, 0, %v1825
        %v1828 = vsub.s32 32, %v1827
        %v1829 = vshll.u32 %v1820, %v1827
        %v1830 = vshrl.u32 %v1812, %v1828
        %v1831 = vor.u32 %v1829, %v1830
        %v1832 = vsub.s32 4294967266, %v1827
        %v1833 = vadd.s32 %v1832, 127
        %v1834 = vshll.u32 %v1833, 23
        %v1835 = vor.u32 4788187, %v1834
        %v1836 = vand.u32 2147483647, %v1835
        %v1838 = vcvt.s32.f32 %v1831
        %v1839 = vmul.f32 %v1838, %v1836
        %v1840 = vxor.u32 %v1839, 2147483648
        %v1841 = vsel %vm1758, %v1840, %v1839
        %v1842 = vsub.s32 4, %v1818
        %v1843 = vsel %vm1758, %v1842, %v1818
        %v1844 = vsel %vm1757, %v1678, %v1841
        %v1845 = vsel %vm1757, 0, %v1843
        %v1846 = vcosq.f32.pop %v1844
        %v1847 = vsinq.f32.pop %v1844
        %vm1848 = vweird.f32 %v1678
        %v1849 = vadd.s32 %v1845, 3
        %v1850 = vand.u32 %v1849, 3
        %vm1851 = vcmp.lt.s32.totalorder %v1850, 2
        %vm1852 = vcmp.eq.s32.totalorder %v1850, 0
        %v1853 = vxor.u32 %v1847, 2147483648
        %v1854 = vsel %vm1852, %v1846, %v1853
        %vm1855 = vcmp.eq.s32.totalorder %v1850, 2
        %v1856 = vxor.u32 %v1846, 2147483648
        %v1857 = vsel %vm1855, %v1856, %v1847
        %v1858 = vsel %vm1851, %v1854, %v1857
        %v1859 = vsel %vm1848, nan, %v1858
        %v1860 = vand.u32 2147483647, %v1683
        %vm1861 = vcmp.le.f32.partialorder %v1860, 0.7853982
        %vm1862 = vcmp.lt.s32.totalorder %v1683, 0
        %v1863 = vand.u32 %v1683, 2139095040
        %v1864 = vshrl.u32 %v1863, 23
        %v1865 = vsub.s32 %v1864, 127
        %v1866 = vand.u32 2147483647, %v1683
        %v1867 = vand.u32 %v1866, 8388607
        %v1868 = vor.u32 %v1867, 8388608
        %v1869 = vsub.s32 0, %v1868
        %v1870 = vadd.s32 %v1865, 1
        %vm1871 = vcmp.gt.s32.totalorder %v1870, 0
        %v1872 = vsel %vm1871, %v1870, 0
        %v1873 = vshrl.u32 %v1872, 5
        %v1874 = vand.u32 %v1872, 31
        %v1875 = vsub.s32 32, %v1874
        %v1876 = vshrl.u32 683565275, %v1875
        %v1877 = vshll.u32 683565275, %v1874
        %v1878 = vshrl.u32 2475754826, %v1875
        %v1879 = vor.u32 %v1877, %v1878
        %v1880 = vshll.u32 2475754826, %v1874
        %v1881 = vshrl.u32 2131351028, %v1875
        %v1882 = vor.u32 %v1880, %v1881
        %v1883 = vshll.u32 2131351028, %v1874
        %v1884 = vshrl.u32 2102212464, %v1875
        %v1885 = vor.u32 %v1883, %v1884
        %v1886 = vshll.u32 2102212464, %v1874
        %v1887 = vshrl.u32 920167782, %v1875
        %v1888 = vor.u32 %v1886, %v1887
        %v1889 = vshll.u32 920167782, %v1874
        %v1890 = vshrl.u32 1326507024, %v1875
        %v1891 = vor.u32 %v1889, %v1890
        %vm1892 = vcmp.lt.s32.totalorder %v1873, 1
        %vm1893 = vcmp.lt.s32.totalorder %v1873, 2
        %vm1894 = vcmp.lt.s32.totalorder %v1873, 3
        %vm1895 = vcmp.lt.s32.totalorder %v1873, 4
        %v1896 = vsel %vm1892, %v1876, %v1879
        %v1897 = vsel %vm1895, %v1885, 2102212464
        %v1898 = vsel %vm1894, %v1882, %v1897
        %v1899 = vsel %vm1893, %v1896, %v1898
        %v1900 = vsel %vm1892, %v1879, %v1882
        %v1901 = vsel %vm1895, %v1888, 920167782
        %v1902 = vsel %vm1894, %v1885, %v1901
        %v1903 = vsel %vm1893, %v1900, %v1902
        %v1904 = vsel %vm1892, %v1882, %v1885
        %v1905 = vsel %vm1895, %v1891, 1326507024
        %v1906 = vsel %vm1894, %v1888, %v1905
        %v1907 = vsel %vm1893, %v1904, %v1906
        %v1908 = vshll.u32 %v1868, 8
        %v1909 = vmul.u32.u64.compose %v1908, %v1907
        %v1910 = vextract.low.u32 %v1909
        %v1911 = vextract.high.u32 %v1909
        %v1912 = vmul.u32.u64.compose %v1908, %v1903
        %v1913 = vextract.low.u32 %v1912
        %v1914 = vextract.high.u32 %v1912
        %v1915 = vmul.u32 %v1908, %v1899
        %v1916 = vadd.s32 %v1911, %v1913
        %vm1917 = vc.u32 %v1911, %v1913
        %v1918 = vadd.s32 %v1914, 1
        %v1919 = vsel %vm1917, %v1918, %v1914
        %v1920 = vadd.s32 %v1915, %v1919
        %v1921 = vadd.s32 %v1920, 536870912
        %v1922 = vshrl.u32 %v1921, 30
        %v1923 = vshll.u32 %v1922, 30
        %v1924 = vsub.s32 %v1920, %v1923
        %vm1925 = vcmp.lt.s32.totalorder %v1924, 0
        %v1926 = vsub.s32 0, %v1924
        %v1927 = vsel %vm1925, %v1926, %v1924
        %v1928 = vclz %v1927
        %v1929 = vsub.s32 %v1928, 2
        %vm1930 = vcmp.gt.s32.totalorder 0, %v1929
        %v1931 = vsel %vm1930, 0, %v1929
        %v1932 = vsub.s32 32, %v1931
        %v1933 = vshll.u32 %v1924, %v1931
        %v1934 = vshrl.u32 %v1916, %v1932
        %v1935 = vor.u32 %v1933, %v1934
        %v1936 = vsub.s32 4294967266, %v1931
        %v1937 = vadd.s32 %v1936, 127
        %v1938 = vshll.u32 %v1937, 23
        %v1939 = vor.u32 4788187, %v1938
        %v1940 = vand.u32 2147483647, %v1939
        %v1942 = vcvt.s32.f32 %v1935
        %v1943 = vmul.f32 %v1942, %v1940
        %v1944 = vxor.u32 %v1943, 2147483648
        %v1945 = vsel %vm1862, %v1944, %v1943
        %v1946 = vsub.s32 4, %v1922
        %v1947 = vsel %vm1862, %v1946, %v1922
        %v1948 = vsel %vm1861, %v1683, %v1945
        %v1949 = vsel %vm1861, 0, %v1947
        %v1950 = vcosq.f32.pop %v1948
        %v1951 = vsinq.f32.pop %v1948
        %vm1952 = vweird.f32 %v1683
        %v1953 = vadd.s32 %v1949, 3
        %v1954 = vand.u32 %v1953, 3
        %vm1955 = vcmp.lt.s32.totalorder %v1954, 2
        %vm1956 = vcmp.eq.s32.totalorder %v1954, 0
        %v1957 = vxor.u32 %v1951, 2147483648
        %v1958 = vsel %vm1956, %v1950, %v1957
        %vm1959 = vcmp.eq.s32.totalorder %v1954, 2
        %v1960 = vxor.u32 %v1950, 2147483648
        %v1961 = vsel %vm1959, %v1960, %v1951
        %v1962 = vsel %vm1955, %v1958, %v1961
        %v1963 = vsel %vm1952, nan, %v1962
        %v1964 = vand.u32 2147483647, %v1688
        %vm1965 = vcmp.le.f32.partialorder %v1964, 0.7853982
        %vm1966 = vcmp.lt.s32.totalorder %v1688, 0
        %v1967 = vand.u32 %v1688, 2139095040
        %v1968 = vshrl.u32 %v1967, 23
        %v1969 = vsub.s32 %v1968, 127
        %v1970 = vand.u32 2147483647, %v1688
        %v1971 = vand.u32 %v1970, 8388607
        %v1972 = vor.u32 %v1971, 8388608
        %v1973 = vsub.s32 0, %v1972
        %v1974 = vadd.s32 %v1969, 1
        %vm1975 = vcmp.gt.s32.totalorder %v1974, 0
        %v1976 = vsel %vm1975, %v1974, 0
        %v1977 = vshrl.u32 %v1976, 5
        %v1978 = vand.u32 %v1976, 31
        %v1979 = vsub.s32 32, %v1978
        %v1980 = vshrl.u32 683565275, %v1979
        %v1981 = vshll.u32 683565275, %v1978
        %v1982 = vshrl.u32 2475754826, %v1979
        %v1983 = vor.u32 %v1981, %v1982
        %v1984 = vshll.u32 2475754826, %v1978
        %v1985 = vshrl.u32 2131351028, %v1979
        %v1986 = vor.u32 %v1984, %v1985
        %v1987 = vshll.u32 2131351028, %v1978
        %v1988 = vshrl.u32 2102212464, %v1979
        %v1989 = vor.u32 %v1987, %v1988
        %v1990 = vshll.u32 2102212464, %v1978
        %v1991 = vshrl.u32 920167782, %v1979
        %v1992 = vor.u32 %v1990, %v1991
        %v1993 = vshll.u32 920167782, %v1978
        %v1994 = vshrl.u32 1326507024, %v1979
        %v1995 = vor.u32 %v1993, %v1994
        %vm1996 = vcmp.lt.s32.totalorder %v1977, 1
        %vm1997 = vcmp.lt.s32.totalorder %v1977, 2
        %vm1998 = vcmp.lt.s32.totalorder %v1977, 3
        %vm1999 = vcmp.lt.s32.totalorder %v1977, 4
        %v2000 = vsel %vm1996, %v1980, %v1983
        %v2001 = vsel %vm1999, %v1989, 2102212464
        %v2002 = vsel %vm1998, %v1986, %v2001
        %v2003 = vsel %vm1997, %v2000, %v2002
        %v2004 = vsel %vm1996, %v1983, %v1986
        %v2005 = vsel %vm1999, %v1992, 920167782
        %v2006 = vsel %vm1998, %v1989, %v2005
        %v2007 = vsel %vm1997, %v2004, %v2006
        %v2008 = vsel %vm1996, %v1986, %v1989
        %v2009 = vsel %vm1999, %v1995, 1326507024
        %v2010 = vsel %vm1998, %v1992, %v2009
        %v2011 = vsel %vm1997, %v2008, %v2010
        %v2012 = vshll.u32 %v1972, 8
        %v2013 = vmul.u32.u64.compose %v2012, %v2011
        %v2014 = vextract.low.u32 %v2013
        %v2015 = vextract.high.u32 %v2013
        %v2016 = vmul.u32.u64.compose %v2012, %v2007
        %v2017 = vextract.low.u32 %v2016
        %v2018 = vextract.high.u32 %v2016
        %v2019 = vmul.u32 %v2012, %v2003
        %v2020 = vadd.s32 %v2015, %v2017
        %vm2021 = vc.u32 %v2015, %v2017
        %v2022 = vadd.s32 %v2018, 1
        %v2023 = vsel %vm2021, %v2022, %v2018
        %v2024 = vadd.s32 %v2019, %v2023
        %v2025 = vadd.s32 %v2024, 536870912
        %v2026 = vshrl.u32 %v2025, 30
        %v2027 = vshll.u32 %v2026, 30
        %v2028 = vsub.s32 %v2024, %v2027
        %vm2029 = vcmp.lt.s32.totalorder %v2028, 0
        %v2030 = vsub.s32 0, %v2028
        %v2031 = vsel %vm2029, %v2030, %v2028
        %v2032 = vclz %v2031
        %v2033 = vsub.s32 %v2032, 2
        %vm2034 = vcmp.gt.s32.totalorder 0, %v2033
        %v2035 = vsel %vm2034, 0, %v2033
        %v2036 = vsub.s32 32, %v2035
        %v2037 = vshll.u32 %v2028, %v2035
        %v2038 = vshrl.u32 %v2020, %v2036
        %v2039 = vor.u32 %v2037, %v2038
        %v2040 = vsub.s32 4294967266, %v2035
        %v2041 = vadd.s32 %v2040, 127
        %v2042 = vshll.u32 %v2041, 23
        %v2043 = vor.u32 4788187, %v2042
        %v2044 = vand.u32 2147483647, %v2043
        %v2046 = vcvt.s32.f32 %v2039
        %v2047 = vmul.f32 %v2046, %v2044
        %v2048 = vxor.u32 %v2047, 2147483648
        %v2049 = vsel %vm1966, %v2048, %v2047
        %v2050 = vsub.s32 4, %v2026
        %v2051 = vsel %vm1966, %v2050, %v2026
        %v2052 = vsel %vm1965, %v1688, %v2049
        %v2053 = vsel %vm1965, 0, %v2051
        %v2054 = vcosq.f32.pop %v2052
        %v2055 = vsinq.f32.pop %v2052
        %vm2056 = vweird.f32 %v1688
        %v2057 = vadd.s32 %v2053, 3
        %v2058 = vand.u32 %v2057, 3
        %vm2059 = vcmp.lt.s32.totalorder %v2058, 2
        %vm2060 = vcmp.eq.s32.totalorder %v2058, 0
        %v2061 = vxor.u32 %v2055, 2147483648
        %v2062 = vsel %vm2060, %v2054, %v2061
        %vm2063 = vcmp.eq.s32.totalorder %v2058, 2
        %v2064 = vxor.u32 %v2054, 2147483648
        %v2065 = vsel %vm2063, %v2064, %v2055
        %v2066 = vsel %vm2059, %v2062, %v2065
        %v2067 = vsel %vm2056, nan, %v2066
        %v2068 = vand.u32 2147483647, %v1693
        %vm2069 = vcmp.le.f32.partialorder %v2068, 0.7853982
        %vm2070 = vcmp.lt.s32.totalorder %v1693, 0
        %v2071 = vand.u32 %v1693, 2139095040
        %v2072 = vshrl.u32 %v2071, 23
        %v2073 = vsub.s32 %v2072, 127
        %v2074 = vand.u32 2147483647, %v1693
        %v2075 = vand.u32 %v2074, 8388607
        %v2076 = vor.u32 %v2075, 8388608
        %v2077 = vsub.s32 0, %v2076
        %v2078 = vadd.s32 %v2073, 1
        %vm2079 = vcmp.gt.s32.totalorder %v2078, 0
        %v2080 = vsel %vm2079, %v2078, 0
        %v2081 = vshrl.u32 %v2080, 5
        %v2082 = vand.u32 %v2080, 31
        %v2083 = vsub.s32 32, %v2082
        %v2084 = vshrl.u32 683565275, %v2083
        %v2085 = vshll.u32 683565275, %v2082
        %v2086 = vshrl.u32 2475754826, %v2083
        %v2087 = vor.u32 %v2085, %v2086
        %v2088 = vshll.u32 2475754826, %v2082
        %v2089 = vshrl.u32 2131351028, %v2083
        %v2090 = vor.u32 %v2088, %v2089
        %v2091 = vshll.u32 2131351028, %v2082
        %v2092 = vshrl.u32 2102212464, %v2083
        %v2093 = vor.u32 %v2091, %v2092
        %v2094 = vshll.u32 2102212464, %v2082
        %v2095 = vshrl.u32 920167782, %v2083
        %v2096 = vor.u32 %v2094, %v2095
        %v2097 = vshll.u32 920167782, %v2082
        %v2098 = vshrl.u32 1326507024, %v2083
        %v2099 = vor.u32 %v2097, %v2098
        %vm2100 = vcmp.lt.s32.totalorder %v2081, 1
        %vm2101 = vcmp.lt.s32.totalorder %v2081, 2
        %vm2102 = vcmp.lt.s32.totalorder %v2081, 3
        %vm2103 = vcmp.lt.s32.totalorder %v2081, 4
        %v2104 = vsel %vm2100, %v2084, %v2087
        %v2105 = vsel %vm2103, %v2093, 2102212464
        %v2106 = vsel %vm2102, %v2090, %v2105
        %v2107 = vsel %vm2101, %v2104, %v2106
        %v2108 = vsel %vm2100, %v2087, %v2090
        %v2109 = vsel %vm2103, %v2096, 920167782
        %v2110 = vsel %vm2102, %v2093, %v2109
        %v2111 = vsel %vm2101, %v2108, %v2110
        %v2112 = vsel %vm2100, %v2090, %v2093
        %v2113 = vsel %vm2103, %v2099, 1326507024
        %v2114 = vsel %vm2102, %v2096, %v2113
        %v2115 = vsel %vm2101, %v2112, %v2114
        %v2116 = vshll.u32 %v2076, 8
        %v2117 = vmul.u32.u64.compose %v2116, %v2115
        %v2118 = vextract.low.u32 %v2117
        %v2119 = vextract.high.u32 %v2117
        %v2120 = vmul.u32.u64.compose %v2116, %v2111
        %v2121 = vextract.low.u32 %v2120
        %v2122 = vextract.high.u32 %v2120
        %v2123 = vmul.u32 %v2116, %v2107
        %v2124 = vadd.s32 %v2119, %v2121
        %vm2125 = vc.u32 %v2119, %v2121
        %v2126 = vadd.s32 %v2122, 1
        %v2127 = vsel %vm2125, %v2126, %v2122
        %v2128 = vadd.s32 %v2123, %v2127
        %v2129 = vadd.s32 %v2128, 536870912
        %v2130 = vshrl.u32 %v2129, 30
        %v2131 = vshll.u32 %v2130, 30
        %v2132 = vsub.s32 %v2128, %v2131
        %vm2133 = vcmp.lt.s32.totalorder %v2132, 0
        %v2134 = vsub.s32 0, %v2132
        %v2135 = vsel %vm2133, %v2134, %v2132
        %v2136 = vclz %v2135
        %v2137 = vsub.s32 %v2136, 2
        %vm2138 = vcmp.gt.s32.totalorder 0, %v2137
        %v2139 = vsel %vm2138, 0, %v2137
        %v2140 = vsub.s32 32, %v2139
        %v2141 = vshll.u32 %v2132, %v2139
        %v2142 = vshrl.u32 %v2124, %v2140
        %v2143 = vor.u32 %v2141, %v2142
        %v2144 = vsub.s32 4294967266, %v2139
        %v2145 = vadd.s32 %v2144, 127
        %v2146 = vshll.u32 %v2145, 23
        %v2147 = vor.u32 4788187, %v2146
        %v2148 = vand.u32 2147483647, %v2147
        %v2150 = vcvt.s32.f32 %v2143
        %v2151 = vmul.f32 %v2150, %v2148
        %v2152 = vxor.u32 %v2151, 2147483648
        %v2153 = vsel %vm2070, %v2152, %v2151
        %v2154 = vsub.s32 4, %v2130
        %v2155 = vsel %vm2070, %v2154, %v2130
        %v2156 = vsel %vm2069, %v1693, %v2153
        %v2157 = vsel %vm2069, 0, %v2155
        %v2158 = vcosq.f32.pop %v2156
        %v2159 = vsinq.f32.pop %v2156
        %vm2160 = vweird.f32 %v1693
        %v2161 = vadd.s32 %v2157, 3
        %v2162 = vand.u32 %v2161, 3
        %vm2163 = vcmp.lt.s32.totalorder %v2162, 2
        %vm2164 = vcmp.eq.s32.totalorder %v2162, 0
        %v2165 = vxor.u32 %v2159, 2147483648
        %v2166 = vsel %vm2164, %v2158, %v2165
        %vm2167 = vcmp.eq.s32.totalorder %v2162, 2
        %v2168 = vxor.u32 %v2158, 2147483648
        %v2169 = vsel %vm2167, %v2168, %v2159
        %v2170 = vsel %vm2163, %v2166, %v2169
        %v2171 = vsel %vm2160, nan, %v2170
        %v2172 = vand.u32 2147483647, %v1698
        %vm2173 = vcmp.le.f32.partialorder %v2172, 0.7853982
        %vm2174 = vcmp.lt.s32.totalorder %v1698, 0
        %v2175 = vand.u32 %v1698, 2139095040
        %v2176 = vshrl.u32 %v2175, 23
        %v2177 = vsub.s32 %v2176, 127
        %v2178 = vand.u32 2147483647, %v1698
        %v2179 = vand.u32 %v2178, 8388607
        %v2180 = vor.u32 %v2179, 8388608
        %v2181 = vsub.s32 0, %v2180
        %v2182 = vadd.s32 %v2177, 1
        %vm2183 = vcmp.gt.s32.totalorder %v2182, 0
        %v2184 = vsel %vm2183, %v2182, 0
        %v2185 = vshrl.u32 %v2184, 5
        %v2186 = vand.u32 %v2184, 31
        %v2187 = vsub.s32 32, %v2186
        %v2188 = vshrl.u32 683565275, %v2187
        %v2189 = vshll.u32 683565275, %v2186
        %v2190 = vshrl.u32 2475754826, %v2187
        %v2191 = vor.u32 %v2189, %v2190
        %v2192 = vshll.u32 2475754826, %v2186
        %v2193 = vshrl.u32 2131351028, %v2187
        %v2194 = vor.u32 %v2192, %v2193
        %v2195 = vshll.u32 2131351028, %v2186
        %v2196 = vshrl.u32 2102212464, %v2187
        %v2197 = vor.u32 %v2195, %v2196
        %v2198 = vshll.u32 2102212464, %v2186
        %v2199 = vshrl.u32 920167782, %v2187
        %v2200 = vor.u32 %v2198, %v2199
        %v2201 = vshll.u32 920167782, %v2186
        %v2202 = vshrl.u32 1326507024, %v2187
        %v2203 = vor.u32 %v2201, %v2202
        %vm2204 = vcmp.lt.s32.totalorder %v2185, 1
        %vm2205 = vcmp.lt.s32.totalorder %v2185, 2
        %vm2206 = vcmp.lt.s32.totalorder %v2185, 3
        %vm2207 = vcmp.lt.s32.totalorder %v2185, 4
        %v2208 = vsel %vm2204, %v2188, %v2191
        %v2209 = vsel %vm2207, %v2197, 2102212464
        %v2210 = vsel %vm2206, %v2194, %v2209
        %v2211 = vsel %vm2205, %v2208, %v2210
        %v2212 = vsel %vm2204, %v2191, %v2194
        %v2213 = vsel %vm2207, %v2200, 920167782
        %v2214 = vsel %vm2206, %v2197, %v2213
        %v2215 = vsel %vm2205, %v2212, %v2214
        %v2216 = vsel %vm2204, %v2194, %v2197
        %v2217 = vsel %vm2207, %v2203, 1326507024
        %v2218 = vsel %vm2206, %v2200, %v2217
        %v2219 = vsel %vm2205, %v2216, %v2218
        %v2220 = vshll.u32 %v2180, 8
        %v2221 = vmul.u32.u64.compose %v2220, %v2219
        %v2222 = vextract.low.u32 %v2221
        %v2223 = vextract.high.u32 %v2221
        %v2224 = vmul.u32.u64.compose %v2220, %v2215
        %v2225 = vextract.low.u32 %v2224
        %v2226 = vextract.high.u32 %v2224
        %v2227 = vmul.u32 %v2220, %v2211
        %v2228 = vadd.s32 %v2223, %v2225
        %vm2229 = vc.u32 %v2223, %v2225
        %v2230 = vadd.s32 %v2226, 1
        %v2231 = vsel %vm2229, %v2230, %v2226
        %v2232 = vadd.s32 %v2227, %v2231
        %v2233 = vadd.s32 %v2232, 536870912
        %v2234 = vshrl.u32 %v2233, 30
        %v2235 = vshll.u32 %v2234, 30
        %v2236 = vsub.s32 %v2232, %v2235
        %vm2237 = vcmp.lt.s32.totalorder %v2236, 0
        %v2238 = vsub.s32 0, %v2236
        %v2239 = vsel %vm2237, %v2238, %v2236
        %v2240 = vclz %v2239
        %v2241 = vsub.s32 %v2240, 2
        %vm2242 = vcmp.gt.s32.totalorder 0, %v2241
        %v2243 = vsel %vm2242, 0, %v2241
        %v2244 = vsub.s32 32, %v2243
        %v2245 = vshll.u32 %v2236, %v2243
        %v2246 = vshrl.u32 %v2228, %v2244
        %v2247 = vor.u32 %v2245, %v2246
        %v2248 = vsub.s32 4294967266, %v2243
        %v2249 = vadd.s32 %v2248, 127
        %v2250 = vshll.u32 %v2249, 23
        %v2251 = vor.u32 4788187, %v2250
        %v2252 = vand.u32 2147483647, %v2251
        %v2254 = vcvt.s32.f32 %v2247
        %v2255 = vmul.f32 %v2254, %v2252
        %v2256 = vxor.u32 %v2255, 2147483648
        %v2257 = vsel %vm2174, %v2256, %v2255
        %v2258 = vsub.s32 4, %v2234
        %v2259 = vsel %vm2174, %v2258, %v2234
        %v2260 = vsel %vm2173, %v1698, %v2257
        %v2261 = vsel %vm2173, 0, %v2259
        %v2262 = vcosq.f32.pop %v2260
        %v2263 = vsinq.f32.pop %v2260
        %vm2264 = vweird.f32 %v1698
        %v2265 = vadd.s32 %v2261, 3
        %v2266 = vand.u32 %v2265, 3
        %vm2267 = vcmp.lt.s32.totalorder %v2266, 2
        %vm2268 = vcmp.eq.s32.totalorder %v2266, 0
        %v2269 = vxor.u32 %v2263, 2147483648
        %v2270 = vsel %vm2268, %v2262, %v2269
        %vm2271 = vcmp.eq.s32.totalorder %v2266, 2
        %v2272 = vxor.u32 %v2262, 2147483648
        %v2273 = vsel %vm2271, %v2272, %v2263
        %v2274 = vsel %vm2267, %v2270, %v2273
        %v2275 = vsel %vm2264, nan, %v2274
        %v2276 = vand.u32 2147483647, %v1703
        %vm2277 = vcmp.le.f32.partialorder %v2276, 0.7853982
        %vm2278 = vcmp.lt.s32.totalorder %v1703, 0
        %v2279 = vand.u32 %v1703, 2139095040
        %v2280 = vshrl.u32 %v2279, 23
        %v2281 = vsub.s32 %v2280, 127
        %v2282 = vand.u32 2147483647, %v1703
        %v2283 = vand.u32 %v2282, 8388607
        %v2284 = vor.u32 %v2283, 8388608
        %v2285 = vsub.s32 0, %v2284
        %v2286 = vadd.s32 %v2281, 1
        %vm2287 = vcmp.gt.s32.totalorder %v2286, 0
        %v2288 = vsel %vm2287, %v2286, 0
        %v2289 = vshrl.u32 %v2288, 5
        %v2290 = vand.u32 %v2288, 31
        %v2291 = vsub.s32 32, %v2290
        %v2292 = vshrl.u32 683565275, %v2291
        %v2293 = vshll.u32 683565275, %v2290
        %v2294 = vshrl.u32 2475754826, %v2291
        %v2295 = vor.u32 %v2293, %v2294
        %v2296 = vshll.u32 2475754826, %v2290
        %v2297 = vshrl.u32 2131351028, %v2291
        %v2298 = vor.u32 %v2296, %v2297
        %v2299 = vshll.u32 2131351028, %v2290
        %v2300 = vshrl.u32 2102212464, %v2291
        %v2301 = vor.u32 %v2299, %v2300
        %v2302 = vshll.u32 2102212464, %v2290
        %v2303 = vshrl.u32 920167782, %v2291
        %v2304 = vor.u32 %v2302, %v2303
        %v2305 = vshll.u32 920167782, %v2290
        %v2306 = vshrl.u32 1326507024, %v2291
        %v2307 = vor.u32 %v2305, %v2306
        %vm2308 = vcmp.lt.s32.totalorder %v2289, 1
        %vm2309 = vcmp.lt.s32.totalorder %v2289, 2
        %vm2310 = vcmp.lt.s32.totalorder %v2289, 3
        %vm2311 = vcmp.lt.s32.totalorder %v2289, 4
        %v2312 = vsel %vm2308, %v2292, %v2295
        %v2313 = vsel %vm2311, %v2301, 2102212464
        %v2314 = vsel %vm2310, %v2298, %v2313
        %v2315 = vsel %vm2309, %v2312, %v2314
        %v2316 = vsel %vm2308, %v2295, %v2298
        %v2317 = vsel %vm2311, %v2304, 920167782
        %v2318 = vsel %vm2310, %v2301, %v2317
        %v2319 = vsel %vm2309, %v2316, %v2318
        %v2320 = vsel %vm2308, %v2298, %v2301
        %v2321 = vsel %vm2311, %v2307, 1326507024
        %v2322 = vsel %vm2310, %v2304, %v2321
        %v2323 = vsel %vm2309, %v2320, %v2322
        %v2324 = vshll.u32 %v2284, 8
        %v2325 = vmul.u32.u64.compose %v2324, %v2323
        %v2326 = vextract.low.u32 %v2325
        %v2327 = vextract.high.u32 %v2325
        %v2328 = vmul.u32.u64.compose %v2324, %v2319
        %v2329 = vextract.low.u32 %v2328
        %v2330 = vextract.high.u32 %v2328
        %v2331 = vmul.u32 %v2324, %v2315
        %v2332 = vadd.s32 %v2327, %v2329
        %vm2333 = vc.u32 %v2327, %v2329
        %v2334 = vadd.s32 %v2330, 1
        %v2335 = vsel %vm2333, %v2334, %v2330
        %v2336 = vadd.s32 %v2331, %v2335
        %v2337 = vadd.s32 %v2336, 536870912
        %v2338 = vshrl.u32 %v2337, 30
        %v2339 = vshll.u32 %v2338, 30
        %v2340 = vsub.s32 %v2336, %v2339
        %vm2341 = vcmp.lt.s32.totalorder %v2340, 0
        %v2342 = vsub.s32 0, %v2340
        %v2343 = vsel %vm2341, %v2342, %v2340
        %v2344 = vclz %v2343
        %v2345 = vsub.s32 %v2344, 2
        %vm2346 = vcmp.gt.s32.totalorder 0, %v2345
        %v2347 = vsel %vm2346, 0, %v2345
        %v2348 = vsub.s32 32, %v2347
        %v2349 = vshll.u32 %v2340, %v2347
        %v2350 = vshrl.u32 %v2332, %v2348
        %v2351 = vor.u32 %v2349, %v2350
        %v2352 = vsub.s32 4294967266, %v2347
        %v2353 = vadd.s32 %v2352, 127
        %v2354 = vshll.u32 %v2353, 23
        %v2355 = vor.u32 4788187, %v2354
        %v2356 = vand.u32 2147483647, %v2355
        %v2358 = vcvt.s32.f32 %v2351
        %v2359 = vmul.f32 %v2358, %v2356
        %v2360 = vxor.u32 %v2359, 2147483648
        %v2361 = vsel %vm2278, %v2360, %v2359
        %v2362 = vsub.s32 4, %v2338
        %v2363 = vsel %vm2278, %v2362, %v2338
        %v2364 = vsel %vm2277, %v1703, %v2361
        %v2365 = vsel %vm2277, 0, %v2363
        %v2366 = vcosq.f32.pop %v2364
        %v2367 = vsinq.f32.pop %v2364
        %vm2368 = vweird.f32 %v1703
        %v2369 = vadd.s32 %v2365, 3
        %v2370 = vand.u32 %v2369, 3
        %vm2371 = vcmp.lt.s32.totalorder %v2370, 2
        %vm2372 = vcmp.eq.s32.totalorder %v2370, 0
        %v2373 = vxor.u32 %v2367, 2147483648
        %v2374 = vsel %vm2372, %v2366, %v2373
        %vm2375 = vcmp.eq.s32.totalorder %v2370, 2
        %v2376 = vxor.u32 %v2366, 2147483648
        %v2377 = vsel %vm2375, %v2376, %v2367
        %v2378 = vsel %vm2371, %v2374, %v2377
        %v2379 = vsel %vm2368, nan, %v2378
        %v2380 = vand.u32 2147483647, %v1708
        %vm2381 = vcmp.le.f32.partialorder %v2380, 0.7853982
        %vm2382 = vcmp.lt.s32.totalorder %v1708, 0
        %v2383 = vand.u32 %v1708, 2139095040
        %v2384 = vshrl.u32 %v2383, 23
        %v2385 = vsub.s32 %v2384, 127
        %v2386 = vand.u32 2147483647, %v1708
        %v2387 = vand.u32 %v2386, 8388607
        %v2388 = vor.u32 %v2387, 8388608
        %v2389 = vsub.s32 0, %v2388
        %v2390 = vadd.s32 %v2385, 1
        %vm2391 = vcmp.gt.s32.totalorder %v2390, 0
        %v2392 = vsel %vm2391, %v2390, 0
        %v2393 = vshrl.u32 %v2392, 5
        %v2394 = vand.u32 %v2392, 31
        %v2395 = vsub.s32 32, %v2394
        %v2396 = vshrl.u32 683565275, %v2395
        %v2397 = vshll.u32 683565275, %v2394
        %v2398 = vshrl.u32 2475754826, %v2395
        %v2399 = vor.u32 %v2397, %v2398
        %v2400 = vshll.u32 2475754826, %v2394
        %v2401 = vshrl.u32 2131351028, %v2395
        %v2402 = vor.u32 %v2400, %v2401
        %v2403 = vshll.u32 2131351028, %v2394
        %v2404 = vshrl.u32 2102212464, %v2395
        %v2405 = vor.u32 %v2403, %v2404
        %v2406 = vshll.u32 2102212464, %v2394
        %v2407 = vshrl.u32 920167782, %v2395
        %v2408 = vor.u32 %v2406, %v2407
        %v2409 = vshll.u32 920167782, %v2394
        %v2410 = vshrl.u32 1326507024, %v2395
        %v2411 = vor.u32 %v2409, %v2410
        %vm2412 = vcmp.lt.s32.totalorder %v2393, 1
        %vm2413 = vcmp.lt.s32.totalorder %v2393, 2
        %vm2414 = vcmp.lt.s32.totalorder %v2393, 3
        %vm2415 = vcmp.lt.s32.totalorder %v2393, 4
        %v2416 = vsel %vm2412, %v2396, %v2399
        %v2417 = vsel %vm2415, %v2405, 2102212464
        %v2418 = vsel %vm2414, %v2402, %v2417
        %v2419 = vsel %vm2413, %v2416, %v2418
        %v2420 = vsel %vm2412, %v2399, %v2402
        %v2421 = vsel %vm2415, %v2408, 920167782
        %v2422 = vsel %vm2414, %v2405, %v2421
        %v2423 = vsel %vm2413, %v2420, %v2422
        %v2424 = vsel %vm2412, %v2402, %v2405
        %v2425 = vsel %vm2415, %v2411, 1326507024
        %v2426 = vsel %vm2414, %v2408, %v2425
        %v2427 = vsel %vm2413, %v2424, %v2426
        %v2428 = vshll.u32 %v2388, 8
        %v2429 = vmul.u32.u64.compose %v2428, %v2427
        %v2430 = vextract.low.u32 %v2429
        %v2431 = vextract.high.u32 %v2429
        %v2432 = vmul.u32.u64.compose %v2428, %v2423
        %v2433 = vextract.low.u32 %v2432
        %v2434 = vextract.high.u32 %v2432
        %v2435 = vmul.u32 %v2428, %v2419
        %v2436 = vadd.s32 %v2431, %v2433
        %vm2437 = vc.u32 %v2431, %v2433
        %v2438 = vadd.s32 %v2434, 1
        %v2439 = vsel %vm2437, %v2438, %v2434
        %v2440 = vadd.s32 %v2435, %v2439
        %v2441 = vadd.s32 %v2440, 536870912
        %v2442 = vshrl.u32 %v2441, 30
        %v2443 = vshll.u32 %v2442, 30
        %v2444 = vsub.s32 %v2440, %v2443
        %vm2445 = vcmp.lt.s32.totalorder %v2444, 0
        %v2446 = vsub.s32 0, %v2444
        %v2447 = vsel %vm2445, %v2446, %v2444
        %v2448 = vclz %v2447
        %v2449 = vsub.s32 %v2448, 2
        %vm2450 = vcmp.gt.s32.totalorder 0, %v2449
        %v2451 = vsel %vm2450, 0, %v2449
        %v2452 = vsub.s32 32, %v2451
        %v2453 = vshll.u32 %v2444, %v2451
        %v2454 = vshrl.u32 %v2436, %v2452
        %v2455 = vor.u32 %v2453, %v2454
        %v2456 = vsub.s32 4294967266, %v2451
        %v2457 = vadd.s32 %v2456, 127
        %v2458 = vshll.u32 %v2457, 23
        %v2459 = vor.u32 4788187, %v2458
        %v2460 = vand.u32 2147483647, %v2459
        %v2462 = vcvt.s32.f32 %v2455
        %v2463 = vmul.f32 %v2462, %v2460
        %v2464 = vxor.u32 %v2463, 2147483648
        %v2465 = vsel %vm2382, %v2464, %v2463
        %v2466 = vsub.s32 4, %v2442
        %v2467 = vsel %vm2382, %v2466, %v2442
        %v2468 = vsel %vm2381, %v1708, %v2465
        %v2469 = vsel %vm2381, 0, %v2467
        %v2470 = vcosq.f32.pop %v2468
        %v2471 = vsinq.f32.pop %v2468
        %vm2472 = vweird.f32 %v1708
        %v2473 = vadd.s32 %v2469, 3
        %v2474 = vand.u32 %v2473, 3
        %vm2475 = vcmp.lt.s32.totalorder %v2474, 2
        %vm2476 = vcmp.eq.s32.totalorder %v2474, 0
        %v2477 = vxor.u32 %v2471, 2147483648
        %v2478 = vsel %vm2476, %v2470, %v2477
        %vm2479 = vcmp.eq.s32.totalorder %v2474, 2
        %v2480 = vxor.u32 %v2470, 2147483648
        %v2481 = vsel %vm2479, %v2480, %v2471
        %v2482 = vsel %vm2475, %v2478, %v2481
        %v2483 = vsel %vm2472, nan, %v2482
        %v2484 = vand.u32 2147483647, %v1713
        %vm2485 = vcmp.le.f32.partialorder %v2484, 0.7853982
        %vm2486 = vcmp.lt.s32.totalorder %v1713, 0
        %v2487 = vand.u32 %v1713, 2139095040
        %v2488 = vshrl.u32 %v2487, 23
        %v2489 = vsub.s32 %v2488, 127
        %v2490 = vand.u32 2147483647, %v1713
        %v2491 = vand.u32 %v2490, 8388607
        %v2492 = vor.u32 %v2491, 8388608
        %v2493 = vsub.s32 0, %v2492
        %v2494 = vadd.s32 %v2489, 1
        %vm2495 = vcmp.gt.s32.totalorder %v2494, 0
        %v2496 = vsel %vm2495, %v2494, 0
        %v2497 = vshrl.u32 %v2496, 5
        %v2498 = vand.u32 %v2496, 31
        %v2499 = vsub.s32 32, %v2498
        %v2500 = vshrl.u32 683565275, %v2499
        %v2501 = vshll.u32 683565275, %v2498
        %v2502 = vshrl.u32 2475754826, %v2499
        %v2503 = vor.u32 %v2501, %v2502
        %v2504 = vshll.u32 2475754826, %v2498
        %v2505 = vshrl.u32 2131351028, %v2499
        %v2506 = vor.u32 %v2504, %v2505
        %v2507 = vshll.u32 2131351028, %v2498
        %v2508 = vshrl.u32 2102212464, %v2499
        %v2509 = vor.u32 %v2507, %v2508
        %v2510 = vshll.u32 2102212464, %v2498
        %v2511 = vshrl.u32 920167782, %v2499
        %v2512 = vor.u32 %v2510, %v2511
        %v2513 = vshll.u32 920167782, %v2498
        %v2514 = vshrl.u32 1326507024, %v2499
        %v2515 = vor.u32 %v2513, %v2514
        %vm2516 = vcmp.lt.s32.totalorder %v2497, 1
        %vm2517 = vcmp.lt.s32.totalorder %v2497, 2
        %vm2518 = vcmp.lt.s32.totalorder %v2497, 3
        %vm2519 = vcmp.lt.s32.totalorder %v2497, 4
        %v2520 = vsel %vm2516, %v2500, %v2503
        %v2521 = vsel %vm2519, %v2509, 2102212464
        %v2522 = vsel %vm2518, %v2506, %v2521
        %v2523 = vsel %vm2517, %v2520, %v2522
        %v2524 = vsel %vm2516, %v2503, %v2506
        %v2525 = vsel %vm2519, %v2512, 920167782
        %v2526 = vsel %vm2518, %v2509, %v2525
        %v2527 = vsel %vm2517, %v2524, %v2526
        %v2528 = vsel %vm2516, %v2506, %v2509
        %v2529 = vsel %vm2519, %v2515, 1326507024
        %v2530 = vsel %vm2518, %v2512, %v2529
        %v2531 = vsel %vm2517, %v2528, %v2530
        %v2532 = vshll.u32 %v2492, 8
        %v2533 = vmul.u32.u64.compose %v2532, %v2531
        %v2534 = vextract.low.u32 %v2533
        %v2535 = vextract.high.u32 %v2533
        %v2536 = vmul.u32.u64.compose %v2532, %v2527
        %v2537 = vextract.low.u32 %v2536
        %v2538 = vextract.high.u32 %v2536
        %v2539 = vmul.u32 %v2532, %v2523
        %v2540 = vadd.s32 %v2535, %v2537
        %vm2541 = vc.u32 %v2535, %v2537
        %v2542 = vadd.s32 %v2538, 1
        %v2543 = vsel %vm2541, %v2542, %v2538
        %v2544 = vadd.s32 %v2539, %v2543
        %v2545 = vadd.s32 %v2544, 536870912
        %v2546 = vshrl.u32 %v2545, 30
        %v2547 = vshll.u32 %v2546, 30
        %v2548 = vsub.s32 %v2544, %v2547
        %vm2549 = vcmp.lt.s32.totalorder %v2548, 0
        %v2550 = vsub.s32 0, %v2548
        %v2551 = vsel %vm2549, %v2550, %v2548
        %v2552 = vclz %v2551
        %v2553 = vsub.s32 %v2552, 2
        %vm2554 = vcmp.gt.s32.totalorder 0, %v2553
        %v2555 = vsel %vm2554, 0, %v2553
        %v2556 = vsub.s32 32, %v2555
        %v2557 = vshll.u32 %v2548, %v2555
        %v2558 = vshrl.u32 %v2540, %v2556
        %v2559 = vor.u32 %v2557, %v2558
        %v2560 = vsub.s32 4294967266, %v2555
        %v2561 = vadd.s32 %v2560, 127
        %v2562 = vshll.u32 %v2561, 23
        %v2563 = vor.u32 4788187, %v2562
        %v2564 = vand.u32 2147483647, %v2563
        %v2566 = vcvt.s32.f32 %v2559
        %v2567 = vmul.f32 %v2566, %v2564
        %v2568 = vxor.u32 %v2567, 2147483648
        %v2569 = vsel %vm2486, %v2568, %v2567
        %v2570 = vsub.s32 4, %v2546
        %v2571 = vsel %vm2486, %v2570, %v2546
        %v2572 = vsel %vm2485, %v1713, %v2569
        %v2573 = vsel %vm2485, 0, %v2571
        %v2574 = vcosq.f32.pop %v2572
        %v2575 = vsinq.f32.pop %v2572
        %vm2576 = vweird.f32 %v1713
        %v2577 = vadd.s32 %v2573, 3
        %v2578 = vand.u32 %v2577, 3
        %vm2579 = vcmp.lt.s32.totalorder %v2578, 2
        %vm2580 = vcmp.eq.s32.totalorder %v2578, 0
        %v2581 = vxor.u32 %v2575, 2147483648
        %v2582 = vsel %vm2580, %v2574, %v2581
        %vm2583 = vcmp.eq.s32.totalorder %v2578, 2
        %v2584 = vxor.u32 %v2574, 2147483648
        %v2585 = vsel %vm2583, %v2584, %v2575
        %v2586 = vsel %vm2579, %v2582, %v2585
        %v2587 = vsel %vm2576, nan, %v2586
        %v2588 = vand.u32 2147483647, %v1718
        %vm2589 = vcmp.le.f32.partialorder %v2588, 0.7853982
        %vm2590 = vcmp.lt.s32.totalorder %v1718, 0
        %v2591 = vand.u32 %v1718, 2139095040
        %v2592 = vshrl.u32 %v2591, 23
        %v2593 = vsub.s32 %v2592, 127
        %v2594 = vand.u32 2147483647, %v1718
        %v2595 = vand.u32 %v2594, 8388607
        %v2596 = vor.u32 %v2595, 8388608
        %v2597 = vsub.s32 0, %v2596
        %v2598 = vadd.s32 %v2593, 1
        %vm2599 = vcmp.gt.s32.totalorder %v2598, 0
        %v2600 = vsel %vm2599, %v2598, 0
        %v2601 = vshrl.u32 %v2600, 5
        %v2602 = vand.u32 %v2600, 31
        %v2603 = vsub.s32 32, %v2602
        %v2604 = vshrl.u32 683565275, %v2603
        %v2605 = vshll.u32 683565275, %v2602
        %v2606 = vshrl.u32 2475754826, %v2603
        %v2607 = vor.u32 %v2605, %v2606
        %v2608 = vshll.u32 2475754826, %v2602
        %v2609 = vshrl.u32 2131351028, %v2603
        %v2610 = vor.u32 %v2608, %v2609
        %v2611 = vshll.u32 2131351028, %v2602
        %v2612 = vshrl.u32 2102212464, %v2603
        %v2613 = vor.u32 %v2611, %v2612
        %v2614 = vshll.u32 2102212464, %v2602
        %v2615 = vshrl.u32 920167782, %v2603
        %v2616 = vor.u32 %v2614, %v2615
        %v2617 = vshll.u32 920167782, %v2602
        %v2618 = vshrl.u32 1326507024, %v2603
        %v2619 = vor.u32 %v2617, %v2618
        %vm2620 = vcmp.lt.s32.totalorder %v2601, 1
        %vm2621 = vcmp.lt.s32.totalorder %v2601, 2
        %vm2622 = vcmp.lt.s32.totalorder %v2601, 3
        %vm2623 = vcmp.lt.s32.totalorder %v2601, 4
        %v2624 = vsel %vm2620, %v2604, %v2607
        %v2625 = vsel %vm2623, %v2613, 2102212464
        %v2626 = vsel %vm2622, %v2610, %v2625
        %v2627 = vsel %vm2621, %v2624, %v2626
        %v2628 = vsel %vm2620, %v2607, %v2610
        %v2629 = vsel %vm2623, %v2616, 920167782
        %v2630 = vsel %vm2622, %v2613, %v2629
        %v2631 = vsel %vm2621, %v2628, %v2630
        %v2632 = vsel %vm2620, %v2610, %v2613
        %v2633 = vsel %vm2623, %v2619, 1326507024
        %v2634 = vsel %vm2622, %v2616, %v2633
        %v2635 = vsel %vm2621, %v2632, %v2634
        %v2636 = vshll.u32 %v2596, 8
        %v2637 = vmul.u32.u64.compose %v2636, %v2635
        %v2638 = vextract.low.u32 %v2637
        %v2639 = vextract.high.u32 %v2637
        %v2640 = vmul.u32.u64.compose %v2636, %v2631
        %v2641 = vextract.low.u32 %v2640
        %v2642 = vextract.high.u32 %v2640
        %v2643 = vmul.u32 %v2636, %v2627
        %v2644 = vadd.s32 %v2639, %v2641
        %vm2645 = vc.u32 %v2639, %v2641
        %v2646 = vadd.s32 %v2642, 1
        %v2647 = vsel %vm2645, %v2646, %v2642
        %v2648 = vadd.s32 %v2643, %v2647
        %v2649 = vadd.s32 %v2648, 536870912
        %v2650 = vshrl.u32 %v2649, 30
        %v2651 = vshll.u32 %v2650, 30
        %v2652 = vsub.s32 %v2648, %v2651
        %vm2653 = vcmp.lt.s32.totalorder %v2652, 0
        %v2654 = vsub.s32 0, %v2652
        %v2655 = vsel %vm2653, %v2654, %v2652
        %v2656 = vclz %v2655
        %v2657 = vsub.s32 %v2656, 2
        %vm2658 = vcmp.gt.s32.totalorder 0, %v2657
        %v2659 = vsel %vm2658, 0, %v2657
        %v2660 = vsub.s32 32, %v2659
        %v2661 = vshll.u32 %v2652, %v2659
        %v2662 = vshrl.u32 %v2644, %v2660
        %v2663 = vor.u32 %v2661, %v2662
        %v2664 = vsub.s32 4294967266, %v2659
        %v2665 = vadd.s32 %v2664, 127
        %v2666 = vshll.u32 %v2665, 23
        %v2667 = vor.u32 4788187, %v2666
        %v2668 = vand.u32 2147483647, %v2667
        %v2670 = vcvt.s32.f32 %v2663
        %v2671 = vmul.f32 %v2670, %v2668
        %v2672 = vxor.u32 %v2671, 2147483648
        %v2673 = vsel %vm2590, %v2672, %v2671
        %v2674 = vsub.s32 4, %v2650
        %v2675 = vsel %vm2590, %v2674, %v2650
        %v2676 = vsel %vm2589, %v1718, %v2673
        %v2677 = vsel %vm2589, 0, %v2675
        %v2678 = vcosq.f32.pop %v2676
        %v2679 = vsinq.f32.pop %v2676
        %vm2680 = vweird.f32 %v1718
        %v2681 = vadd.s32 %v2677, 3
        %v2682 = vand.u32 %v2681, 3
        %vm2683 = vcmp.lt.s32.totalorder %v2682, 2
        %vm2684 = vcmp.eq.s32.totalorder %v2682, 0
        %v2685 = vxor.u32 %v2679, 2147483648
        %v2686 = vsel %vm2684, %v2678, %v2685
        %vm2687 = vcmp.eq.s32.totalorder %v2682, 2
        %v2688 = vxor.u32 %v2678, 2147483648
        %v2689 = vsel %vm2687, %v2688, %v2679
        %v2690 = vsel %vm2683, %v2686, %v2689
        %v2691 = vsel %vm2680, nan, %v2690
        %v2692 = vand.u32 2147483647, %v1723
        %vm2693 = vcmp.le.f32.partialorder %v2692, 0.7853982
        %vm2694 = vcmp.lt.s32.totalorder %v1723, 0
        %v2695 = vand.u32 %v1723, 2139095040
        %v2696 = vshrl.u32 %v2695, 23
        %v2697 = vsub.s32 %v2696, 127
        %v2698 = vand.u32 2147483647, %v1723
        %v2699 = vand.u32 %v2698, 8388607
        %v2700 = vor.u32 %v2699, 8388608
        %v2701 = vsub.s32 0, %v2700
        %v2702 = vadd.s32 %v2697, 1
        %vm2703 = vcmp.gt.s32.totalorder %v2702, 0
        %v2704 = vsel %vm2703, %v2702, 0
        %v2705 = vshrl.u32 %v2704, 5
        %v2706 = vand.u32 %v2704, 31
        %v2707 = vsub.s32 32, %v2706
        %v2708 = vshrl.u32 683565275, %v2707
        %v2709 = vshll.u32 683565275, %v2706
        %v2710 = vshrl.u32 2475754826, %v2707
        %v2711 = vor.u32 %v2709, %v2710
        %v2712 = vshll.u32 2475754826, %v2706
        %v2713 = vshrl.u32 2131351028, %v2707
        %v2714 = vor.u32 %v2712, %v2713
        %v2715 = vshll.u32 2131351028, %v2706
        %v2716 = vshrl.u32 2102212464, %v2707
        %v2717 = vor.u32 %v2715, %v2716
        %v2718 = vshll.u32 2102212464, %v2706
        %v2719 = vshrl.u32 920167782, %v2707
        %v2720 = vor.u32 %v2718, %v2719
        %v2721 = vshll.u32 920167782, %v2706
        %v2722 = vshrl.u32 1326507024, %v2707
        %v2723 = vor.u32 %v2721, %v2722
        %vm2724 = vcmp.lt.s32.totalorder %v2705, 1
        %vm2725 = vcmp.lt.s32.totalorder %v2705, 2
        %vm2726 = vcmp.lt.s32.totalorder %v2705, 3
        %vm2727 = vcmp.lt.s32.totalorder %v2705, 4
        %v2728 = vsel %vm2724, %v2708, %v2711
        %v2729 = vsel %vm2727, %v2717, 2102212464
        %v2730 = vsel %vm2726, %v2714, %v2729
        %v2731 = vsel %vm2725, %v2728, %v2730
        %v2732 = vsel %vm2724, %v2711, %v2714
        %v2733 = vsel %vm2727, %v2720, 920167782
        %v2734 = vsel %vm2726, %v2717, %v2733
        %v2735 = vsel %vm2725, %v2732, %v2734
        %v2736 = vsel %vm2724, %v2714, %v2717
        %v2737 = vsel %vm2727, %v2723, 1326507024
        %v2738 = vsel %vm2726, %v2720, %v2737
        %v2739 = vsel %vm2725, %v2736, %v2738
        %v2740 = vshll.u32 %v2700, 8
        %v2741 = vmul.u32.u64.compose %v2740, %v2739
        %v2742 = vextract.low.u32 %v2741
        %v2743 = vextract.high.u32 %v2741
        %v2744 = vmul.u32.u64.compose %v2740, %v2735
        %v2745 = vextract.low.u32 %v2744
        %v2746 = vextract.high.u32 %v2744
        %v2747 = vmul.u32 %v2740, %v2731
        %v2748 = vadd.s32 %v2743, %v2745
        %vm2749 = vc.u32 %v2743, %v2745
        %v2750 = vadd.s32 %v2746, 1
        %v2751 = vsel %vm2749, %v2750, %v2746
        %v2752 = vadd.s32 %v2747, %v2751
        %v2753 = vadd.s32 %v2752, 536870912
        %v2754 = vshrl.u32 %v2753, 30
        %v2755 = vshll.u32 %v2754, 30
        %v2756 = vsub.s32 %v2752, %v2755
        %vm2757 = vcmp.lt.s32.totalorder %v2756, 0
        %v2758 = vsub.s32 0, %v2756
        %v2759 = vsel %vm2757, %v2758, %v2756
        %v2760 = vclz %v2759
        %v2761 = vsub.s32 %v2760, 2
        %vm2762 = vcmp.gt.s32.totalorder 0, %v2761
        %v2763 = vsel %vm2762, 0, %v2761
        %v2764 = vsub.s32 32, %v2763
        %v2765 = vshll.u32 %v2756, %v2763
        %v2766 = vshrl.u32 %v2748, %v2764
        %v2767 = vor.u32 %v2765, %v2766
        %v2768 = vsub.s32 4294967266, %v2763
        %v2769 = vadd.s32 %v2768, 127
        %v2770 = vshll.u32 %v2769, 23
        %v2771 = vor.u32 4788187, %v2770
        %v2772 = vand.u32 2147483647, %v2771
        %v2774 = vcvt.s32.f32 %v2767
        %v2775 = vmul.f32 %v2774, %v2772
        %v2776 = vxor.u32 %v2775, 2147483648
        %v2777 = vsel %vm2694, %v2776, %v2775
        %v2778 = vsub.s32 4, %v2754
        %v2779 = vsel %vm2694, %v2778, %v2754
        %v2780 = vsel %vm2693, %v1723, %v2777
        %v2781 = vsel %vm2693, 0, %v2779
        %v2782 = vcosq.f32.pop %v2780
        %v2783 = vsinq.f32.pop %v2780
        %vm2784 = vweird.f32 %v1723
        %v2785 = vadd.s32 %v2781, 3
        %v2786 = vand.u32 %v2785, 3
        %vm2787 = vcmp.lt.s32.totalorder %v2786, 2
        %vm2788 = vcmp.eq.s32.totalorder %v2786, 0
        %v2789 = vxor.u32 %v2783, 2147483648
        %v2790 = vsel %vm2788, %v2782, %v2789
        %vm2791 = vcmp.eq.s32.totalorder %v2786, 2
        %v2792 = vxor.u32 %v2782, 2147483648
        %v2793 = vsel %vm2791, %v2792, %v2783
        %v2794 = vsel %vm2787, %v2790, %v2793
        %v2795 = vsel %vm2784, nan, %v2794
        %v2796 = vand.u32 2147483647, %v1728
        %vm2797 = vcmp.le.f32.partialorder %v2796, 0.7853982
        %vm2798 = vcmp.lt.s32.totalorder %v1728, 0
        %v2799 = vand.u32 %v1728, 2139095040
        %v2800 = vshrl.u32 %v2799, 23
        %v2801 = vsub.s32 %v2800, 127
        %v2802 = vand.u32 2147483647, %v1728
        %v2803 = vand.u32 %v2802, 8388607
        %v2804 = vor.u32 %v2803, 8388608
        %v2805 = vsub.s32 0, %v2804
        %v2806 = vadd.s32 %v2801, 1
        %vm2807 = vcmp.gt.s32.totalorder %v2806, 0
        %v2808 = vsel %vm2807, %v2806, 0
        %v2809 = vshrl.u32 %v2808, 5
        %v2810 = vand.u32 %v2808, 31
        %v2811 = vsub.s32 32, %v2810
        %v2812 = vshrl.u32 683565275, %v2811
        %v2813 = vshll.u32 683565275, %v2810
        %v2814 = vshrl.u32 2475754826, %v2811
        %v2815 = vor.u32 %v2813, %v2814
        %v2816 = vshll.u32 2475754826, %v2810
        %v2817 = vshrl.u32 2131351028, %v2811
        %v2818 = vor.u32 %v2816, %v2817
        %v2819 = vshll.u32 2131351028, %v2810
        %v2820 = vshrl.u32 2102212464, %v2811
        %v2821 = vor.u32 %v2819, %v2820
        %v2822 = vshll.u32 2102212464, %v2810
        %v2823 = vshrl.u32 920167782, %v2811
        %v2824 = vor.u32 %v2822, %v2823
        %v2825 = vshll.u32 920167782, %v2810
        %v2826 = vshrl.u32 1326507024, %v2811
        %v2827 = vor.u32 %v2825, %v2826
        %vm2828 = vcmp.lt.s32.totalorder %v2809, 1
        %vm2829 = vcmp.lt.s32.totalorder %v2809, 2
        %vm2830 = vcmp.lt.s32.totalorder %v2809, 3
        %vm2831 = vcmp.lt.s32.totalorder %v2809, 4
        %v2832 = vsel %vm2828, %v2812, %v2815
        %v2833 = vsel %vm2831, %v2821, 2102212464
        %v2834 = vsel %vm2830, %v2818, %v2833
        %v2835 = vsel %vm2829, %v2832, %v2834
        %v2836 = vsel %vm2828, %v2815, %v2818
        %v2837 = vsel %vm2831, %v2824, 920167782
        %v2838 = vsel %vm2830, %v2821, %v2837
        %v2839 = vsel %vm2829, %v2836, %v2838
        %v2840 = vsel %vm2828, %v2818, %v2821
        %v2841 = vsel %vm2831, %v2827, 1326507024
        %v2842 = vsel %vm2830, %v2824, %v2841
        %v2843 = vsel %vm2829, %v2840, %v2842
        %v2844 = vshll.u32 %v2804, 8
        %v2845 = vmul.u32.u64.compose %v2844, %v2843
        %v2846 = vextract.low.u32 %v2845
        %v2847 = vextract.high.u32 %v2845
        %v2848 = vmul.u32.u64.compose %v2844, %v2839
        %v2849 = vextract.low.u32 %v2848
        %v2850 = vextract.high.u32 %v2848
        %v2851 = vmul.u32 %v2844, %v2835
        %v2852 = vadd.s32 %v2847, %v2849
        %vm2853 = vc.u32 %v2847, %v2849
        %v2854 = vadd.s32 %v2850, 1
        %v2855 = vsel %vm2853, %v2854, %v2850
        %v2856 = vadd.s32 %v2851, %v2855
        %v2857 = vadd.s32 %v2856, 536870912
        %v2858 = vshrl.u32 %v2857, 30
        %v2859 = vshll.u32 %v2858, 30
        %v2860 = vsub.s32 %v2856, %v2859
        %vm2861 = vcmp.lt.s32.totalorder %v2860, 0
        %v2862 = vsub.s32 0, %v2860
        %v2863 = vsel %vm2861, %v2862, %v2860
        %v2864 = vclz %v2863
        %v2865 = vsub.s32 %v2864, 2
        %vm2866 = vcmp.gt.s32.totalorder 0, %v2865
        %v2867 = vsel %vm2866, 0, %v2865
        %v2868 = vsub.s32 32, %v2867
        %v2869 = vshll.u32 %v2860, %v2867
        %v2870 = vshrl.u32 %v2852, %v2868
        %v2871 = vor.u32 %v2869, %v2870
        %v2872 = vsub.s32 4294967266, %v2867
        %v2873 = vadd.s32 %v2872, 127
        %v2874 = vshll.u32 %v2873, 23
        %v2875 = vor.u32 4788187, %v2874
        %v2876 = vand.u32 2147483647, %v2875
        %v2878 = vcvt.s32.f32 %v2871
        %v2879 = vmul.f32 %v2878, %v2876
        %v2880 = vxor.u32 %v2879, 2147483648
        %v2881 = vsel %vm2798, %v2880, %v2879
        %v2882 = vsub.s32 4, %v2858
        %v2883 = vsel %vm2798, %v2882, %v2858
        %v2884 = vsel %vm2797, %v1728, %v2881
        %v2885 = vsel %vm2797, 0, %v2883
        %v2886 = vcosq.f32.pop %v2884
        %v2887 = vsinq.f32.pop %v2884
        %vm2888 = vweird.f32 %v1728
        %v2889 = vadd.s32 %v2885, 3
        %v2890 = vand.u32 %v2889, 3
        %vm2891 = vcmp.lt.s32.totalorder %v2890, 2
        %vm2892 = vcmp.eq.s32.totalorder %v2890, 0
        %v2893 = vxor.u32 %v2887, 2147483648
        %v2894 = vsel %vm2892, %v2886, %v2893
        %vm2895 = vcmp.eq.s32.totalorder %v2890, 2
        %v2896 = vxor.u32 %v2886, 2147483648
        %v2897 = vsel %vm2895, %v2896, %v2887
        %v2898 = vsel %vm2891, %v2894, %v2897
        %v2899 = vsel %vm2888, nan, %v2898
        %v2900 = vand.u32 2147483647, %v1733
        %vm2901 = vcmp.le.f32.partialorder %v2900, 0.7853982
        %vm2902 = vcmp.lt.s32.totalorder %v1733, 0
        %v2903 = vand.u32 %v1733, 2139095040
        %v2904 = vshrl.u32 %v2903, 23
        %v2905 = vsub.s32 %v2904, 127
        %v2906 = vand.u32 2147483647, %v1733
        %v2907 = vand.u32 %v2906, 8388607
        %v2908 = vor.u32 %v2907, 8388608
        %v2909 = vsub.s32 0, %v2908
        %v2910 = vadd.s32 %v2905, 1
        %vm2911 = vcmp.gt.s32.totalorder %v2910, 0
        %v2912 = vsel %vm2911, %v2910, 0
        %v2913 = vshrl.u32 %v2912, 5
        %v2914 = vand.u32 %v2912, 31
        %v2915 = vsub.s32 32, %v2914
        %v2916 = vshrl.u32 683565275, %v2915
        %v2917 = vshll.u32 683565275, %v2914
        %v2918 = vshrl.u32 2475754826, %v2915
        %v2919 = vor.u32 %v2917, %v2918
        %v2920 = vshll.u32 2475754826, %v2914
        %v2921 = vshrl.u32 2131351028, %v2915
        %v2922 = vor.u32 %v2920, %v2921
        %v2923 = vshll.u32 2131351028, %v2914
        %v2924 = vshrl.u32 2102212464, %v2915
        %v2925 = vor.u32 %v2923, %v2924
        %v2926 = vshll.u32 2102212464, %v2914
        %v2927 = vshrl.u32 920167782, %v2915
        %v2928 = vor.u32 %v2926, %v2927
        %v2929 = vshll.u32 920167782, %v2914
        %v2930 = vshrl.u32 1326507024, %v2915
        %v2931 = vor.u32 %v2929, %v2930
        %vm2932 = vcmp.lt.s32.totalorder %v2913, 1
        %vm2933 = vcmp.lt.s32.totalorder %v2913, 2
        %vm2934 = vcmp.lt.s32.totalorder %v2913, 3
        %vm2935 = vcmp.lt.s32.totalorder %v2913, 4
        %v2936 = vsel %vm2932, %v2916, %v2919
        %v2937 = vsel %vm2935, %v2925, 2102212464
        %v2938 = vsel %vm2934, %v2922, %v2937
        %v2939 = vsel %vm2933, %v2936, %v2938
        %v2940 = vsel %vm2932, %v2919, %v2922
        %v2941 = vsel %vm2935, %v2928, 920167782
        %v2942 = vsel %vm2934, %v2925, %v2941
        %v2943 = vsel %vm2933, %v2940, %v2942
        %v2944 = vsel %vm2932, %v2922, %v2925
        %v2945 = vsel %vm2935, %v2931, 1326507024
        %v2946 = vsel %vm2934, %v2928, %v2945
        %v2947 = vsel %vm2933, %v2944, %v2946
        %v2948 = vshll.u32 %v2908, 8
        %v2949 = vmul.u32.u64.compose %v2948, %v2947
        %v2950 = vextract.low.u32 %v2949
        %v2951 = vextract.high.u32 %v2949
        %v2952 = vmul.u32.u64.compose %v2948, %v2943
        %v2953 = vextract.low.u32 %v2952
        %v2954 = vextract.high.u32 %v2952
        %v2955 = vmul.u32 %v2948, %v2939
        %v2956 = vadd.s32 %v2951, %v2953
        %vm2957 = vc.u32 %v2951, %v2953
        %v2958 = vadd.s32 %v2954, 1
        %v2959 = vsel %vm2957, %v2958, %v2954
        %v2960 = vadd.s32 %v2955, %v2959
        %v2961 = vadd.s32 %v2960, 536870912
        %v2962 = vshrl.u32 %v2961, 30
        %v2963 = vshll.u32 %v2962, 30
        %v2964 = vsub.s32 %v2960, %v2963
        %vm2965 = vcmp.lt.s32.totalorder %v2964, 0
        %v2966 = vsub.s32 0, %v2964
        %v2967 = vsel %vm2965, %v2966, %v2964
        %v2968 = vclz %v2967
        %v2969 = vsub.s32 %v2968, 2
        %vm2970 = vcmp.gt.s32.totalorder 0, %v2969
        %v2971 = vsel %vm2970, 0, %v2969
        %v2972 = vsub.s32 32, %v2971
        %v2973 = vshll.u32 %v2964, %v2971
        %v2974 = vshrl.u32 %v2956, %v2972
        %v2975 = vor.u32 %v2973, %v2974
        %v2976 = vsub.s32 4294967266, %v2971
        %v2977 = vadd.s32 %v2976, 127
        %v2978 = vshll.u32 %v2977, 23
        %v2979 = vor.u32 4788187, %v2978
        %v2980 = vand.u32 2147483647, %v2979
        %v2982 = vcvt.s32.f32 %v2975
        %v2983 = vmul.f32 %v2982, %v2980
        %v2984 = vxor.u32 %v2983, 2147483648
        %v2985 = vsel %vm2902, %v2984, %v2983
        %v2986 = vsub.s32 4, %v2962
        %v2987 = vsel %vm2902, %v2986, %v2962
        %v2988 = vsel %vm2901, %v1733, %v2985
        %v2989 = vsel %vm2901, 0, %v2987
        %v2990 = vcosq.f32.pop %v2988
        %v2991 = vsinq.f32.pop %v2988
        %vm2992 = vweird.f32 %v1733
        %v2993 = vadd.s32 %v2989, 3
        %v2994 = vand.u32 %v2993, 3
        %vm2995 = vcmp.lt.s32.totalorder %v2994, 2
        %vm2996 = vcmp.eq.s32.totalorder %v2994, 0
        %v2997 = vxor.u32 %v2991, 2147483648
        %v2998 = vsel %vm2996, %v2990, %v2997
        %vm2999 = vcmp.eq.s32.totalorder %v2994, 2
        %v3000 = vxor.u32 %v2990, 2147483648
        %v3001 = vsel %vm2999, %v3000, %v2991
        %v3002 = vsel %vm2995, %v2998, %v3001
        %v3003 = vsel %vm2992, nan, %v3002
        %v3004 = vand.u32 2147483647, %v1738
        %vm3005 = vcmp.le.f32.partialorder %v3004, 0.7853982
        %vm3006 = vcmp.lt.s32.totalorder %v1738, 0
        %v3007 = vand.u32 %v1738, 2139095040
        %v3008 = vshrl.u32 %v3007, 23
        %v3009 = vsub.s32 %v3008, 127
        %v3010 = vand.u32 2147483647, %v1738
        %v3011 = vand.u32 %v3010, 8388607
        %v3012 = vor.u32 %v3011, 8388608
        %v3013 = vsub.s32 0, %v3012
        %v3014 = vadd.s32 %v3009, 1
        %vm3015 = vcmp.gt.s32.totalorder %v3014, 0
        %v3016 = vsel %vm3015, %v3014, 0
        %v3017 = vshrl.u32 %v3016, 5
        %v3018 = vand.u32 %v3016, 31
        %v3019 = vsub.s32 32, %v3018
        %v3020 = vshrl.u32 683565275, %v3019
        %v3021 = vshll.u32 683565275, %v3018
        %v3022 = vshrl.u32 2475754826, %v3019
        %v3023 = vor.u32 %v3021, %v3022
        %v3024 = vshll.u32 2475754826, %v3018
        %v3025 = vshrl.u32 2131351028, %v3019
        %v3026 = vor.u32 %v3024, %v3025
        %v3027 = vshll.u32 2131351028, %v3018
        %v3028 = vshrl.u32 2102212464, %v3019
        %v3029 = vor.u32 %v3027, %v3028
        %v3030 = vshll.u32 2102212464, %v3018
        %v3031 = vshrl.u32 920167782, %v3019
        %v3032 = vor.u32 %v3030, %v3031
        %v3033 = vshll.u32 920167782, %v3018
        %v3034 = vshrl.u32 1326507024, %v3019
        %v3035 = vor.u32 %v3033, %v3034
        %vm3036 = vcmp.lt.s32.totalorder %v3017, 1
        %vm3037 = vcmp.lt.s32.totalorder %v3017, 2
        %vm3038 = vcmp.lt.s32.totalorder %v3017, 3
        %vm3039 = vcmp.lt.s32.totalorder %v3017, 4
        %v3040 = vsel %vm3036, %v3020, %v3023
        %v3041 = vsel %vm3039, %v3029, 2102212464
        %v3042 = vsel %vm3038, %v3026, %v3041
        %v3043 = vsel %vm3037, %v3040, %v3042
        %v3044 = vsel %vm3036, %v3023, %v3026
        %v3045 = vsel %vm3039, %v3032, 920167782
        %v3046 = vsel %vm3038, %v3029, %v3045
        %v3047 = vsel %vm3037, %v3044, %v3046
        %v3048 = vsel %vm3036, %v3026, %v3029
        %v3049 = vsel %vm3039, %v3035, 1326507024
        %v3050 = vsel %vm3038, %v3032, %v3049
        %v3051 = vsel %vm3037, %v3048, %v3050
        %v3052 = vshll.u32 %v3012, 8
        %v3053 = vmul.u32.u64.compose %v3052, %v3051
        %v3054 = vextract.low.u32 %v3053
        %v3055 = vextract.high.u32 %v3053
        %v3056 = vmul.u32.u64.compose %v3052, %v3047
        %v3057 = vextract.low.u32 %v3056
        %v3058 = vextract.high.u32 %v3056
        %v3059 = vmul.u32 %v3052, %v3043
        %v3060 = vadd.s32 %v3055, %v3057
        %vm3061 = vc.u32 %v3055, %v3057
        %v3062 = vadd.s32 %v3058, 1
        %v3063 = vsel %vm3061, %v3062, %v3058
        %v3064 = vadd.s32 %v3059, %v3063
        %v3065 = vadd.s32 %v3064, 536870912
        %v3066 = vshrl.u32 %v3065, 30
        %v3067 = vshll.u32 %v3066, 30
        %v3068 = vsub.s32 %v3064, %v3067
        %vm3069 = vcmp.lt.s32.totalorder %v3068, 0
        %v3070 = vsub.s32 0, %v3068
        %v3071 = vsel %vm3069, %v3070, %v3068
        %v3072 = vclz %v3071
        %v3073 = vsub.s32 %v3072, 2
        %vm3074 = vcmp.gt.s32.totalorder 0, %v3073
        %v3075 = vsel %vm3074, 0, %v3073
        %v3076 = vsub.s32 32, %v3075
        %v3077 = vshll.u32 %v3068, %v3075
        %v3078 = vshrl.u32 %v3060, %v3076
        %v3079 = vor.u32 %v3077, %v3078
        %v3080 = vsub.s32 4294967266, %v3075
        %v3081 = vadd.s32 %v3080, 127
        %v3082 = vshll.u32 %v3081, 23
        %v3083 = vor.u32 4788187, %v3082
        %v3084 = vand.u32 2147483647, %v3083
        %v3086 = vcvt.s32.f32 %v3079
        %v3087 = vmul.f32 %v3086, %v3084
        %v3088 = vxor.u32 %v3087, 2147483648
        %v3089 = vsel %vm3006, %v3088, %v3087
        %v3090 = vsub.s32 4, %v3066
        %v3091 = vsel %vm3006, %v3090, %v3066
        %v3092 = vsel %vm3005, %v1738, %v3089
        %v3093 = vsel %vm3005, 0, %v3091
        %v3094 = vcosq.f32.pop %v3092
        %v3095 = vsinq.f32.pop %v3092
        %vm3096 = vweird.f32 %v1738
        %v3097 = vadd.s32 %v3093, 3
        %v3098 = vand.u32 %v3097, 3
        %vm3099 = vcmp.lt.s32.totalorder %v3098, 2
        %vm3100 = vcmp.eq.s32.totalorder %v3098, 0
        %v3101 = vxor.u32 %v3095, 2147483648
        %v3102 = vsel %vm3100, %v3094, %v3101
        %vm3103 = vcmp.eq.s32.totalorder %v3098, 2
        %v3104 = vxor.u32 %v3094, 2147483648
        %v3105 = vsel %vm3103, %v3104, %v3095
        %v3106 = vsel %vm3099, %v3102, %v3105
        %v3107 = vsel %vm3096, nan, %v3106
        %v3108 = vand.u32 2147483647, %v1743
        %vm3109 = vcmp.le.f32.partialorder %v3108, 0.7853982
        %vm3110 = vcmp.lt.s32.totalorder %v1743, 0
        %v3111 = vand.u32 %v1743, 2139095040
        %v3112 = vshrl.u32 %v3111, 23
        %v3113 = vsub.s32 %v3112, 127
        %v3114 = vand.u32 2147483647, %v1743
        %v3115 = vand.u32 %v3114, 8388607
        %v3116 = vor.u32 %v3115, 8388608
        %v3117 = vsub.s32 0, %v3116
        %v3118 = vadd.s32 %v3113, 1
        %vm3119 = vcmp.gt.s32.totalorder %v3118, 0
        %v3120 = vsel %vm3119, %v3118, 0
        %v3121 = vshrl.u32 %v3120, 5
        %v3122 = vand.u32 %v3120, 31
        %v3123 = vsub.s32 32, %v3122
        %v3124 = vshrl.u32 683565275, %v3123
        %v3125 = vshll.u32 683565275, %v3122
        %v3126 = vshrl.u32 2475754826, %v3123
        %v3127 = vor.u32 %v3125, %v3126
        %v3128 = vshll.u32 2475754826, %v3122
        %v3129 = vshrl.u32 2131351028, %v3123
        %v3130 = vor.u32 %v3128, %v3129
        %v3131 = vshll.u32 2131351028, %v3122
        %v3132 = vshrl.u32 2102212464, %v3123
        %v3133 = vor.u32 %v3131, %v3132
        %v3134 = vshll.u32 2102212464, %v3122
        %v3135 = vshrl.u32 920167782, %v3123
        %v3136 = vor.u32 %v3134, %v3135
        %v3137 = vshll.u32 920167782, %v3122
        %v3138 = vshrl.u32 1326507024, %v3123
        %v3139 = vor.u32 %v3137, %v3138
        %vm3140 = vcmp.lt.s32.totalorder %v3121, 1
        %vm3141 = vcmp.lt.s32.totalorder %v3121, 2
        %vm3142 = vcmp.lt.s32.totalorder %v3121, 3
        %vm3143 = vcmp.lt.s32.totalorder %v3121, 4
        %v3144 = vsel %vm3140, %v3124, %v3127
        %v3145 = vsel %vm3143, %v3133, 2102212464
        %v3146 = vsel %vm3142, %v3130, %v3145
        %v3147 = vsel %vm3141, %v3144, %v3146
        %v3148 = vsel %vm3140, %v3127, %v3130
        %v3149 = vsel %vm3143, %v3136, 920167782
        %v3150 = vsel %vm3142, %v3133, %v3149
        %v3151 = vsel %vm3141, %v3148, %v3150
        %v3152 = vsel %vm3140, %v3130, %v3133
        %v3153 = vsel %vm3143, %v3139, 1326507024
        %v3154 = vsel %vm3142, %v3136, %v3153
        %v3155 = vsel %vm3141, %v3152, %v3154
        %v3156 = vshll.u32 %v3116, 8
        %v3157 = vmul.u32.u64.compose %v3156, %v3155
        %v3158 = vextract.low.u32 %v3157
        %v3159 = vextract.high.u32 %v3157
        %v3160 = vmul.u32.u64.compose %v3156, %v3151
        %v3161 = vextract.low.u32 %v3160
        %v3162 = vextract.high.u32 %v3160
        %v3163 = vmul.u32 %v3156, %v3147
        %v3164 = vadd.s32 %v3159, %v3161
        %vm3165 = vc.u32 %v3159, %v3161
        %v3166 = vadd.s32 %v3162, 1
        %v3167 = vsel %vm3165, %v3166, %v3162
        %v3168 = vadd.s32 %v3163, %v3167
        %v3169 = vadd.s32 %v3168, 536870912
        %v3170 = vshrl.u32 %v3169, 30
        %v3171 = vshll.u32 %v3170, 30
        %v3172 = vsub.s32 %v3168, %v3171
        %vm3173 = vcmp.lt.s32.totalorder %v3172, 0
        %v3174 = vsub.s32 0, %v3172
        %v3175 = vsel %vm3173, %v3174, %v3172
        %v3176 = vclz %v3175
        %v3177 = vsub.s32 %v3176, 2
        %vm3178 = vcmp.gt.s32.totalorder 0, %v3177
        %v3179 = vsel %vm3178, 0, %v3177
        %v3180 = vsub.s32 32, %v3179
        %v3181 = vshll.u32 %v3172, %v3179
        %v3182 = vshrl.u32 %v3164, %v3180
        %v3183 = vor.u32 %v3181, %v3182
        %v3184 = vsub.s32 4294967266, %v3179
        %v3185 = vadd.s32 %v3184, 127
        %v3186 = vshll.u32 %v3185, 23
        %v3187 = vor.u32 4788187, %v3186
        %v3188 = vand.u32 2147483647, %v3187
        %v3190 = vcvt.s32.f32 %v3183
        %v3191 = vmul.f32 %v3190, %v3188
        %v3192 = vxor.u32 %v3191, 2147483648
        %v3193 = vsel %vm3110, %v3192, %v3191
        %v3194 = vsub.s32 4, %v3170
        %v3195 = vsel %vm3110, %v3194, %v3170
        %v3196 = vsel %vm3109, %v1743, %v3193
        %v3197 = vsel %vm3109, 0, %v3195
        %v3198 = vcosq.f32.pop %v3196
        %v3199 = vsinq.f32.pop %v3196
        %vm3200 = vweird.f32 %v1743
        %v3201 = vadd.s32 %v3197, 3
        %v3202 = vand.u32 %v3201, 3
        %vm3203 = vcmp.lt.s32.totalorder %v3202, 2
        %vm3204 = vcmp.eq.s32.totalorder %v3202, 0
        %v3205 = vxor.u32 %v3199, 2147483648
        %v3206 = vsel %vm3204, %v3198, %v3205
        %vm3207 = vcmp.eq.s32.totalorder %v3202, 2
        %v3208 = vxor.u32 %v3198, 2147483648
        %v3209 = vsel %vm3207, %v3208, %v3199
        %v3210 = vsel %vm3203, %v3206, %v3209
        %v3211 = vsel %vm3200, nan, %v3210
        %v3212 = vand.u32 2147483647, %v1748
        %vm3213 = vcmp.le.f32.partialorder %v3212, 0.7853982
        %vm3214 = vcmp.lt.s32.totalorder %v1748, 0
        %v3215 = vand.u32 %v1748, 2139095040
        %v3216 = vshrl.u32 %v3215, 23
        %v3217 = vsub.s32 %v3216, 127
        %v3218 = vand.u32 2147483647, %v1748
        %v3219 = vand.u32 %v3218, 8388607
        %v3220 = vor.u32 %v3219, 8388608
        %v3221 = vsub.s32 0, %v3220
        %v3222 = vadd.s32 %v3217, 1
        %vm3223 = vcmp.gt.s32.totalorder %v3222, 0
        %v3224 = vsel %vm3223, %v3222, 0
        %v3225 = vshrl.u32 %v3224, 5
        %v3226 = vand.u32 %v3224, 31
        %v3227 = vsub.s32 32, %v3226
        %v3228 = vshrl.u32 683565275, %v3227
        %v3229 = vshll.u32 683565275, %v3226
        %v3230 = vshrl.u32 2475754826, %v3227
        %v3231 = vor.u32 %v3229, %v3230
        %v3232 = vshll.u32 2475754826, %v3226
        %v3233 = vshrl.u32 2131351028, %v3227
        %v3234 = vor.u32 %v3232, %v3233
        %v3235 = vshll.u32 2131351028, %v3226
        %v3236 = vshrl.u32 2102212464, %v3227
        %v3237 = vor.u32 %v3235, %v3236
        %v3238 = vshll.u32 2102212464, %v3226
        %v3239 = vshrl.u32 920167782, %v3227
        %v3240 = vor.u32 %v3238, %v3239
        %v3241 = vshll.u32 920167782, %v3226
        %v3242 = vshrl.u32 1326507024, %v3227
        %v3243 = vor.u32 %v3241, %v3242
        %vm3244 = vcmp.lt.s32.totalorder %v3225, 1
        %vm3245 = vcmp.lt.s32.totalorder %v3225, 2
        %vm3246 = vcmp.lt.s32.totalorder %v3225, 3
        %vm3247 = vcmp.lt.s32.totalorder %v3225, 4
        %v3248 = vsel %vm3244, %v3228, %v3231
        %v3249 = vsel %vm3247, %v3237, 2102212464
        %v3250 = vsel %vm3246, %v3234, %v3249
        %v3251 = vsel %vm3245, %v3248, %v3250
        %v3252 = vsel %vm3244, %v3231, %v3234
        %v3253 = vsel %vm3247, %v3240, 920167782
        %v3254 = vsel %vm3246, %v3237, %v3253
        %v3255 = vsel %vm3245, %v3252, %v3254
        %v3256 = vsel %vm3244, %v3234, %v3237
        %v3257 = vsel %vm3247, %v3243, 1326507024
        %v3258 = vsel %vm3246, %v3240, %v3257
        %v3259 = vsel %vm3245, %v3256, %v3258
        %v3260 = vshll.u32 %v3220, 8
        %v3261 = vmul.u32.u64.compose %v3260, %v3259
        %v3262 = vextract.low.u32 %v3261
        %v3263 = vextract.high.u32 %v3261
        %v3264 = vmul.u32.u64.compose %v3260, %v3255
        %v3265 = vextract.low.u32 %v3264
        %v3266 = vextract.high.u32 %v3264
        %v3267 = vmul.u32 %v3260, %v3251
        %v3268 = vadd.s32 %v3263, %v3265
        %vm3269 = vc.u32 %v3263, %v3265
        %v3270 = vadd.s32 %v3266, 1
        %v3271 = vsel %vm3269, %v3270, %v3266
        %v3272 = vadd.s32 %v3267, %v3271
        %v3273 = vadd.s32 %v3272, 536870912
        %v3274 = vshrl.u32 %v3273, 30
        %v3275 = vshll.u32 %v3274, 30
        %v3276 = vsub.s32 %v3272, %v3275
        %vm3277 = vcmp.lt.s32.totalorder %v3276, 0
        %v3278 = vsub.s32 0, %v3276
        %v3279 = vsel %vm3277, %v3278, %v3276
        %v3280 = vclz %v3279
        %v3281 = vsub.s32 %v3280, 2
        %vm3282 = vcmp.gt.s32.totalorder 0, %v3281
        %v3283 = vsel %vm3282, 0, %v3281
        %v3284 = vsub.s32 32, %v3283
        %v3285 = vshll.u32 %v3276, %v3283
        %v3286 = vshrl.u32 %v3268, %v3284
        %v3287 = vor.u32 %v3285, %v3286
        %v3288 = vsub.s32 4294967266, %v3283
        %v3289 = vadd.s32 %v3288, 127
        %v3290 = vshll.u32 %v3289, 23
        %v3291 = vor.u32 4788187, %v3290
        %v3292 = vand.u32 2147483647, %v3291
        %v3294 = vcvt.s32.f32 %v3287
        %v3295 = vmul.f32 %v3294, %v3292
        %v3296 = vxor.u32 %v3295, 2147483648
        %v3297 = vsel %vm3214, %v3296, %v3295
        %v3298 = vsub.s32 4, %v3274
        %v3299 = vsel %vm3214, %v3298, %v3274
        %v3300 = vsel %vm3213, %v1748, %v3297
        %v3301 = vsel %vm3213, 0, %v3299
        %v3302 = vcosq.f32.pop %v3300
        %v3303 = vsinq.f32.pop %v3300
        %vm3304 = vweird.f32 %v1748
        %v3305 = vadd.s32 %v3301, 3
        %v3306 = vand.u32 %v3305, 3
        %vm3307 = vcmp.lt.s32.totalorder %v3306, 2
        %vm3308 = vcmp.eq.s32.totalorder %v3306, 0
        %v3309 = vxor.u32 %v3303, 2147483648
        %v3310 = vsel %vm3308, %v3302, %v3309
        %vm3311 = vcmp.eq.s32.totalorder %v3306, 2
        %v3312 = vxor.u32 %v3302, 2147483648
        %v3313 = vsel %vm3311, %v3312, %v3303
        %v3314 = vsel %vm3307, %v3310, %v3313
        %v3315 = vsel %vm3304, nan, %v3314
        %v3316 = vand.u32 2147483647, %v1753
        %vm3317 = vcmp.le.f32.partialorder %v3316, 0.7853982
        %vm3318 = vcmp.lt.s32.totalorder %v1753, 0
        %v3319 = vand.u32 %v1753, 2139095040
        %v3320 = vshrl.u32 %v3319, 23
        %v3321 = vsub.s32 %v3320, 127
        %v3322 = vand.u32 2147483647, %v1753
        %v3323 = vand.u32 %v3322, 8388607
        %v3324 = vor.u32 %v3323, 8388608
        %v3325 = vsub.s32 0, %v3324
        %v3326 = vadd.s32 %v3321, 1
        %vm3327 = vcmp.gt.s32.totalorder %v3326, 0
        %v3328 = vsel %vm3327, %v3326, 0
        %v3329 = vshrl.u32 %v3328, 5
        %v3330 = vand.u32 %v3328, 31
        %v3331 = vsub.s32 32, %v3330
        %v3332 = vshrl.u32 683565275, %v3331
        %v3333 = vshll.u32 683565275, %v3330
        %v3334 = vshrl.u32 2475754826, %v3331
        %v3335 = vor.u32 %v3333, %v3334
        %v3336 = vshll.u32 2475754826, %v3330
        %v3337 = vshrl.u32 2131351028, %v3331
        %v3338 = vor.u32 %v3336, %v3337
        %v3339 = vshll.u32 2131351028, %v3330
        %v3340 = vshrl.u32 2102212464, %v3331
        %v3341 = vor.u32 %v3339, %v3340
        %v3342 = vshll.u32 2102212464, %v3330
        %v3343 = vshrl.u32 920167782, %v3331
        %v3344 = vor.u32 %v3342, %v3343
        %v3345 = vshll.u32 920167782, %v3330
        %v3346 = vshrl.u32 1326507024, %v3331
        %v3347 = vor.u32 %v3345, %v3346
        %vm3348 = vcmp.lt.s32.totalorder %v3329, 1
        %vm3349 = vcmp.lt.s32.totalorder %v3329, 2
        %vm3350 = vcmp.lt.s32.totalorder %v3329, 3
        %vm3351 = vcmp.lt.s32.totalorder %v3329, 4
        %v3352 = vsel %vm3348, %v3332, %v3335
        %v3353 = vsel %vm3351, %v3341, 2102212464
        %v3354 = vsel %vm3350, %v3338, %v3353
        %v3355 = vsel %vm3349, %v3352, %v3354
        %v3356 = vsel %vm3348, %v3335, %v3338
        %v3357 = vsel %vm3351, %v3344, 920167782
        %v3358 = vsel %vm3350, %v3341, %v3357
        %v3359 = vsel %vm3349, %v3356, %v3358
        %v3360 = vsel %vm3348, %v3338, %v3341
        %v3361 = vsel %vm3351, %v3347, 1326507024
        %v3362 = vsel %vm3350, %v3344, %v3361
        %v3363 = vsel %vm3349, %v3360, %v3362
        %v3364 = vshll.u32 %v3324, 8
        %v3365 = vmul.u32.u64.compose %v3364, %v3363
        %v3366 = vextract.low.u32 %v3365
        %v3367 = vextract.high.u32 %v3365
        %v3368 = vmul.u32.u64.compose %v3364, %v3359
        %v3369 = vextract.low.u32 %v3368
        %v3370 = vextract.high.u32 %v3368
        %v3371 = vmul.u32 %v3364, %v3355
        %v3372 = vadd.s32 %v3367, %v3369
        %vm3373 = vc.u32 %v3367, %v3369
        %v3374 = vadd.s32 %v3370, 1
        %v3375 = vsel %vm3373, %v3374, %v3370
        %v3376 = vadd.s32 %v3371, %v3375
        %v3377 = vadd.s32 %v3376, 536870912
        %v3378 = vshrl.u32 %v3377, 30
        %v3379 = vshll.u32 %v3378, 30
        %v3380 = vsub.s32 %v3376, %v3379
        %vm3381 = vcmp.lt.s32.totalorder %v3380, 0
        %v3382 = vsub.s32 0, %v3380
        %v3383 = vsel %vm3381, %v3382, %v3380
        %v3384 = vclz %v3383
        %v3385 = vsub.s32 %v3384, 2
        %vm3386 = vcmp.gt.s32.totalorder 0, %v3385
        %v3387 = vsel %vm3386, 0, %v3385
        %v3388 = vsub.s32 32, %v3387
        %v3389 = vshll.u32 %v3380, %v3387
        %v3390 = vshrl.u32 %v3372, %v3388
        %v3391 = vor.u32 %v3389, %v3390
        %v3392 = vsub.s32 4294967266, %v3387
        %v3393 = vadd.s32 %v3392, 127
        %v3394 = vshll.u32 %v3393, 23
        %v3395 = vor.u32 4788187, %v3394
        %v3396 = vand.u32 2147483647, %v3395
        %v3398 = vcvt.s32.f32 %v3391
        %v3399 = vmul.f32 %v3398, %v3396
        %v3400 = vxor.u32 %v3399, 2147483648
        %v3401 = vsel %vm3318, %v3400, %v3399
        %v3402 = vsub.s32 4, %v3378
        %v3403 = vsel %vm3318, %v3402, %v3378
        %v3404 = vsel %vm3317, %v1753, %v3401
        %v3405 = vsel %vm3317, 0, %v3403
        %v3406 = vcosq.f32.pop %v3404
        %v3407 = vsinq.f32.pop %v3404
        %vm3408 = vweird.f32 %v1753
        %v3409 = vadd.s32 %v3405, 3
        %v3410 = vand.u32 %v3409, 3
        %vm3411 = vcmp.lt.s32.totalorder %v3410, 2
        %vm3412 = vcmp.eq.s32.totalorder %v3410, 0
        %v3413 = vxor.u32 %v3407, 2147483648
        %v3414 = vsel %vm3412, %v3406, %v3413
        %vm3415 = vcmp.eq.s32.totalorder %v3410, 2
        %v3416 = vxor.u32 %v3406, 2147483648
        %v3417 = vsel %vm3415, %v3416, %v3407
        %v3418 = vsel %vm3411, %v3414, %v3417
        %v3419 = vsel %vm3408, nan, %v3418
        %v3421 = vlaneseq
        %v3422 = vshrl.u32 %v3421, 7
        %v3423 = vsub.s32 0, %v3422
        %v3424 = vrot.slane %v838, %v3423
        %v3426 = vmul.f32 %v1859, %v3424
        %v3427 = vmul.f32 %v1963, %v3424
        %v3428 = vmul.f32 %v2067, %v3424
        %v3429 = vmul.f32 %v2171, %v3424
        %v3430 = vmul.f32 %v2275, %v3424
        %v3431 = vmul.f32 %v2379, %v3424
        %v3432 = vmul.f32 %v2483, %v3424
        %v3433 = vmul.f32 %v2587, %v3424
        %v3434 = vmul.f32 %v2691, %v3424
        %v3435 = vmul.f32 %v2795, %v3424
        %v3436 = vmul.f32 %v2899, %v3424
        %v3437 = vmul.f32 %v3003, %v3424
        %v3438 = vmul.f32 %v3107, %v3424
        %v3439 = vmul.f32 %v3211, %v3424
        %v3440 = vmul.f32 %v3315, %v3424
        %v3441 = vmul.f32 %v3419, %v3424
        %v3442 = vadd.f32 %v1395, %v3426
        %v3443 = vadd.f32 %v1396, %v3427
        %v3444 = vadd.f32 %v1397, %v3428
        %v3445 = vadd.f32 %v1398, %v3429
        %v3446 = vadd.f32 %v1399, %v3430
        %v3447 = vadd.f32 %v1400, %v3431
        %v3448 = vadd.f32 %v1401, %v3432
        %v3449 = vadd.f32 %v1402, %v3433
        %v3450 = vadd.f32 %v1403, %v3434
        %v3451 = vadd.f32 %v1404, %v3435
        %v3452 = vadd.f32 %v1405, %v3436
        %v3453 = vadd.f32 %v1406, %v3437
        %v3454 = vadd.f32 %v1407, %v3438
        %v3455 = vadd.f32 %v1408, %v3439
        %v3456 = vadd.f32 %v1409, %v3440
        %v3457 = vadd.f32 %v1410, %v3441
        %v3459 = vlaneseq
        %v3460 = vshrl.u32 %v3459, 7
        %v3461 = vsub.s32 0, %v3460
        %v3462 = vrot.slane %v834, %v3461
        %v3464 = vmul.f32 %v1162, %v3462
        %v3465 = vmul.f32 %v1163, %v3462
        %3466 = vadd.xlane.f32.xlu0 %v3464
        %v3467 = vpop.xlane.xlu0 %3466
        %3468 = vadd.xlane.f32.xlu0 %v3465
        %v3469 = vpop.xlane.xlu0 %3468
        %v3471 = vlaneseq
        %v3472 = vshrl.u32 %v3471, 7
        %v3473 = vsub.s32 0, %v3472
        %v3474 = vrot.slane %v835, %v3473
        %v3476 = vadd.f32 %v3467, %v3474
        %v3477 = vadd.f32 %v3469, %v3474
        %v3478 = vmax.f32 %v3476, 0.0
        %v3479 = vmax.f32 %v3477, 0.0
        %v3480 = vmul.f32 %v3478, 10.0
        %v3481 = vmul.f32 %v3479, 10.0
        %3483 = vset.pattern.permute.xlu0 0
        %3484 = vperm.xlu0 %3483, %v3480
        %v3485 = vpop.permute.xlu0 %3484
        %3488 = vset.pattern.permute.xlu0 0
        %3489 = vperm.xlu0 %3488, %v3481
        %v3490 = vpop.permute.xlu0 %3489
        %v3492 = vmul.f32 %v3485, %v1587
        %v3493 = vmul.f32 %v3490, %v1587
        %vm3494 = vcmask 130048
        %v3496 = vsel %vm3494, %v914, 0
        %v3499 = vsel %vm3494, %v915, 0
        %3501 = vmatprep.subr.mxu0 0.0
        %3502 = vmatpush1.msra.mxu0 %v3492
        %3503 = vmatprep.subr.mxu0 0.0
        %3504 = vmatpush1.msra.mxu0 %v3493
        %3505 = vmatprep.subr.mxu0 0.0
        %3506 = vmatpush1.msra.mxu0 0.0
        %3507 = vmatprep.subr.mxu0 0.0
        %3508 = vmatpush1.msra.mxu0 0.0
        %3509 = vmatprep.subr.mxu0 0.0
        %3510 = vmatpush1.msra.mxu0 0.0
        %3511 = vmatprep.subr.mxu0 0.0
        %3512 = vmatpush1.msra.mxu0 0.0
        %3513 = vmatprep.subr.mxu0 0.0
        %3514 = vmatpush1.msra.mxu0 0.0
        %3515 = vmatprep.subr.mxu0 0.0
        %3516 = vmatpush1.msra.mxu0 0.0
        %3517 = vmatprep.subr.mxu0 0.0
        %3518 = vmatpush1.msra.mxu0 0.0
        %3519 = vmatprep.subr.mxu0 0.0
        %3520 = vmatpush1.msra.mxu0 0.0
        %3521 = vmatprep.subr.mxu0 0.0
        %3522 = vmatpush1.msra.mxu0 0.0
        %3523 = vmatprep.subr.mxu0 0.0
        %3524 = vmatpush1.msra.mxu0 0.0
        %3525 = vmatprep.subr.mxu0 0.0
        %3526 = vmatpush1.msra.mxu0 0.0
        %3527 = vmatprep.subr.mxu0 0.0
        %3528 = vmatpush1.msra.mxu0 0.0
        %3529 = vmatprep.subr.mxu0 0.0
        %3530 = vmatpush1.msra.mxu0 0.0
        %3531 = vmatprep.subr.mxu0 0.0
        %3532 = vmatpush1.msra.mxu0 0.0
        %3533 = vmatprep.subr.mxu0 0.0
        %3534 = vmatpush1.msra.mxu0 0.0
        %3535 = vmatprep.subr.mxu0 0.0
        %3536 = vmatpush1.msra.mxu0 0.0
        %3537 = vmatprep.subr.mxu0 0.0
        %3538 = vmatpush1.msra.mxu0 0.0
        %3539 = vmatprep.subr.mxu0 0.0
        %3540 = vmatpush1.msra.mxu0 0.0
        %3541 = vmatprep.subr.mxu0 0.0
        %3542 = vmatpush1.msra.mxu0 0.0
        %3543 = vmatprep.subr.mxu0 0.0
        %3544 = vmatpush1.msra.mxu0 0.0
        %3545 = vmatprep.subr.mxu0 0.0
        %3546 = vmatpush1.msra.mxu0 0.0
        %3547 = vmatprep.subr.mxu0 0.0
        %3548 = vmatpush1.msra.mxu0 0.0
        %3549 = vmatprep.subr.mxu0 0.0
        %3550 = vmatpush1.msra.mxu0 0.0
        %3551 = vmatprep.subr.mxu0 0.0
        %3552 = vmatpush1.msra.mxu0 0.0
        %3553 = vmatprep.subr.mxu0 0.0
        %3554 = vmatpush1.msra.mxu0 0.0
        %3555 = vmatprep.subr.mxu0 0.0
        %3556 = vmatpush1.msra.mxu0 0.0
        %3557 = vmatprep.subr.mxu0 0.0
        %3558 = vmatpush1.msra.mxu0 0.0
        %3559 = vmatprep.subr.mxu0 0.0
        %3560 = vmatpush1.msra.mxu0 0.0
        %3561 = vmatprep.subr.mxu0 0.0
        %3562 = vmatpush1.msra.mxu0 0.0
        %3563 = vmatprep.subr.mxu0 0.0
        %3564 = vmatpush1.msra.mxu0 0.0
        %3565 = vmatprep.mubr.f32.mxu0 0.0
        %3566 = vmatmul.mubr.f32.gmra.mrb[0].mxu0 %v3496
        %v3567 = vpop.f32.mrb[0].mxu0
        %v3568 = vadd.f32 %v1609, %v3567
        %v3569 = vpop.f32.mrb[0].mxu0
        %3570 = vmatprep.mubr.f32.mxu0 0.0
        %3571 = vmatmul.mubr.f32.gmra.mrb[0].mxu0 %v3499
        %v3572 = vpop.f32.mrb[0].mxu0
        %v3573 = vadd.f32 %v1609, %v3572
        %v3574 = vpop.f32.mrb[0].mxu0
        %3575 = vdwg.mxu0
        %v3576 = vand.u32 2147483647, %v3568
        %vm3577 = vcmp.le.f32.partialorder %v3576, 0.7853982
        %vm3578 = vcmp.lt.s32.totalorder %v3568, 0
        %v3579 = vand.u32 %v3568, 2139095040
        %v3580 = vshrl.u32 %v3579, 23
        %v3581 = vsub.s32 %v3580, 127
        %v3582 = vand.u32 2147483647, %v3568
        %v3583 = vand.u32 %v3582, 8388607
        %v3584 = vor.u32 %v3583, 8388608
        %v3585 = vsub.s32 0, %v3584
        %v3586 = vadd.s32 %v3581, 1
        %vm3587 = vcmp.gt.s32.totalorder %v3586, 0
        %v3588 = vsel %vm3587, %v3586, 0
        %v3589 = vshrl.u32 %v3588, 5
        %v3590 = vand.u32 %v3588, 31
        %v3591 = vsub.s32 32, %v3590
        %v3592 = vshrl.u32 683565275, %v3591
        %v3593 = vshll.u32 683565275, %v3590
        %v3594 = vshrl.u32 2475754826, %v3591
        %v3595 = vor.u32 %v3593, %v3594
        %v3596 = vshll.u32 2475754826, %v3590
        %v3597 = vshrl.u32 2131351028, %v3591
        %v3598 = vor.u32 %v3596, %v3597
        %v3599 = vshll.u32 2131351028, %v3590
        %v3600 = vshrl.u32 2102212464, %v3591
        %v3601 = vor.u32 %v3599, %v3600
        %v3602 = vshll.u32 2102212464, %v3590
        %v3603 = vshrl.u32 920167782, %v3591
        %v3604 = vor.u32 %v3602, %v3603
        %v3605 = vshll.u32 920167782, %v3590
        %v3606 = vshrl.u32 1326507024, %v3591
        %v3607 = vor.u32 %v3605, %v3606
        %vm3608 = vcmp.lt.s32.totalorder %v3589, 1
        %vm3609 = vcmp.lt.s32.totalorder %v3589, 2
        %vm3610 = vcmp.lt.s32.totalorder %v3589, 3
        %vm3611 = vcmp.lt.s32.totalorder %v3589, 4
        %v3612 = vsel %vm3608, %v3592, %v3595
        %v3613 = vsel %vm3611, %v3601, 2102212464
        %v3614 = vsel %vm3610, %v3598, %v3613
        %v3615 = vsel %vm3609, %v3612, %v3614
        %v3616 = vsel %vm3608, %v3595, %v3598
        %v3617 = vsel %vm3611, %v3604, 920167782
        %v3618 = vsel %vm3610, %v3601, %v3617
        %v3619 = vsel %vm3609, %v3616, %v3618
        %v3620 = vsel %vm3608, %v3598, %v3601
        %v3621 = vsel %vm3611, %v3607, 1326507024
        %v3622 = vsel %vm3610, %v3604, %v3621
        %v3623 = vsel %vm3609, %v3620, %v3622
        %v3624 = vshll.u32 %v3584, 8
        %v3625 = vmul.u32.u64.compose %v3624, %v3623
        %v3626 = vextract.low.u32 %v3625
        %v3627 = vextract.high.u32 %v3625
        %v3628 = vmul.u32.u64.compose %v3624, %v3619
        %v3629 = vextract.low.u32 %v3628
        %v3630 = vextract.high.u32 %v3628
        %v3631 = vmul.u32 %v3624, %v3615
        %v3632 = vadd.s32 %v3627, %v3629
        %vm3633 = vc.u32 %v3627, %v3629
        %v3634 = vadd.s32 %v3630, 1
        %v3635 = vsel %vm3633, %v3634, %v3630
        %v3636 = vadd.s32 %v3631, %v3635
        %v3637 = vadd.s32 %v3636, 536870912
        %v3638 = vshrl.u32 %v3637, 30
        %v3639 = vshll.u32 %v3638, 30
        %v3640 = vsub.s32 %v3636, %v3639
        %vm3641 = vcmp.lt.s32.totalorder %v3640, 0
        %v3642 = vsub.s32 0, %v3640
        %v3643 = vsel %vm3641, %v3642, %v3640
        %v3644 = vclz %v3643
        %v3645 = vsub.s32 %v3644, 2
        %vm3646 = vcmp.gt.s32.totalorder 0, %v3645
        %v3647 = vsel %vm3646, 0, %v3645
        %v3648 = vsub.s32 32, %v3647
        %v3649 = vshll.u32 %v3640, %v3647
        %v3650 = vshrl.u32 %v3632, %v3648
        %v3651 = vor.u32 %v3649, %v3650
        %v3652 = vsub.s32 4294967266, %v3647
        %v3653 = vadd.s32 %v3652, 127
        %v3654 = vshll.u32 %v3653, 23
        %v3655 = vor.u32 4788187, %v3654
        %v3656 = vand.u32 2147483647, %v3655
        %v3658 = vcvt.s32.f32 %v3651
        %v3659 = vmul.f32 %v3658, %v3656
        %v3660 = vxor.u32 %v3659, 2147483648
        %v3661 = vsel %vm3578, %v3660, %v3659
        %v3662 = vsub.s32 4, %v3638
        %v3663 = vsel %vm3578, %v3662, %v3638
        %v3664 = vsel %vm3577, %v3568, %v3661
        %v3665 = vsel %vm3577, 0, %v3663
        %v3666 = vcosq.f32.pop %v3664
        %v3667 = vsinq.f32.pop %v3664
        %vm3668 = vweird.f32 %v3568
        %v3669 = vadd.s32 %v3665, 3
        %v3670 = vand.u32 %v3669, 3
        %vm3671 = vcmp.lt.s32.totalorder %v3670, 2
        %vm3672 = vcmp.eq.s32.totalorder %v3670, 0
        %v3673 = vxor.u32 %v3667, 2147483648
        %v3674 = vsel %vm3672, %v3666, %v3673
        %vm3675 = vcmp.eq.s32.totalorder %v3670, 2
        %v3676 = vxor.u32 %v3666, 2147483648
        %v3677 = vsel %vm3675, %v3676, %v3667
        %v3678 = vsel %vm3671, %v3674, %v3677
        %v3679 = vsel %vm3668, nan, %v3678
        %v3680 = vand.u32 2147483647, %v3573
        %vm3681 = vcmp.le.f32.partialorder %v3680, 0.7853982
        %vm3682 = vcmp.lt.s32.totalorder %v3573, 0
        %v3683 = vand.u32 %v3573, 2139095040
        %v3684 = vshrl.u32 %v3683, 23
        %v3685 = vsub.s32 %v3684, 127
        %v3686 = vand.u32 2147483647, %v3573
        %v3687 = vand.u32 %v3686, 8388607
        %v3688 = vor.u32 %v3687, 8388608
        %v3689 = vsub.s32 0, %v3688
        %v3690 = vadd.s32 %v3685, 1
        %vm3691 = vcmp.gt.s32.totalorder %v3690, 0
        %v3692 = vsel %vm3691, %v3690, 0
        %v3693 = vshrl.u32 %v3692, 5
        %v3694 = vand.u32 %v3692, 31
        %v3695 = vsub.s32 32, %v3694
        %v3696 = vshrl.u32 683565275, %v3695
        %v3697 = vshll.u32 683565275, %v3694
        %v3698 = vshrl.u32 2475754826, %v3695
        %v3699 = vor.u32 %v3697, %v3698
        %v3700 = vshll.u32 2475754826, %v3694
        %v3701 = vshrl.u32 2131351028, %v3695
        %v3702 = vor.u32 %v3700, %v3701
        %v3703 = vshll.u32 2131351028, %v3694
        %v3704 = vshrl.u32 2102212464, %v3695
        %v3705 = vor.u32 %v3703, %v3704
        %v3706 = vshll.u32 2102212464, %v3694
        %v3707 = vshrl.u32 920167782, %v3695
        %v3708 = vor.u32 %v3706, %v3707
        %v3709 = vshll.u32 920167782, %v3694
        %v3710 = vshrl.u32 1326507024, %v3695
        %v3711 = vor.u32 %v3709, %v3710
        %vm3712 = vcmp.lt.s32.totalorder %v3693, 1
        %vm3713 = vcmp.lt.s32.totalorder %v3693, 2
        %vm3714 = vcmp.lt.s32.totalorder %v3693, 3
        %vm3715 = vcmp.lt.s32.totalorder %v3693, 4
        %v3716 = vsel %vm3712, %v3696, %v3699
        %v3717 = vsel %vm3715, %v3705, 2102212464
        %v3718 = vsel %vm3714, %v3702, %v3717
        %v3719 = vsel %vm3713, %v3716, %v3718
        %v3720 = vsel %vm3712, %v3699, %v3702
        %v3721 = vsel %vm3715, %v3708, 920167782
        %v3722 = vsel %vm3714, %v3705, %v3721
        %v3723 = vsel %vm3713, %v3720, %v3722
        %v3724 = vsel %vm3712, %v3702, %v3705
        %v3725 = vsel %vm3715, %v3711, 1326507024
        %v3726 = vsel %vm3714, %v3708, %v3725
        %v3727 = vsel %vm3713, %v3724, %v3726
        %v3728 = vshll.u32 %v3688, 8
        %v3729 = vmul.u32.u64.compose %v3728, %v3727
        %v3730 = vextract.low.u32 %v3729
        %v3731 = vextract.high.u32 %v3729
        %v3732 = vmul.u32.u64.compose %v3728, %v3723
        %v3733 = vextract.low.u32 %v3732
        %v3734 = vextract.high.u32 %v3732
        %v3735 = vmul.u32 %v3728, %v3719
        %v3736 = vadd.s32 %v3731, %v3733
        %vm3737 = vc.u32 %v3731, %v3733
        %v3738 = vadd.s32 %v3734, 1
        %v3739 = vsel %vm3737, %v3738, %v3734
        %v3740 = vadd.s32 %v3735, %v3739
        %v3741 = vadd.s32 %v3740, 536870912
        %v3742 = vshrl.u32 %v3741, 30
        %v3743 = vshll.u32 %v3742, 30
        %v3744 = vsub.s32 %v3740, %v3743
        %vm3745 = vcmp.lt.s32.totalorder %v3744, 0
        %v3746 = vsub.s32 0, %v3744
        %v3747 = vsel %vm3745, %v3746, %v3744
        %v3748 = vclz %v3747
        %v3749 = vsub.s32 %v3748, 2
        %vm3750 = vcmp.gt.s32.totalorder 0, %v3749
        %v3751 = vsel %vm3750, 0, %v3749
        %v3752 = vsub.s32 32, %v3751
        %v3753 = vshll.u32 %v3744, %v3751
        %v3754 = vshrl.u32 %v3736, %v3752
        %v3755 = vor.u32 %v3753, %v3754
        %v3756 = vsub.s32 4294967266, %v3751
        %v3757 = vadd.s32 %v3756, 127
        %v3758 = vshll.u32 %v3757, 23
        %v3759 = vor.u32 4788187, %v3758
        %v3760 = vand.u32 2147483647, %v3759
        %v3762 = vcvt.s32.f32 %v3755
        %v3763 = vmul.f32 %v3762, %v3760
        %v3764 = vxor.u32 %v3763, 2147483648
        %v3765 = vsel %vm3682, %v3764, %v3763
        %v3766 = vsub.s32 4, %v3742
        %v3767 = vsel %vm3682, %v3766, %v3742
        %v3768 = vsel %vm3681, %v3573, %v3765
        %v3769 = vsel %vm3681, 0, %v3767
        %v3770 = vcosq.f32.pop %v3768
        %v3771 = vsinq.f32.pop %v3768
        %vm3772 = vweird.f32 %v3573
        %v3773 = vadd.s32 %v3769, 3
        %v3774 = vand.u32 %v3773, 3
        %vm3775 = vcmp.lt.s32.totalorder %v3774, 2
        %vm3776 = vcmp.eq.s32.totalorder %v3774, 0
        %v3777 = vxor.u32 %v3771, 2147483648
        %v3778 = vsel %vm3776, %v3770, %v3777
        %vm3779 = vcmp.eq.s32.totalorder %v3774, 2
        %v3780 = vxor.u32 %v3770, 2147483648
        %v3781 = vsel %vm3779, %v3780, %v3771
        %v3782 = vsel %vm3775, %v3778, %v3781
        %v3783 = vsel %vm3772, nan, %v3782
        %v3784 = vmul.f32 %v3679, %v3424
        %v3785 = vmul.f32 %v3783, %v3424
        %v3786 = vadd.f32 %v1162, %v3784
        %v3787 = vadd.f32 %v1163, %v3785
        %v3788 = vpack.c.bf16 %v3787, %v3786
        %v3789 = vpack.c.bf16 %v3443, %v3442
        %v3790 = vpack.c.bf16 %v3445, %v3444
        %v3791 = vpack.c.bf16 %v3447, %v3446
        %v3792 = vpack.c.bf16 %v3449, %v3448
        %v3793 = vpack.c.bf16 %v3451, %v3450
        %v3794 = vpack.c.bf16 %v3453, %v3452
        %v3795 = vpack.c.bf16 %v3455, %v3454
        %v3796 = vpack.c.bf16 %v3457, %v3456
        %3797 = vmatprep.subr.bf16.mxu0 0
        %3798 = vmatpush1.bf16.xpose.msra.mxu0 %v3789
        %3799 = vmatprep.subr.bf16.mxu0 0
        %3800 = vmatpush1.bf16.xpose.msra.mxu0 %v3790
        %3801 = vmatprep.subr.bf16.mxu0 0
        %3802 = vmatpush1.bf16.xpose.msra.mxu0 %v3791
        %3803 = vmatprep.subr.bf16.mxu0 0
        %3804 = vmatpush1.bf16.xpose.msra.mxu0 %v3792
        %3805 = vmatprep.subr.bf16.mxu0 0
        %3806 = vmatpush1.bf16.xpose.msra.mxu0 %v3793
        %3807 = vmatprep.subr.bf16.mxu0 0
        %3808 = vmatpush1.bf16.xpose.msra.mxu0 %v3794
        %3809 = vmatprep.subr.bf16.mxu0 0
        %3810 = vmatpush1.bf16.xpose.msra.mxu0 %v3795
        %3811 = vmatprep.subr.bf16.mxu0 0
        %3812 = vmatpush1.bf16.xpose.msra.mxu0 %v3796
        %3813 = vmatprep.subr.bf16.mxu0 0
        %3814 = vmatpush1.bf16.xpose.msra.mxu0 0
        %3815 = vmatprep.subr.bf16.mxu0 0
        %3816 = vmatpush1.bf16.xpose.msra.mxu0 0
        %3817 = vmatprep.subr.bf16.mxu0 0
        %3818 = vmatpush1.bf16.xpose.msra.mxu0 0
        %3819 = vmatprep.subr.bf16.mxu0 0
        %3820 = vmatpush1.bf16.xpose.msra.mxu0 0
        %3821 = vmatprep.subr.bf16.mxu0 0
        %3822 = vmatpush1.bf16.xpose.msra.mxu0 0
        %3823 = vmatprep.subr.bf16.mxu0 0
        %3824 = vmatpush1.bf16.xpose.msra.mxu0 0
        %3825 = vmatprep.subr.bf16.mxu0 0
        %3826 = vmatpush1.bf16.xpose.msra.mxu0 0
        %3827 = vmatprep.subr.bf16.mxu0 0
        %3828 = vmatpush1.bf16.xpose.msra.mxu0 0
        %3829 = vmatprep.mubr.bf16.mxu0 0
        %3830 = vmatmul.mubr.bf16.gmra.mrb[0].mxu0 %v3788
        %v3831 = vpop.f32.mrb[0].mxu0
        %v3832 = vadd.f32 0.0, %v3831
        %v3833 = vpop.f32.mrb[0].mxu0
        %v3834 = vpop.f32.mrb[0].mxu0
        %v3835 = vadd.f32 0.0, %v3834
        %v3836 = vpop.f32.mrb[0].mxu0
        %3837 = vdwg.mxu0
        %v3838 = vmul.f32 %v3832, 0.17677669
        %v3839 = vmul.f32 %v3835, 0.17677669
        %v3840 = vstv %s959
        %vm3841 = vcmp.lt.s32.totalorder %v874, %v3840
        %vm3842 = vcmp.eq.s32.totalorder %v874, 16
        %vm3843 = vmor %vm3841, %vm3842
        %v3844 = vsel %vm3843, %v3838, -1e+30
        %v3845 = vsel %vm3843, %v3839, -1e+30
        %3846 = vmax.xlane.f32.xlu0 %v3844
        %v3847 = vpop.xlane.xlu0 %3846
        %3848 = vmax.xlane.f32.xlu0 %v3845
        %v3849 = vpop.xlane.xlu0 %3848
        %v3850 = vsub.f32 %v3844, %v3847
        %v3851 = vsub.f32 %v3845, %v3849
        %v3852 = vmul.f32 %v3850, 1.442695
        %v3853 = vpow.pop %v3852
        %v3854 = vmul.f32 %v3851, 1.442695
        %v3855 = vpow.pop %v3854
        %3856 = vadd.xlane.f32.xlu0 %v3853
        %v3857 = vpop.xlane.xlu0 %3856
        %3858 = vadd.xlane.f32.xlu0 %v3855
        %v3859 = vpop.xlane.xlu0 %3858
        %v3860 = vrcp.pop %v3857
        %v3861 = vrcp.pop %v3859
        %v3862 = vmul.f32 %v3853, %v3860
        %v3863 = vmul.f32 %v3855, %v3861
        %v3864 = vpack.c.bf16 %v3863, %v3862
        %v3866 = vunpack.c.l.b16 %v3864
        %v3867 = vunpack.c.h.b16 %v3864
        %v3868 = vpack.c.b16 %v3866, %v3866
        %v3869 = vpack.c.b16 %v3867, %v3867
        %3872 = vst [vmem:[%s780] sm:$0xf] %v3868
        %3873 = vst [vmem:[%s780 + $0x4] sm:$0xf] %v3869
        %v3874 = vpack.c.bf16 %v1396, %v1395
        %v3875 = vpack.c.bf16 %v1398, %v1397
        %v3876 = vpack.c.bf16 %v1400, %v1399
        %v3877 = vpack.c.bf16 %v1402, %v1401
        %v3878 = vpack.c.bf16 %v1404, %v1403
        %v3879 = vpack.c.bf16 %v1406, %v1405
        %v3880 = vpack.c.bf16 %v1408, %v1407
        %v3881 = vpack.c.bf16 %v1410, %v1409
        %3882 = vmatprep.subr.bf16.mxu0 0
        %3883 = vmatpush1.bf16.msra.mxu0 %v3874
        %3884 = vmatprep.subr.bf16.mxu0 0
        %3885 = vmatpush1.bf16.msra.mxu0 %v3875
        %3886 = vmatprep.subr.bf16.mxu0 0
        %3887 = vmatpush1.bf16.msra.mxu0 %v3876
        %3888 = vmatprep.subr.bf16.mxu0 0
        %3889 = vmatpush1.bf16.msra.mxu0 %v3877
        %3890 = vmatprep.subr.bf16.mxu0 0
        %3891 = vmatpush1.bf16.msra.mxu0 %v3878
        %3892 = vmatprep.subr.bf16.mxu0 0
        %3893 = vmatpush1.bf16.msra.mxu0 %v3879
        %3894 = vmatprep.subr.bf16.mxu0 0
        %3895 = vmatpush1.bf16.msra.mxu0 %v3880
        %3896 = vmatprep.subr.bf16.mxu0 0
        %3897 = vmatpush1.bf16.msra.mxu0 %v3881
        %3898 = vmatprep.subr.bf16.mxu0 0
        %3899 = vmatpush1.bf16.msra.mxu0 0
        %3900 = vmatprep.subr.bf16.mxu0 0
        %3901 = vmatpush1.bf16.msra.mxu0 0
        %3902 = vmatprep.subr.bf16.mxu0 0
        %3903 = vmatpush1.bf16.msra.mxu0 0
        %3904 = vmatprep.subr.bf16.mxu0 0
        %3905 = vmatpush1.bf16.msra.mxu0 0
        %3906 = vmatprep.subr.bf16.mxu0 0
        %3907 = vmatpush1.bf16.msra.mxu0 0
        %3908 = vmatprep.subr.bf16.mxu0 0
        %3909 = vmatpush1.bf16.msra.mxu0 0
        %3910 = vmatprep.subr.bf16.mxu0 0
        %3911 = vmatpush1.bf16.msra.mxu0 0
        %3912 = vmatprep.subr.bf16.mxu0 0
        %3913 = vmatpush1.bf16.msra.mxu0 0
        %3914 = vmatprep.mubr.bf16.mxu0 0
        %3915 = vmatmul.mubr.bf16.gmra.mrb[0].mxu0 %v3864
        %v3916 = vpop.f32.mrb[0].mxu0
        %v3917 = vadd.f32 0.0, %v3916
        %v3918 = vpop.f32.mrb[0].mxu0
        %v3919 = vpop.f32.mrb[0].mxu0
        %v3920 = vadd.f32 0.0, %v3919
        %v3921 = vpop.f32.mrb[0].mxu0
        %3922 = vdwg.mxu0
        %v3923 = vpack.c.bf16 %v3920, %v3917
        %v3925 = vlaneseq
        %v3926 = vshrl.u32 %v3925, 7
        %v3927 = vsub.s32 0, %v3926
        %v3928 = vrot.slane %v855, %v3927
        %v3946 = vunpack.c.l.b16 %v839
        %v3947 = vunpack.c.l.b16 %v840
        %v3948 = vunpack.c.l.b16 %v841
        %v3949 = vunpack.c.l.b16 %v842
        %v3950 = vunpack.c.l.b16 %v843
        %v3951 = vunpack.c.l.b16 %v844
        %v3952 = vunpack.c.l.b16 %v845
        %v3953 = vunpack.c.l.b16 %v846
        %v3954 = vunpack.c.l.b16 %v847
        %v3955 = vunpack.c.l.b16 %v848
        %v3956 = vunpack.c.l.b16 %v849
        %v3957 = vunpack.c.l.b16 %v850
        %v3958 = vunpack.c.l.b16 %v851
        %v3959 = vunpack.c.l.b16 %v852
        %v3960 = vunpack.c.l.b16 %v853
        %v3961 = vunpack.c.l.b16 %v854
        %v3962 = vpack.c.b16 %v3947, %v3946
        %v3963 = vpack.c.b16 %v3949, %v3948
        %v3964 = vpack.c.b16 %v3951, %v3950
        %v3965 = vpack.c.b16 %v3953, %v3952
        %v3966 = vpack.c.b16 %v3955, %v3954
        %v3967 = vpack.c.b16 %v3957, %v3956
        %v3968 = vpack.c.b16 %v3959, %v3958
        %v3969 = vpack.c.b16 %v3961, %v3960
        %3978 = vmatprep.subr.bf16.mxu0 0
        %3979 = vmatpush1.bf16.msra.mxu0 %v3962
        %3980 = vmatprep.subr.bf16.mxu0 0
        %3981 = vmatpush1.bf16.msra.mxu0 %v3963
        %3982 = vmatprep.subr.bf16.mxu0 0
        %3983 = vmatpush1.bf16.msra.mxu0 %v3964
        %3984 = vmatprep.subr.bf16.mxu0 0
        %3985 = vmatpush1.bf16.msra.mxu0 %v3965
        %3986 = vmatprep.subr.bf16.mxu0 0
        %3987 = vmatpush1.bf16.msra.mxu0 %v3966
        %3988 = vmatprep.subr.bf16.mxu0 0
        %3989 = vmatpush1.bf16.msra.mxu0 %v3967
        %3990 = vmatprep.subr.bf16.mxu0 0
        %3991 = vmatpush1.bf16.msra.mxu0 %v3968
        %3992 = vmatprep.subr.bf16.mxu0 0
        %3993 = vmatpush1.bf16.msra.mxu0 %v3969
        %3994 = vmatprep.subr.bf16.mxu0 0
        %3995 = vmatpush1.bf16.msra.mxu0 0
        %3996 = vmatprep.subr.bf16.mxu0 0
        %3997 = vmatpush1.bf16.msra.mxu0 0
        %3998 = vmatprep.subr.bf16.mxu0 0
        %3999 = vmatpush1.bf16.msra.mxu0 0
        %4000 = vmatprep.subr.bf16.mxu0 0
        %4001 = vmatpush1.bf16.msra.mxu0 0
        %4002 = vmatprep.subr.bf16.mxu0 0
        %4003 = vmatpush1.bf16.msra.mxu0 0
        %4004 = vmatprep.subr.bf16.mxu0 0
        %4005 = vmatpush1.bf16.msra.mxu0 0
        %4006 = vmatprep.subr.bf16.mxu0 0
        %4007 = vmatpush1.bf16.msra.mxu0 0
        %4008 = vmatprep.subr.bf16.mxu0 0
        %4009 = vmatpush1.bf16.msra.mxu0 0
        %4010 = vmatprep.mubr.bf16.mxu0 0
        %4011 = vmatmul.mubr.bf16.gmra.mrb[0].mxu0 %v3923
        %v4012 = vpop.f32.mrb[0].mxu0
        %v4013 = vadd.f32 %v3928, %v4012
        %v4014 = vpop.f32.mrb[0].mxu0
        %v4015 = vpop.f32.mrb[0].mxu0
        %v4016 = vadd.f32 %v3928, %v4015
        %v4017 = vpop.f32.mrb[0].mxu0
        %4018 = vdwg.mxu0
        %v4019 = vpack.c.bf16 %v4016, %v4013
        %v4021 = vunpack.c.l.b16 %v4019
        %v4022 = vunpack.c.h.b16 %v4019
        %v4023 = vpack.c.b16 %v4021, %v4021
        %v4024 = vpack.c.b16 %v4022, %v4022
        %4027 = vst [vmem:[%s770] sm:$0xf] %v4023
        %4028 = vst [vmem:[%s770 + $0x4] sm:$0xf] %v4024
        %v4029 = vstv %s958
        %vm4030 = vcmp.lt.s32.totalorder %v876, %v4029
        %vm4031 = vcmp.lt.s32.totalorder %v877, %v4029
        %vm4032 = vcmp.eq.s32.totalorder %v876, 8
        %vm4033 = vcmp.eq.s32.totalorder %v877, 8
        %vm4034 = vmor %vm4030, %vm4032
        %vm4035 = vmor %vm4031, %vm4033
        %v4036 = vsel %vm4034, %v3838, -1e+30
        %v4037 = vsel %vm4035, %v3839, -1e+30
        %v4038 = vmax.f32 %v4036, %v4037
        %v4039 = vrot.slane %v4038, 4
        %v4040 = vmax.f32 %v4038, %v4039
        %v4041 = vrot.slane %v4040, 2
        %v4042 = vmax.f32 %v4040, %v4041
        %v4043 = vrot.slane %v4042, 1
        %v4044 = vmax.f32 %v4042, %v4043
        %v4045 = vsub.f32 %v4036, %v4044
        %v4046 = vsub.f32 %v4037, %v4044
        %v4047 = vmul.f32 %v4045, 1.442695
        %v4048 = vpow.pop %v4047
        %v4049 = vmul.f32 %v4046, 1.442695
        %v4050 = vpow.pop %v4049
        %v4051 = vadd.f32 %v4048, %v4050
        %v4052 = vrot.slane %v4051, 4
        %v4053 = vadd.f32 %v4051, %v4052
        %v4054 = vrot.slane %v4053, 2
        %v4055 = vadd.f32 %v4053, %v4054
        %v4056 = vrot.slane %v4055, 1
        %v4057 = vadd.f32 %v4055, %v4056
        %v4058 = vrcp.pop %v4057
        %v4059 = vmul.f32 %v4048, %v4058
        %v4060 = vmul.f32 %v4050, %v4058
        %v4061 = vpack.c.bf16 %v4060, %v4059
        %v4062 = vpack.c.bf16 %v1163, %v1162
        %4063 = vxpose.xlu0.c.b16.start [1/8] %v4061, 128
        %4064 = vxpose.xlu0.c.b16.cont [2/8] 0, 128
        %4065 = vxpose.xlu0.c.b16.cont [3/8] 0, 128
        %4066 = vxpose.xlu0.c.b16.cont [4/8] 0, 128
        %4067 = vxpose.xlu0.c.b16.cont [5/8] 0, 128
        %4068 = vxpose.xlu0.c.b16.cont [6/8] 0, 128
        %4069 = vxpose.xlu0.c.b16.cont [7/8] 0, 128
        %4070 = vxpose.xlu0.c.b16.end [8/8] 0, 128
        %v4071 = vpop.trf.xlu0
        %v4072 = vpop.trf.xlu0
        %v4073 = vpop.trf.xlu0
        %v4074 = vpop.trf.xlu0
        %v4075 = vpop.trf.xlu0
        %v4076 = vpop.trf.xlu0
        %v4077 = vpop.trf.xlu0
        %v4078 = vpop.trf.xlu0
        %v4080 = vsel %vm3494, %v4071, 0
        %v4083 = vsel %vm3494, %v4072, 0
        %v4086 = vsel %vm3494, %v4073, 0
        %v4089 = vsel %vm3494, %v4074, 0
        %v4092 = vsel %vm3494, %v4075, 0
        %v4095 = vsel %vm3494, %v4076, 0
        %v4098 = vsel %vm3494, %v4077, 0
        %v4101 = vsel %vm3494, %v4078, 0
        %4103 = vmatprep.subr.bf16.mxu0 0
        %4104 = vmatpush1.bf16.msra.mxu0 %v4062
        %4105 = vmatprep.subr.bf16.mxu0 0
        %4106 = vmatpush1.bf16.msra.mxu0 0
        %4107 = vmatprep.subr.bf16.mxu0 0
        %4108 = vmatpush1.bf16.msra.mxu0 0
        %4109 = vmatprep.subr.bf16.mxu0 0
        %4110 = vmatpush1.bf16.msra.mxu0 0
        %4111 = vmatprep.subr.bf16.mxu0 0
        %4112 = vmatpush1.bf16.msra.mxu0 0
        %4113 = vmatprep.subr.bf16.mxu0 0
        %4114 = vmatpush1.bf16.msra.mxu0 0
        %4115 = vmatprep.subr.bf16.mxu0 0
        %4116 = vmatpush1.bf16.msra.mxu0 0
        %4117 = vmatprep.subr.bf16.mxu0 0
        %4118 = vmatpush1.bf16.msra.mxu0 0
        %4119 = vmatprep.subr.bf16.mxu0 0
        %4120 = vmatpush1.bf16.msra.mxu0 0
        %4121 = vmatprep.subr.bf16.mxu0 0
        %4122 = vmatpush1.bf16.msra.mxu0 0
        %4123 = vmatprep.subr.bf16.mxu0 0
        %4124 = vmatpush1.bf16.msra.mxu0 0
        %4125 = vmatprep.subr.bf16.mxu0 0
        %4126 = vmatpush1.bf16.msra.mxu0 0
        %4127 = vmatprep.subr.bf16.mxu0 0
        %4128 = vmatpush1.bf16.msra.mxu0 0
        %4129 = vmatprep.subr.bf16.mxu0 0
        %4130 = vmatpush1.bf16.msra.mxu0 0
        %4131 = vmatprep.subr.bf16.mxu0 0
        %4132 = vmatpush1.bf16.msra.mxu0 0
        %4133 = vmatprep.subr.bf16.mxu0 0
        %4134 = vmatpush1.bf16.msra.mxu0 0
        %4135 = vmatprep.mubr.bf16.mxu0 0
        %4136 = vmatmul.mubr.bf16.gmra.mrb[0].mxu0 %v4080
        %v4137 = vpop.f32.mrb[0].mxu0
        %v4138 = vadd.f32 0.0, %v4137
        %v4139 = vpop.f32.mrb[0].mxu0
        %v4140 = vpop.f32.mrb[0].mxu0
        %v4141 = vadd.f32 0.0, %v4140
        %v4142 = vpop.f32.mrb[0].mxu0
        %4143 = vmatprep.mubr.bf16.mxu0 0
        %4144 = vmatmul.mubr.bf16.gmra.mrb[0].mxu0 %v4083
        %v4145 = vpop.f32.mrb[0].mxu0
        %v4146 = vadd.f32 0.0, %v4145
        %v4147 = vpop.f32.mrb[0].mxu0
        %v4148 = vpop.f32.mrb[0].mxu0
        %v4149 = vadd.f32 0.0, %v4148
        %v4150 = vpop.f32.mrb[0].mxu0
        %4151 = vmatprep.mubr.bf16.mxu0 0
        %4152 = vmatmul.mubr.bf16.gmra.mrb[0].mxu0 %v4086
        %v4153 = vpop.f32.mrb[0].mxu0
        %v4154 = vadd.f32 0.0, %v4153
        %v4155 = vpop.f32.mrb[0].mxu0
        %v4156 = vpop.f32.mrb[0].mxu0
        %v4157 = vadd.f32 0.0, %v4156
        %v4158 = vpop.f32.mrb[0].mxu0
        %4159 = vmatprep.mubr.bf16.mxu0 0
        %4160 = vmatmul.mubr.bf16.gmra.mrb[0].mxu0 %v4089
        %v4161 = vpop.f32.mrb[0].mxu0
        %v4162 = vadd.f32 0.0, %v4161
        %v4163 = vpop.f32.mrb[0].mxu0
        %v4164 = vpop.f32.mrb[0].mxu0
        %v4165 = vadd.f32 0.0, %v4164
        %v4166 = vpop.f32.mrb[0].mxu0
        %4167 = vmatprep.mubr.bf16.mxu0 0
        %4168 = vmatmul.mubr.bf16.gmra.mrb[0].mxu0 %v4092
        %v4169 = vpop.f32.mrb[0].mxu0
        %v4170 = vadd.f32 0.0, %v4169
        %v4171 = vpop.f32.mrb[0].mxu0
        %v4172 = vpop.f32.mrb[0].mxu0
        %v4173 = vadd.f32 0.0, %v4172
        %v4174 = vpop.f32.mrb[0].mxu0
        %4175 = vmatprep.mubr.bf16.mxu0 0
        %4176 = vmatmul.mubr.bf16.gmra.mrb[0].mxu0 %v4095
        %v4177 = vpop.f32.mrb[0].mxu0
        %v4178 = vadd.f32 0.0, %v4177
        %v4179 = vpop.f32.mrb[0].mxu0
        %v4180 = vpop.f32.mrb[0].mxu0
        %v4181 = vadd.f32 0.0, %v4180
        %v4182 = vpop.f32.mrb[0].mxu0
        %4183 = vmatprep.mubr.bf16.mxu0 0
        %4184 = vmatmul.mubr.bf16.gmra.mrb[0].mxu0 %v4098
        %v4185 = vpop.f32.mrb[0].mxu0
        %v4186 = vadd.f32 0.0, %v4185
        %v4187 = vpop.f32.mrb[0].mxu0
        %v4188 = vpop.f32.mrb[0].mxu0
        %v4189 = vadd.f32 0.0, %v4188
        %v4190 = vpop.f32.mrb[0].mxu0
        %4191 = vmatprep.mubr.bf16.mxu0 0
        %4192 = vmatmul.mubr.bf16.gmra.mrb[0].mxu0 %v4101
        %v4193 = vpop.f32.mrb[0].mxu0
        %v4194 = vadd.f32 0.0, %v4193
        %v4195 = vpop.f32.mrb[0].mxu0
        %v4196 = vpop.f32.mrb[0].mxu0
        %v4197 = vadd.f32 0.0, %v4196
        %v4198 = vpop.f32.mrb[0].mxu0
        %4199 = vdwg.mxu0
        %v4200 = vpack.c.bf16 %v4141, %v4138
        %v4201 = vpack.c.bf16 %v4149, %v4146
        %v4202 = vpack.c.bf16 %v4157, %v4154
        %v4203 = vpack.c.bf16 %v4165, %v4162
        %v4204 = vpack.c.bf16 %v4173, %v4170
        %v4205 = vpack.c.bf16 %v4181, %v4178
        %v4206 = vpack.c.bf16 %v4189, %v4186
        %v4207 = vpack.c.bf16 %v4197, %v4194
        %v4209 = vlaneseq
        %v4210 = vshrl.u32 %v4209, 7
        %v4211 = vsub.s32 0, %v4210
        %v4212 = vrot.slane %v872, %v4211
        %v4230 = vunpack.c.l.b16 %v856
        %v4231 = vunpack.c.l.b16 %v857
        %v4232 = vunpack.c.l.b16 %v858
        %v4233 = vunpack.c.l.b16 %v859
        %v4234 = vunpack.c.l.b16 %v860
        %v4235 = vunpack.c.l.b16 %v861
        %v4236 = vunpack.c.l.b16 %v862
        %v4237 = vunpack.c.l.b16 %v863
        %v4238 = vunpack.c.l.b16 %v864
        %v4239 = vunpack.c.l.b16 %v865
        %v4240 = vunpack.c.l.b16 %v866
        %v4241 = vunpack.c.l.b16 %v867
        %v4242 = vunpack.c.l.b16 %v868
        %v4243 = vunpack.c.l.b16 %v869
        %v4244 = vunpack.c.l.b16 %v870
        %v4245 = vunpack.c.l.b16 %v871
        %v4246 = vpack.c.b16 %v4231, %v4230
        %v4247 = vpack.c.b16 %v4233, %v4232
        %v4248 = vpack.c.b16 %v4235, %v4234
        %v4249 = vpack.c.b16 %v4237, %v4236
        %v4250 = vpack.c.b16 %v4239, %v4238
        %v4251 = vpack.c.b16 %v4241, %v4240
        %v4252 = vpack.c.b16 %v4243, %v4242
        %v4253 = vpack.c.b16 %v4245, %v4244
        %4262 = vmatprep.subr.bf16.mxu0 0
        %4263 = vmatpush1.bf16.msra.mxu0 %v4246
        %4264 = vmatprep.subr.bf16.mxu0 0
        %4265 = vmatpush1.bf16.msra.mxu0 %v4247
        %4266 = vmatprep.subr.bf16.mxu0 0
        %4267 = vmatpush1.bf16.msra.mxu0 %v4248
        %4268 = vmatprep.subr.bf16.mxu0 0
        %4269 = vmatpush1.bf16.msra.mxu0 %v4249
        %4270 = vmatprep.subr.bf16.mxu0 0
        %4271 = vmatpush1.bf16.msra.mxu0 %v4250
        %4272 = vmatprep.subr.bf16.mxu0 0
        %4273 = vmatpush1.bf16.msra.mxu0 %v4251
        %4274 = vmatprep.subr.bf16.mxu0 0
        %4275 = vmatpush1.bf16.msra.mxu0 %v4252
        %4276 = vmatprep.subr.bf16.mxu0 0
        %4277 = vmatpush1.bf16.msra.mxu0 %v4253
        %4278 = vmatprep.subr.bf16.mxu0 0
        %4279 = vmatpush1.bf16.msra.mxu0 0
        %4280 = vmatprep.subr.bf16.mxu0 0
        %4281 = vmatpush1.bf16.msra.mxu0 0
        %4282 = vmatprep.subr.bf16.mxu0 0
        %4283 = vmatpush1.bf16.msra.mxu0 0
        %4284 = vmatprep.subr.bf16.mxu0 0
        %4285 = vmatpush1.bf16.msra.mxu0 0
        %4286 = vmatprep.subr.bf16.mxu0 0
        %4287 = vmatpush1.bf16.msra.mxu0 0
        %4288 = vmatprep.subr.bf16.mxu0 0
        %4289 = vmatpush1.bf16.msra.mxu0 0
        %4290 = vmatprep.subr.bf16.mxu0 0
        %4291 = vmatpush1.bf16.msra.mxu0 0
        %4292 = vmatprep.subr.bf16.mxu0 0
        %4293 = vmatpush1.bf16.msra.mxu0 0
        %4294 = vmatprep.mubr.bf16.mxu0 0
        %4295 = vmatmul.mubr.bf16.gmra.mrb[0].mxu0 %v4200
        %v4296 = vpop.f32.mrb[0].mxu0
        %v4297 = vadd.f32 %v4212, %v4296
        %v4298 = vpop.f32.mrb[0].mxu0
        %v4299 = vpop.f32.mrb[0].mxu0
        %v4300 = vadd.f32 %v4212, %v4299
        %v4301 = vpop.f32.mrb[0].mxu0
        %4302 = vmatprep.mubr.bf16.mxu0 0
        %4303 = vmatmul.mubr.bf16.gmra.mrb[0].mxu0 %v4201
        %v4304 = vpop.f32.mrb[0].mxu0
        %v4305 = vadd.f32 %v4212, %v4304
        %v4306 = vpop.f32.mrb[0].mxu0
        %v4307 = vpop.f32.mrb[0].mxu0
        %v4308 = vadd.f32 %v4212, %v4307
        %v4309 = vpop.f32.mrb[0].mxu0
        %4310 = vmatprep.mubr.bf16.mxu0 0
        %4311 = vmatmul.mubr.bf16.gmra.mrb[0].mxu0 %v4202
        %v4312 = vpop.f32.mrb[0].mxu0
        %v4313 = vadd.f32 %v4212, %v4312
        %v4314 = vpop.f32.mrb[0].mxu0
        %v4315 = vpop.f32.mrb[0].mxu0
        %v4316 = vadd.f32 %v4212, %v4315
        %v4317 = vpop.f32.mrb[0].mxu0
        %4318 = vmatprep.mubr.bf16.mxu0 0
        %4319 = vmatmul.mubr.bf16.gmra.mrb[0].mxu0 %v4203
        %v4320 = vpop.f32.mrb[0].mxu0
        %v4321 = vadd.f32 %v4212, %v4320
        %v4322 = vpop.f32.mrb[0].mxu0
        %v4323 = vpop.f32.mrb[0].mxu0
        %v4324 = vadd.f32 %v4212, %v4323
        %v4325 = vpop.f32.mrb[0].mxu0
        %4326 = vmatprep.mubr.bf16.mxu0 0
        %4327 = vmatmul.mubr.bf16.gmra.mrb[0].mxu0 %v4204
        %v4328 = vpop.f32.mrb[0].mxu0
        %v4329 = vadd.f32 %v4212, %v4328
        %v4330 = vpop.f32.mrb[0].mxu0
        %v4331 = vpop.f32.mrb[0].mxu0
        %v4332 = vadd.f32 %v4212, %v4331
        %v4333 = vpop.f32.mrb[0].mxu0
        %4334 = vmatprep.mubr.bf16.mxu0 0
        %4335 = vmatmul.mubr.bf16.gmra.mrb[0].mxu0 %v4205
        %v4336 = vpop.f32.mrb[0].mxu0
        %v4337 = vadd.f32 %v4212, %v4336
        %v4338 = vpop.f32.mrb[0].mxu0
        %v4339 = vpop.f32.mrb[0].mxu0
        %v4340 = vadd.f32 %v4212, %v4339
        %v4341 = vpop.f32.mrb[0].mxu0
        %4342 = vmatprep.mubr.bf16.mxu0 0
        %4343 = vmatmul.mubr.bf16.gmra.mrb[0].mxu0 %v4206
        %v4344 = vpop.f32.mrb[0].mxu0
        %v4345 = vadd.f32 %v4212, %v4344
        %v4346 = vpop.f32.mrb[0].mxu0
        %v4347 = vpop.f32.mrb[0].mxu0
        %v4348 = vadd.f32 %v4212, %v4347
        %v4349 = vpop.f32.mrb[0].mxu0
        %4350 = vmatprep.mubr.bf16.mxu0 0
        %4351 = vmatmul.mubr.bf16.gmra.mrb[0].mxu0 %v4207
        %v4352 = vpop.f32.mrb[0].mxu0
        %v4353 = vadd.f32 %v4212, %v4352
        %v4354 = vpop.f32.mrb[0].mxu0
        %v4355 = vpop.f32.mrb[0].mxu0
        %v4356 = vadd.f32 %v4212, %v4355
        %v4357 = vpop.f32.mrb[0].mxu0
        %4358 = vdwg.mxu0
        %v4359 = vpack.c.bf16 %v4300, %v4297
        %v4360 = vpack.c.bf16 %v4308, %v4305
        %v4361 = vpack.c.bf16 %v4316, %v4313
        %v4362 = vpack.c.bf16 %v4324, %v4321
        %v4363 = vpack.c.bf16 %v4332, %v4329
        %v4364 = vpack.c.bf16 %v4340, %v4337
        %v4365 = vpack.c.bf16 %v4348, %v4345
        %v4366 = vpack.c.bf16 %v4356, %v4353
        %v4375 = vunpack.c.l.b16 %v4359
        %v4376 = vunpack.c.h.b16 %v4359
        %v4377 = vunpack.c.l.b16 %v4360
        %v4378 = vunpack.c.h.b16 %v4360
        %v4379 = vunpack.c.l.b16 %v4361
        %v4380 = vunpack.c.h.b16 %v4361
        %v4381 = vunpack.c.l.b16 %v4362
        %v4382 = vunpack.c.h.b16 %v4362
        %v4383 = vunpack.c.l.b16 %v4363
        %v4384 = vunpack.c.h.b16 %v4363
        %v4385 = vunpack.c.l.b16 %v4364
        %v4386 = vunpack.c.h.b16 %v4364
        %v4387 = vunpack.c.l.b16 %v4365
        %v4388 = vunpack.c.h.b16 %v4365
        %v4389 = vunpack.c.l.b16 %v4366
        %v4390 = vunpack.c.h.b16 %v4366
        %v4391 = vpack.c.b16 %v4375, %v4375
        %v4392 = vpack.c.b16 %v4376, %v4376
        %v4393 = vpack.c.b16 %v4377, %v4377
        %v4394 = vpack.c.b16 %v4378, %v4378
        %v4395 = vpack.c.b16 %v4379, %v4379
        %v4396 = vpack.c.b16 %v4380, %v4380
        %v4397 = vpack.c.b16 %v4381, %v4381
        %v4398 = vpack.c.b16 %v4382, %v4382
        %v4399 = vpack.c.b16 %v4383, %v4383
        %v4400 = vpack.c.b16 %v4384, %v4384
        %v4401 = vpack.c.b16 %v4385, %v4385
        %v4402 = vpack.c.b16 %v4386, %v4386
        %v4403 = vpack.c.b16 %v4387, %v4387
        %v4404 = vpack.c.b16 %v4388, %v4388
        %v4405 = vpack.c.b16 %v4389, %v4389
        %v4406 = vpack.c.b16 %v4390, %v4390
        %4423 = vst [vmem:[%s775] sm:$0xf] %v4391
        %4424 = vst [vmem:[%s775 + $0x4] sm:$0xf] %v4392
        %4425 = vst [vmem:[%s775 + $0x8] sm:$0xf] %v4393
        %4426 = vst [vmem:[%s775 + $0xc] sm:$0xf] %v4394
        %4427 = vst [vmem:[%s775 + $0x10] sm:$0xf] %v4395
        %4428 = vst [vmem:[%s775 + $0x14] sm:$0xf] %v4396
        %4429 = vst [vmem:[%s775 + $0x18] sm:$0xf] %v4397
        %4430 = vst [vmem:[%s775 + $0x1c] sm:$0xf] %v4398
        %4431 = vst [vmem:[%s775 + $0x20] sm:$0xf] %v4399
        %4432 = vst [vmem:[%s775 + $0x24] sm:$0xf] %v4400
        %4433 = vst [vmem:[%s775 + $0x28] sm:$0xf] %v4401
        %4434 = vst [vmem:[%s775 + $0x2c] sm:$0xf] %v4402
        %4435 = vst [vmem:[%s775 + $0x30] sm:$0xf] %v4403
        %4436 = vst [vmem:[%s775 + $0x34] sm:$0xf] %v4404
        %4437 = vst [vmem:[%s775 + $0x38] sm:$0xf] %v4405
        %4438 = vst [vmem:[%s775 + $0x3c] sm:$0xf] %v4406
        %p4439 = scmp.lt.s32.totalorder %s52, 1
        %s4440 = scalar_select %p4439, %s52, 1
        %s4441 = smul.addr %s4440, 2
        %s4442 = smul.addr %s4441, 4
        %s4443 = scalar_lea.vmem %s20, %s4442
        %p4444 = scmp.lt.s32.totalorder %s52, 1
        %s4445 = scalar_select %p4444, %s52, 1
        %s4446 = smul.addr %s4445, 16
        %s4447 = smul.addr %s4446, 4
        %s4448 = scalar_lea.vmem %s21, %s4447
        %p4449 = scmp.lt.s32.totalorder %s52, 1
        %s4450 = scalar_select %p4449, %s52, 1
        %s4451 = smul.addr %s4450, 2
        %s4452 = smul.addr %s4451, 4
        %s4453 = scalar_lea.vmem %s22, %s4452
        // Predicated region
        $region121: #{fa_model_forward.1} parent=91 // pred_check
          %p4454 = pneg %p458
        $region122: #{fa_model_forward.1} parent=91 // pred_check_branch
          %4456 = sbr.rel (%p4454) target = $region124
        $region123: #{fa_model_forward.1} parent=91 // pred_region
          _
        $region124: #{fa_model_forward.1} parent=91 // pred_fallthru
          _
        // Predicated region
        $region125: #{fa_model_forward.1} parent=91 // pred_check
          %p4457 = pneg %p484
        $region126: #{fa_model_forward.1} parent=91 // pred_check_branch
          %4459 = sbr.rel (%p4457) target = $region128
        $region127: #{fa_model_forward.1} parent=91 // pred_region
          _
        $region128: #{fa_model_forward.1} parent=91 // pred_fallthru
          _
        // Predicated region
        $region129: #{fa_model_forward.1} parent=91 // pred_check
          %p4460 = pneg %p510
        $region130: #{fa_model_forward.1} parent=91 // pred_check_branch
          %4462 = sbr.rel (%p4460) target = $region132
        $region131: #{fa_model_forward.1} parent=91 // pred_region
          _
        $region132: #{fa_model_forward.1} parent=91 // pred_fallthru
          _
      $region92: #{fa_model_forward.1} parent=5 // pred_fallthru
        _
      %p4463 = scmp.le.s32.totalorder 2, %s47
      // Predicated region
      $region133: #{fa_model_forward.1} parent=5 // pred_check
        %p4464 = pneg %p4463
      $region134: #{fa_model_forward.1} parent=5 // pred_check_branch
        %4466 = sbr.rel (%p4464) target = $region136
      $region135: #{fa_model_forward.1} parent=5 // pred_region
        %s4467 = ssub.s32 %s47, 2
        // Predicated region
        $region137: #{fa_model_forward.1} parent=135 // pred_check
          %p4468 = pneg %p464
        $region138: #{fa_model_forward.1} parent=135 // pred_check_branch
          %4470 = sbr.rel (%p4468) target = $region140
        $region139: #{fa_model_forward.1} parent=135 // pred_region
          %p4471 = scmp.lt.s32.totalorder %s53, 1
          %s4472 = scalar_select %p4471, %s53, 1
          %s4473 = smul.addr %s4472, 2
          %s4474 = smul.addr %s4473, 4
          %s4475 = scalar_lea.vmem %s20, %s4474
        $region140: #{fa_model_forward.1} parent=135 // pred_fallthru
          _
        // Predicated region
        $region141: #{fa_model_forward.1} parent=135 // pred_check
          %p4476 = pneg %p490
        $region142: #{fa_model_forward.1} parent=135 // pred_check_branch
          %4478 = sbr.rel (%p4476) target = $region144
        $region143: #{fa_model_forward.1} parent=135 // pred_region
          %p4479 = scmp.lt.s32.totalorder %s53, 1
          %s4480 = scalar_select %p4479, %s53, 1
          %s4481 = smul.addr %s4480, 16
          %s4482 = smul.addr %s4481, 4
          %s4483 = scalar_lea.vmem %s21, %s4482
        $region144: #{fa_model_forward.1} parent=135 // pred_fallthru
          _
        // Predicated region
        $region145: #{fa_model_forward.1} parent=135 // pred_check
          %p4484 = pneg %p516
        $region146: #{fa_model_forward.1} parent=135 // pred_check_branch
          %4486 = sbr.rel (%p4484) target = $region148
        $region147: #{fa_model_forward.1} parent=135 // pred_region
          %p4487 = scmp.lt.s32.totalorder %s53, 1
          %s4488 = scalar_select %p4487, %s53, 1
          %s4489 = smul.addr %s4488, 2
          %s4490 = smul.addr %s4489, 4
          %s4491 = scalar_lea.vmem %s22, %s4490
        $region148: #{fa_model_forward.1} parent=135 // pred_fallthru
          _
      $region136: #{fa_model_forward.1} parent=5 // pred_fallthru
        _
    $region6: #{fa_model_forward.1} parent=1 // loop_footer
      %s51 = sadd.s32 1, %s47
    $region7: #{fa_model_forward.1} parent=1 // loop_footer_branch
      %46 = sbr.rel target = $region3
    $region8: #{fa_model_forward.1} parent=1 // loop_exit
      _
    %4492 = vsyncpa [#allocation8], 1
    %s4493 = scalar_lea.sflag [#allocation8], 1
    %4494 = vsyncpa %s4493, 1
    %4495 = vsyncpa [#allocation10], 1
    %4496 = vsyncpa [#allocation13], 1
    %4497 = vsyncpa [#allocation16], 1

</llo_original>
